<compile_context>
chip_gen: v7x
topology: tpu7x:2x2x1
jax: 0.10.0
libtpu: 0.0.40
codegen_flags: <defaults>
</compile_context>

<pallas_src>
import jax
import jax.numpy as jnp
import numpy as np
from jax.experimental import pallas as pl
from jax.experimental.pallas import tpu as pltpu

_MXU_DTYPE = jnp.bfloat16   # MXU operand dtype; accumulation is always f32.


# ------------------------------ Pallas kernel -------------------------------


def _decoder_kernel(*refs):
    (x_ref, x1_ref, x2_ref, x3_ref,
     m0_ref, m1_ref, m2_ref,
     w1a_ref, sc1a_ref, sh1a_ref, w1b_ref, sc1b_ref, sh1b_ref,
     w2a_ref, sc2a_ref, sh2a_ref, w2b_ref, sc2b_ref, sh2b_ref,
     w3a_ref, sc3a_ref, sh3a_ref, w3b_ref, sc3b_ref, sh3b_ref,
     wf_ref, bf_ref,
     o_ref) = refs

    f32 = jnp.float32

    def mxu(a, b):
        # bf16 MXU operands, f32 accumulation.
        return jnp.dot(a.astype(_MXU_DTYPE), b.astype(_MXU_DTYPE),
                       preferred_element_type=f32)

    def shift_mats(length):
        # Constant 0/1 shift matrices (iota/where -> vregs, built once):
        #   x @ sm -> out[:, l] = x[:, l-1]   (zero at l == 0)
        #   x @ sp -> out[:, l] = x[:, l+1]   (zero at l == L-1)
        r = jax.lax.broadcasted_iota(jnp.int32, (length, length), 0)
        c = jax.lax.broadcasted_iota(jnp.int32, (length, length), 1)
        sm = jnp.where(r + 1 == c, 1.0, 0.0).astype(_MXU_DTYPE)
        sp = jnp.where(r == c + 1, 1.0, 0.0).astype(_MXU_DTYPE)
        return sm, sp

    def conv3(x, w, sm, sp):
        # x: (Cin, L) f32 tile (NCL orientation); w: (3, Cout, Cin) bf16.
        # TF-"same" (k=3, s=1): y[:, l] = sum_t W[t] @ x[:, l + t - 1],
        # zero outside [0, L).  Shifts + taps all run on the MXU.
        xb = x.astype(_MXU_DTYPE)
        x_m = jnp.dot(xb, sm, preferred_element_type=f32).astype(_MXU_DTYPE)
        x_p = jnp.dot(xb, sp, preferred_element_type=f32).astype(_MXU_DTYPE)
        return (jnp.dot(w[0], x_m, preferred_element_type=f32)
                + jnp.dot(w[1], xb, preferred_element_type=f32)
                + jnp.dot(w[2], x_p, preferred_element_type=f32))

    def bn_lrelu(y, sc, sh):
        y = y * sc + sh                           # folded BatchNorm (+bias), f32
        return jnp.where(y > 0.0, y, 0.2 * y)     # LeakyReLU(0.2), f32 on VPU

    def stage(h, skip, wa, sca, sha, wb, scb, shb, sm, sp):
        # ConvNormRelu(cat([h, skip], dim=channels)) then ConvNormRelu.
        # The channel concat is a sublane-dim concat (8-aligned -> cheap).
        cat = jnp.concatenate([h, skip], axis=0)
        y = bn_lrelu(conv3(cat, wa, sm, sp), sca, sha)
        return bn_lrelu(conv3(y, wb, sm, sp), scb, shb)

    l3 = x3_ref.shape[2]
    l2 = x2_ref.shape[2]
    l1 = x1_ref.shape[2]
    sm3, sp3 = shift_mats(l3)
    sm2, sp2 = shift_mats(l2)
    sm1, sp1 = shift_mats(l1)

    # Hoist every parameter load out of the (unrolled) batch loop.
    m0 = m0_ref[...]; m1 = m1_ref[...]; m2 = m2_ref[...]
    w1a = w1a_ref[...]; sc1a = sc1a_ref[...]; sh1a = sh1a_ref[...]
    w1b = w1b_ref[...]; sc1b = sc1b_ref[...]; sh1b = sh1b_ref[...]
    w2a = w2a_ref[...]; sc2a = sc2a_ref[...]; sh2a = sh2a_ref[...]
    w2b = w2b_ref[...]; sc2b = sc2b_ref[...]; sh2b = sh2b_ref[...]
    w3a = w3a_ref[...]; sc3a = sc3a_ref[...]; sh3a = sh3a_ref[...]
    w3b = w3b_ref[...]; sc3b = sc3b_ref[...]; sh3b = sh3b_ref[...]
    wf = wf_ref[...]; bf = bf_ref[...]

    n_batch = x_ref.shape[0]
    for n in range(n_batch):                      # tiny batch: unrolled in-kernel
        # ---- up1 ----
        h = mxu(x_ref[n], m0)                     # F.interpolate(nearest) -> L3
        h = stage(h, x3_ref[n], w1a, sc1a, sh1a, w1b, sc1b, sh1b, sm3, sp3)
        h = mxu(h, m1)                            # Upsample x2 (+interp) -> L2
        # ---- up2 ----
        h = stage(h, x2_ref[n], w2a, sc2a, sh2a, w2b, sc2b, sh2b, sm2, sp2)
        h = mxu(h, m2)                            # Upsample x2 (+interp) -> L1
        # ---- up3 ----
        h = stage(h, x1_ref[n], w3a, sc3a, sh3a, w3b, sc3b, sh3b, sm1, sp1)
        # final 1x1 conv -> output stored directly in NCL layout.
        y = mxu(wf, h) + bf                       # (out_ch, L1)
        o_ref[n] = y.astype(o_ref.dtype)


# ----------------------- resize matrices (trace-time) ------------------------


def _nearest_matrix(l_in, l_out):
    """F.interpolate(mode='nearest', size=l_out): out[i] = in[(i*l_in)//l_out]."""
    m = np.zeros((l_in, l_out), np.float32)
    m[(np.arange(l_out) * l_in) // l_out, np.arange(l_out)] = 1.0
    return jnp.asarray(m, _MXU_DTYPE)


def _up2_then_nearest_matrix(l_in, l_out):
    """nn.Upsample(scale_factor=2, nearest) followed by
    F.interpolate(mode='nearest', size=l_out), folded into one 0/1 matrix."""
    m = np.zeros((l_in, l_out), np.float32)
    src = ((np.arange(l_out) * (2 * l_in)) // l_out) // 2
    m[src, np.arange(l_out)] = 1.0
    return jnp.asarray(m, _MXU_DTYPE)


# --------------------------------- wrapper -----------------------------------


def _full_spec(arr):
    zeros = (0,) * arr.ndim
    return pl.BlockSpec(arr.shape, lambda i, _z=zeros: _z)


def decoder_forward(prep, x, x1, x2, x3):
    """Fused Decoder forward.  Inputs/outputs are PyTorch NCL (N, C, L)."""
    n = x.shape[0]
    lx, l3, l2, l1 = x.shape[2], x3.shape[2], x2.shape[2], x1.shape[2]
    out_ch = prep["wf"].shape[0]

    m0 = _nearest_matrix(lx, l3)
    m1 = _up2_then_nearest_matrix(l3, l2)
    m2 = _up2_then_nearest_matrix(l2, l1)

    operands = [x, x1, x2, x3, m0, m1, m2]
    for s in ("s1", "s2", "s3"):
        a, b = prep[s + "a"], prep[s + "b"]
        operands += [a["w"], a["scale"], a["shift"],
                     b["w"], b["scale"], b["shift"]]
    operands += [prep["wf"], prep["bf"]]

    return pl.pallas_call(
        _decoder_kernel,
        out_shape=jax.ShapeDtypeStruct((n, out_ch, l1), x.dtype),
        grid=(1,),
        in_specs=[_full_spec(op) for op in operands],
        out_specs=pl.BlockSpec((n, out_ch, l1), lambda i: (0, 0, 0)),
        compiler_params=pltpu.CompilerParams(
            dimension_semantics=("arbitrary",)),
    )(*operands)


# -------------------------- one-time param folding ---------------------------


def prepare_decoder_params(params, eps=1e-5):
    """Convert PyTorch-layout params to kernel layout (run once, not per step).

    Folds BatchNorm (eval-mode running stats) + conv bias into a per-channel
    scale/shift, moves the conv tap axis to the front ((Cout,Cin,3) ->
    (3,Cout,Cin)), and pre-casts the matmul weights to the MXU dtype.
    """
    def cnr(p):
        w = jnp.transpose(p["w"], (2, 0, 1)).astype(_MXU_DTYPE)  # (3, Cout, Cin)
        scale = p["gamma"] * jax.lax.rsqrt(p["var"] + eps)
        shift = (p["b"] - p["mean"]) * scale + p["beta"]
        cout = w.shape[1]
        return dict(w=w,
                    scale=scale.reshape(cout, 1).astype(jnp.float32),
                    shift=shift.reshape(cout, 1).astype(jnp.float32))

    up1a, up1b = params["up1"]
    up2a, up2b = params["up2"]
    up3a, up3b, fin = params["up3"]
    return {
        "s1a": cnr(up1a), "s1b": cnr(up1b),
        "s2a": cnr(up2a), "s2b": cnr(up2b),
        "s3a": cnr(up3a), "s3b": cnr(up3b),
        "wf": fin["w"][:, :, 0].astype(_MXU_DTYPE),           # (out_ch, in_ch//8)
        "bf": fin["b"].reshape(-1, 1).astype(jnp.float32),    # (out_ch, 1)
    }


# --------------------------- deterministic params ----------------------------


def _cnr_params(key, cin, cout):
    kw, kb, kg, kbt, km, kv = jax.random.split(key, 6)
    bound = 1.0 / (cin * 3) ** 0.5
    return dict(
        w=jax.random.uniform(kw, (cout, cin, 3), jnp.float32, -bound, bound),
        b=jax.random.uniform(kb, (cout,), jnp.float32, -bound, bound),
        gamma=1.0 + 0.1 * jax.random.normal(kg, (cout,), jnp.float32),
        beta=0.1 * jax.random.normal(kbt, (cout,), jnp.float32),
        mean=0.1 * jax.random.normal(km, (cout,), jnp.float32),
        var=jnp.abs(1.0 + 0.1 * jax.random.normal(kv, (cout,), jnp.float32)),
    )


def make_decoder_params(key, in_ch, out_ch):
    ks = jax.random.split(key, 8)
    bound = 1.0 / (in_ch // 8) ** 0.5
    return {
        "up1": [_cnr_params(ks[0], in_ch // 2 + in_ch, in_ch // 2),
                _cnr_params(ks[1], in_ch // 2, in_ch // 2)],
        "up2": [_cnr_params(ks[2], in_ch // 4 + in_ch // 2, in_ch // 4),
                _cnr_params(ks[3], in_ch // 4, in_ch // 4)],
        "up3": [_cnr_params(ks[4], in_ch // 8 + in_ch // 4, in_ch // 8),
                _cnr_params(ks[5], in_ch // 8, in_ch // 8),
                dict(w=jax.random.uniform(ks[6], (out_ch, in_ch // 8, 1),
                                          jnp.float32, -bound, bound),
                     b=jax.random.uniform(ks[7], (out_ch,),
                                          jnp.float32, -bound, bound))],
    }


# ----------------------------------- main ------------------------------------


if __name__ == "__main__":
    key = jax.random.PRNGKey(0)
    kp, kx, k1, k2, k3 = jax.random.split(key, 5)

    in_ch, out_ch = 32, 16
    N = 2
    L1, L2, L3, Lx = 32, 16, 8, 4   # encoder pyramid lengths

    params = make_decoder_params(kp, in_ch, out_ch)
    prep = prepare_decoder_params(params)          # one-time, outside hot path

    # PyTorch NCL inputs (channel counts chosen so the channel concats match
    # the ConvNormRelu input widths: in_ch//2+in_ch, in_ch//4+in_ch//2, ...).
    x = jax.random.normal(kx, (N, in_ch, Lx), jnp.float32)
    x3 = jax.random.normal(k3, (N, in_ch // 2, L3), jnp.float32)
    x2 = jax.random.normal(k2, (N, in_ch // 4, L2), jnp.float32)
    x1 = jax.random.normal(k1, (N, in_ch // 8, L1), jnp.float32)

    fwd = jax.jit(decoder_forward)
    out = fwd(prep, x, x1, x2, x3)
    jax.block_until_ready(out)

    assert out.shape == (N, out_ch, L1), out.shape
    assert bool(jnp.isfinite(out).all())
    print("KERNEL_OK")
</pallas_src>

<mosaic_0001>
module attributes {stable_mosaic.version = 11 : i64} {
  func.func @_decoder_kernel(%arg0: i32, %arg1: memref<2x32x4xf32, #tpu.memory_space<vmem>>, %arg2: memref<2x4x32xf32, #tpu.memory_space<vmem>>, %arg3: memref<2x8x16xf32, #tpu.memory_space<vmem>>, %arg4: memref<2x16x8xf32, #tpu.memory_space<vmem>>, %arg5: memref<4x8xbf16, #tpu.memory_space<vmem>>, %arg6: memref<8x16xbf16, #tpu.memory_space<vmem>>, %arg7: memref<16x32xbf16, #tpu.memory_space<vmem>>, %arg8: memref<3x16x48xbf16, #tpu.memory_space<vmem>>, %arg9: memref<16x1xf32, #tpu.memory_space<vmem>>, %arg10: memref<16x1xf32, #tpu.memory_space<vmem>>, %arg11: memref<3x16x16xbf16, #tpu.memory_space<vmem>>, %arg12: memref<16x1xf32, #tpu.memory_space<vmem>>, %arg13: memref<16x1xf32, #tpu.memory_space<vmem>>, %arg14: memref<3x8x24xbf16, #tpu.memory_space<vmem>>, %arg15: memref<8x1xf32, #tpu.memory_space<vmem>>, %arg16: memref<8x1xf32, #tpu.memory_space<vmem>>, %arg17: memref<3x8x8xbf16, #tpu.memory_space<vmem>>, %arg18: memref<8x1xf32, #tpu.memory_space<vmem>>, %arg19: memref<8x1xf32, #tpu.memory_space<vmem>>, %arg20: memref<3x4x12xbf16, #tpu.memory_space<vmem>>, %arg21: memref<4x1xf32, #tpu.memory_space<vmem>>, %arg22: memref<4x1xf32, #tpu.memory_space<vmem>>, %arg23: memref<3x4x4xbf16, #tpu.memory_space<vmem>>, %arg24: memref<4x1xf32, #tpu.memory_space<vmem>>, %arg25: memref<4x1xf32, #tpu.memory_space<vmem>>, %arg26: memref<16x4xbf16, #tpu.memory_space<vmem>>, %arg27: memref<16x1xf32, #tpu.memory_space<vmem>>, %arg28: memref<2x16x32xf32, #tpu.memory_space<vmem>>) attributes {dimension_semantics = [#tpu.dimension_semantics<arbitrary>], iteration_bounds = array<i64: 1>, scalar_prefetch = 0 : i64, scratch_operands = 0 : i64, tpu.core_type = #tpu.core_type<tc>, window_params = [{pipeline_mode = #tpu.pipeline_mode<synchronous>, transform_indices = @transform_0, window_bounds = array<i64: 2, 32, 4>}, {pipeline_mode = #tpu.pipeline_mode<synchronous>, transform_indices = @transform_1, window_bounds = array<i64: 2, 4, 32>}, {pipeline_mode = #tpu.pipeline_mode<synchronous>, transform_indices = @transform_2, window_bounds = array<i64: 2, 8, 16>}, {pipeline_mode = #tpu.pipeline_mode<synchronous>, transform_indices = @transform_3, window_bounds = array<i64: 2, 16, 8>}, {pipeline_mode = #tpu.pipeline_mode<synchronous>, transform_indices = @transform_4, window_bounds = array<i64: 4, 8>}, {pipeline_mode = #tpu.pipeline_mode<synchronous>, transform_indices = @transform_5, window_bounds = array<i64: 8, 16>}, {pipeline_mode = #tpu.pipeline_mode<synchronous>, transform_indices = @transform_6, window_bounds = array<i64: 16, 32>}, {pipeline_mode = #tpu.pipeline_mode<synchronous>, transform_indices = @transform_7, window_bounds = array<i64: 3, 16, 48>}, {pipeline_mode = #tpu.pipeline_mode<synchronous>, transform_indices = @transform_8, window_bounds = array<i64: 16, 1>}, {pipeline_mode = #tpu.pipeline_mode<synchronous>, transform_indices = @transform_9, window_bounds = array<i64: 16, 1>}, {pipeline_mode = #tpu.pipeline_mode<synchronous>, transform_indices = @transform_10, window_bounds = array<i64: 3, 16, 16>}, {pipeline_mode = #tpu.pipeline_mode<synchronous>, transform_indices = @transform_11, window_bounds = array<i64: 16, 1>}, {pipeline_mode = #tpu.pipeline_mode<synchronous>, transform_indices = @transform_12, window_bounds = array<i64: 16, 1>}, {pipeline_mode = #tpu.pipeline_mode<synchronous>, transform_indices = @transform_13, window_bounds = array<i64: 3, 8, 24>}, {pipeline_mode = #tpu.pipeline_mode<synchronous>, transform_indices = @transform_14, window_bounds = array<i64: 8, 1>}, {pipeline_mode = #tpu.pipeline_mode<synchronous>, transform_indices = @transform_15, window_bounds = array<i64: 8, 1>}, {pipeline_mode = #tpu.pipeline_mode<synchronous>, transform_indices = @transform_16, window_bounds = array<i64: 3, 8, 8>}, {pipeline_mode = #tpu.pipeline_mode<synchronous>, transform_indices = @transform_17, window_bounds = array<i64: 8, 1>}, {pipeline_mode = #tpu.pipeline_mode<synchronous>, transform_indices = @transform_18, window_bounds = array<i64: 8, 1>}, {pipeline_mode = #tpu.pipeline_mode<synchronous>, transform_indices = @transform_19, window_bounds = array<i64: 3, 4, 12>}, {pipeline_mode = #tpu.pipeline_mode<synchronous>, transform_indices = @transform_20, window_bounds = array<i64: 4, 1>}, {pipeline_mode = #tpu.pipeline_mode<synchronous>, transform_indices = @transform_21, window_bounds = array<i64: 4, 1>}, {pipeline_mode = #tpu.pipeline_mode<synchronous>, transform_indices = @transform_22, window_bounds = array<i64: 3, 4, 4>}, {pipeline_mode = #tpu.pipeline_mode<synchronous>, transform_indices = @transform_23, window_bounds = array<i64: 4, 1>}, {pipeline_mode = #tpu.pipeline_mode<synchronous>, transform_indices = @transform_24, window_bounds = array<i64: 4, 1>}, {pipeline_mode = #tpu.pipeline_mode<synchronous>, transform_indices = @transform_25, window_bounds = array<i64: 16, 4>}, {pipeline_mode = #tpu.pipeline_mode<synchronous>, transform_indices = @transform_26, window_bounds = array<i64: 16, 1>}, {pipeline_mode = #tpu.pipeline_mode<synchronous>, transform_indices = @transform_27, window_bounds = array<i64: 2, 16, 32>}]} {
    %0 = tpu.iota {dimensions = array<i32: 0>} : vector<8x8xi32>
    %1 = tpu.iota {dimensions = array<i32: 1>} : vector<8x8xi32>
    %c1_i32 = arith.constant 1 : i32
    %2 = vector.broadcast %c1_i32 : i32 to vector<8x8xi32>
    %3 = arith.addi %0, %2 : vector<8x8xi32>
    %4 = arith.cmpi eq, %3, %1 : vector<8x8xi32>
    %cst = arith.constant 1.000000e+00 : f32
    %cst_0 = arith.constant 0.000000e+00 : f32
    %5 = vector.broadcast %cst : f32 to vector<8x8xf32>
    %6 = vector.broadcast %cst_0 : f32 to vector<8x8xf32>
    %7 = arith.select %4, %5, %6 : vector<8x8xi1>, vector<8x8xf32>
    %8 = arith.truncf %7 : vector<8x8xf32> to vector<8x8xbf16>
    %c1_i32_1 = arith.constant 1 : i32
    %9 = vector.broadcast %c1_i32_1 : i32 to vector<8x8xi32>
    %10 = arith.addi %1, %9 : vector<8x8xi32>
    %11 = arith.cmpi eq, %0, %10 : vector<8x8xi32>
    %cst_2 = arith.constant 1.000000e+00 : f32
    %cst_3 = arith.constant 0.000000e+00 : f32
    %12 = vector.broadcast %cst_2 : f32 to vector<8x8xf32>
    %13 = vector.broadcast %cst_3 : f32 to vector<8x8xf32>
    %14 = arith.select %11, %12, %13 : vector<8x8xi1>, vector<8x8xf32>
    %15 = arith.truncf %14 : vector<8x8xf32> to vector<8x8xbf16>
    %16 = tpu.iota {dimensions = array<i32: 0>} : vector<16x16xi32>
    %17 = tpu.iota {dimensions = array<i32: 1>} : vector<16x16xi32>
    %c1_i32_4 = arith.constant 1 : i32
    %18 = vector.broadcast %c1_i32_4 : i32 to vector<16x16xi32>
    %19 = arith.addi %16, %18 : vector<16x16xi32>
    %20 = arith.cmpi eq, %19, %17 : vector<16x16xi32>
    %cst_5 = arith.constant 1.000000e+00 : f32
    %cst_6 = arith.constant 0.000000e+00 : f32
    %21 = vector.broadcast %cst_5 : f32 to vector<16x16xf32>
    %22 = vector.broadcast %cst_6 : f32 to vector<16x16xf32>
    %23 = arith.select %20, %21, %22 : vector<16x16xi1>, vector<16x16xf32>
    %24 = arith.truncf %23 : vector<16x16xf32> to vector<16x16xbf16>
    %c1_i32_7 = arith.constant 1 : i32
    %25 = vector.broadcast %c1_i32_7 : i32 to vector<16x16xi32>
    %26 = arith.addi %17, %25 : vector<16x16xi32>
    %27 = arith.cmpi eq, %16, %26 : vector<16x16xi32>
    %cst_8 = arith.constant 1.000000e+00 : f32
    %cst_9 = arith.constant 0.000000e+00 : f32
    %28 = vector.broadcast %cst_8 : f32 to vector<16x16xf32>
    %29 = vector.broadcast %cst_9 : f32 to vector<16x16xf32>
    %30 = arith.select %27, %28, %29 : vector<16x16xi1>, vector<16x16xf32>
    %31 = arith.truncf %30 : vector<16x16xf32> to vector<16x16xbf16>
    %32 = tpu.iota {dimensions = array<i32: 0>} : vector<32x32xi32>
    %33 = tpu.iota {dimensions = array<i32: 1>} : vector<32x32xi32>
    %c1_i32_10 = arith.constant 1 : i32
    %34 = vector.broadcast %c1_i32_10 : i32 to vector<32x32xi32>
    %35 = arith.addi %32, %34 : vector<32x32xi32>
    %36 = arith.cmpi eq, %35, %33 : vector<32x32xi32>
    %cst_11 = arith.constant 1.000000e+00 : f32
    %cst_12 = arith.constant 0.000000e+00 : f32
    %37 = vector.broadcast %cst_11 : f32 to vector<32x32xf32>
    %38 = vector.broadcast %cst_12 : f32 to vector<32x32xf32>
    %39 = arith.select %36, %37, %38 : vector<32x32xi1>, vector<32x32xf32>
    %40 = arith.truncf %39 : vector<32x32xf32> to vector<32x32xbf16>
    %c1_i32_13 = arith.constant 1 : i32
    %41 = vector.broadcast %c1_i32_13 : i32 to vector<32x32xi32>
    %42 = arith.addi %33, %41 : vector<32x32xi32>
    %43 = arith.cmpi eq, %32, %42 : vector<32x32xi32>
    %cst_14 = arith.constant 1.000000e+00 : f32
    %cst_15 = arith.constant 0.000000e+00 : f32
    %44 = vector.broadcast %cst_14 : f32 to vector<32x32xf32>
    %45 = vector.broadcast %cst_15 : f32 to vector<32x32xf32>
    %46 = arith.select %43, %44, %45 : vector<32x32xi1>, vector<32x32xf32>
    %47 = arith.truncf %46 : vector<32x32xf32> to vector<32x32xbf16>
    %c0 = arith.constant 0 : index
    %c0_16 = arith.constant 0 : index
    %48 = vector.load %arg5[%c0, %c0_16] : memref<4x8xbf16, #tpu.memory_space<vmem>>, vector<4x8xbf16>
    %c0_17 = arith.constant 0 : index
    %c0_18 = arith.constant 0 : index
    %49 = vector.load %arg6[%c0_17, %c0_18] : memref<8x16xbf16, #tpu.memory_space<vmem>>, vector<8x16xbf16>
    %c0_19 = arith.constant 0 : index
    %c0_20 = arith.constant 0 : index
    %50 = vector.load %arg7[%c0_19, %c0_20] : memref<16x32xbf16, #tpu.memory_space<vmem>>, vector<16x32xbf16>
    %c0_21 = arith.constant 0 : index
    %c0_22 = arith.constant 0 : index
    %c0_23 = arith.constant 0 : index
    %51 = vector.load %arg8[%c0_21, %c0_22, %c0_23] : memref<3x16x48xbf16, #tpu.memory_space<vmem>>, vector<3x16x48xbf16>
    %c0_24 = arith.constant 0 : index
    %c0_25 = arith.constant 0 : index
    %52 = vector.load %arg9[%c0_24, %c0_25] : memref<16x1xf32, #tpu.memory_space<vmem>>, vector<16x1xf32>
    %c0_26 = arith.constant 0 : index
    %c0_27 = arith.constant 0 : index
    %53 = vector.load %arg10[%c0_26, %c0_27] : memref<16x1xf32, #tpu.memory_space<vmem>>, vector<16x1xf32>
    %c0_28 = arith.constant 0 : index
    %c0_29 = arith.constant 0 : index
    %c0_30 = arith.constant 0 : index
    %54 = vector.load %arg11[%c0_28, %c0_29, %c0_30] : memref<3x16x16xbf16, #tpu.memory_space<vmem>>, vector<3x16x16xbf16>
    %c0_31 = arith.constant 0 : index
    %c0_32 = arith.constant 0 : index
    %55 = vector.load %arg12[%c0_31, %c0_32] : memref<16x1xf32, #tpu.memory_space<vmem>>, vector<16x1xf32>
    %c0_33 = arith.constant 0 : index
    %c0_34 = arith.constant 0 : index
    %56 = vector.load %arg13[%c0_33, %c0_34] : memref<16x1xf32, #tpu.memory_space<vmem>>, vector<16x1xf32>
    %c0_35 = arith.constant 0 : index
    %c0_36 = arith.constant 0 : index
    %c0_37 = arith.constant 0 : index
    %57 = vector.load %arg14[%c0_35, %c0_36, %c0_37] : memref<3x8x24xbf16, #tpu.memory_space<vmem>>, vector<3x8x24xbf16>
    %c0_38 = arith.constant 0 : index
    %c0_39 = arith.constant 0 : index
    %58 = vector.load %arg15[%c0_38, %c0_39] : memref<8x1xf32, #tpu.memory_space<vmem>>, vector<8x1xf32>
    %c0_40 = arith.constant 0 : index
    %c0_41 = arith.constant 0 : index
    %59 = vector.load %arg16[%c0_40, %c0_41] : memref<8x1xf32, #tpu.memory_space<vmem>>, vector<8x1xf32>
    %c0_42 = arith.constant 0 : index
    %c0_43 = arith.constant 0 : index
    %c0_44 = arith.constant 0 : index
    %60 = vector.load %arg17[%c0_42, %c0_43, %c0_44] : memref<3x8x8xbf16, #tpu.memory_space<vmem>>, vector<3x8x8xbf16>
    %c0_45 = arith.constant 0 : index
    %c0_46 = arith.constant 0 : index
    %61 = vector.load %arg18[%c0_45, %c0_46] : memref<8x1xf32, #tpu.memory_space<vmem>>, vector<8x1xf32>
    %c0_47 = arith.constant 0 : index
    %c0_48 = arith.constant 0 : index
    %62 = vector.load %arg19[%c0_47, %c0_48] : memref<8x1xf32, #tpu.memory_space<vmem>>, vector<8x1xf32>
    %c0_49 = arith.constant 0 : index
    %c0_50 = arith.constant 0 : index
    %c0_51 = arith.constant 0 : index
    %63 = vector.load %arg20[%c0_49, %c0_50, %c0_51] : memref<3x4x12xbf16, #tpu.memory_space<vmem>>, vector<3x4x12xbf16>
    %c0_52 = arith.constant 0 : index
    %c0_53 = arith.constant 0 : index
    %64 = vector.load %arg21[%c0_52, %c0_53] : memref<4x1xf32, #tpu.memory_space<vmem>>, vector<4x1xf32>
    %c0_54 = arith.constant 0 : index
    %c0_55 = arith.constant 0 : index
    %65 = vector.load %arg22[%c0_54, %c0_55] : memref<4x1xf32, #tpu.memory_space<vmem>>, vector<4x1xf32>
    %c0_56 = arith.constant 0 : index
    %c0_57 = arith.constant 0 : index
    %c0_58 = arith.constant 0 : index
    %66 = vector.load %arg23[%c0_56, %c0_57, %c0_58] : memref<3x4x4xbf16, #tpu.memory_space<vmem>>, vector<3x4x4xbf16>
    %c0_59 = arith.constant 0 : index
    %c0_60 = arith.constant 0 : index
    %67 = vector.load %arg24[%c0_59, %c0_60] : memref<4x1xf32, #tpu.memory_space<vmem>>, vector<4x1xf32>
    %c0_61 = arith.constant 0 : index
    %c0_62 = arith.constant 0 : index
    %68 = vector.load %arg25[%c0_61, %c0_62] : memref<4x1xf32, #tpu.memory_space<vmem>>, vector<4x1xf32>
    %c0_63 = arith.constant 0 : index
    %c0_64 = arith.constant 0 : index
    %69 = vector.load %arg26[%c0_63, %c0_64] : memref<16x4xbf16, #tpu.memory_space<vmem>>, vector<16x4xbf16>
    %c0_65 = arith.constant 0 : index
    %c0_66 = arith.constant 0 : index
    %70 = vector.load %arg27[%c0_65, %c0_66] : memref<16x1xf32, #tpu.memory_space<vmem>>, vector<16x1xf32>
    %c0_67 = arith.constant 0 : index
    %c0_68 = arith.constant 0 : index
    %c0_69 = arith.constant 0 : index
    %71 = vector.load %arg1[%c0_67, %c0_68, %c0_69] : memref<2x32x4xf32, #tpu.memory_space<vmem>>, vector<1x32x4xf32>
    %72 = vector.shape_cast %71 : vector<1x32x4xf32> to vector<32x4xf32>
    %73 = arith.truncf %72 : vector<32x4xf32> to vector<32x4xbf16>
    %cst_70 = arith.constant dense<0.000000e+00> : vector<32x8xf32>
    %74 = tpu.matmul %73, %48, %cst_70 {dimension_numbers = #tpu.dot_dimension_numbers<[1], [0], [0], [1], [0, 0, 1, 1], [], []>} : vector<32x4xbf16>, vector<4x8xbf16>, vector<32x8xf32> -> vector<32x8xf32>
    %c0_71 = arith.constant 0 : index
    %c0_72 = arith.constant 0 : index
    %c0_73 = arith.constant 0 : index
    %75 = vector.load %arg4[%c0_71, %c0_72, %c0_73] : memref<2x16x8xf32, #tpu.memory_space<vmem>>, vector<1x16x8xf32>
    %76 = vector.shape_cast %75 : vector<1x16x8xf32> to vector<16x8xf32>
    %77 = tpu.concatenate %74, %76 in 0 : vector<32x8xf32>, vector<16x8xf32> -> vector<48x8xf32>
    %78 = arith.truncf %77 : vector<48x8xf32> to vector<48x8xbf16>
    %cst_74 = arith.constant dense<0.000000e+00> : vector<48x8xf32>
    %79 = tpu.matmul %78, %8, %cst_74 {dimension_numbers = #tpu.dot_dimension_numbers<[1], [0], [0], [1], [0, 0, 1, 1], [], []>} : vector<48x8xbf16>, vector<8x8xbf16>, vector<48x8xf32> -> vector<48x8xf32>
    %80 = arith.truncf %79 : vector<48x8xf32> to vector<48x8xbf16>
    %cst_75 = arith.constant dense<0.000000e+00> : vector<48x8xf32>
    %81 = tpu.matmul %78, %15, %cst_75 {dimension_numbers = #tpu.dot_dimension_numbers<[1], [0], [0], [1], [0, 0, 1, 1], [], []>} : vector<48x8xbf16>, vector<8x8xbf16>, vector<48x8xf32> -> vector<48x8xf32>
    %82 = arith.truncf %81 : vector<48x8xf32> to vector<48x8xbf16>
    %83 = vector.extract_strided_slice %51 {offsets = [0, 0, 0], sizes = [1, 16, 48], strides = [1, 1, 1]} : vector<3x16x48xbf16> to vector<1x16x48xbf16>
    %84 = vector.shape_cast %83 : vector<1x16x48xbf16> to vector<16x48xbf16>
    %cst_76 = arith.constant dense<0.000000e+00> : vector<16x8xf32>
    %85 = tpu.matmul %84, %80, %cst_76 {dimension_numbers = #tpu.dot_dimension_numbers<[1], [0], [0], [1], [0, 0, 1, 1], [], []>} : vector<16x48xbf16>, vector<48x8xbf16>, vector<16x8xf32> -> vector<16x8xf32>
    %86 = vector.extract_strided_slice %51 {offsets = [1, 0, 0], sizes = [1, 16, 48], strides = [1, 1, 1]} : vector<3x16x48xbf16> to vector<1x16x48xbf16>
    %87 = vector.shape_cast %86 : vector<1x16x48xbf16> to vector<16x48xbf16>
    %cst_77 = arith.constant dense<0.000000e+00> : vector<16x8xf32>
    %88 = tpu.matmul %87, %78, %cst_77 {dimension_numbers = #tpu.dot_dimension_numbers<[1], [0], [0], [1], [0, 0, 1, 1], [], []>} : vector<16x48xbf16>, vector<48x8xbf16>, vector<16x8xf32> -> vector<16x8xf32>
    %89 = arith.addf %85, %88 : vector<16x8xf32>
    %90 = vector.extract_strided_slice %51 {offsets = [2, 0, 0], sizes = [1, 16, 48], strides = [1, 1, 1]} : vector<3x16x48xbf16> to vector<1x16x48xbf16>
    %91 = vector.shape_cast %90 : vector<1x16x48xbf16> to vector<16x48xbf16>
    %cst_78 = arith.constant dense<0.000000e+00> : vector<16x8xf32>
    %92 = tpu.matmul %91, %82, %cst_78 {dimension_numbers = #tpu.dot_dimension_numbers<[1], [0], [0], [1], [0, 0, 1, 1], [], []>} : vector<16x48xbf16>, vector<48x8xbf16>, vector<16x8xf32> -> vector<16x8xf32>
    %93 = arith.addf %89, %92 : vector<16x8xf32>
    %94 = vector.broadcast %52 : vector<16x1xf32> to vector<16x8xf32>
    %95 = arith.mulf %93, %94 : vector<16x8xf32>
    %96 = vector.broadcast %53 : vector<16x1xf32> to vector<16x8xf32>
    %97 = arith.addf %95, %96 : vector<16x8xf32>
    %cst_79 = arith.constant 0.000000e+00 : f32
    %98 = vector.broadcast %cst_79 : f32 to vector<16x8xf32>
    %99 = arith.cmpf ogt, %97, %98 : vector<16x8xf32>
    %cst_80 = arith.constant 2.000000e-01 : f32
    %100 = vector.broadcast %cst_80 : f32 to vector<16x8xf32>
    %101 = arith.mulf %100, %97 : vector<16x8xf32>
    %102 = arith.select %99, %97, %101 : vector<16x8xi1>, vector<16x8xf32>
    %103 = arith.truncf %102 : vector<16x8xf32> to vector<16x8xbf16>
    %cst_81 = arith.constant dense<0.000000e+00> : vector<16x8xf32>
    %104 = tpu.matmul %103, %8, %cst_81 {dimension_numbers = #tpu.dot_dimension_numbers<[1], [0], [0], [1], [0, 0, 1, 1], [], []>} : vector<16x8xbf16>, vector<8x8xbf16>, vector<16x8xf32> -> vector<16x8xf32>
    %105 = arith.truncf %104 : vector<16x8xf32> to vector<16x8xbf16>
    %cst_82 = arith.constant dense<0.000000e+00> : vector<16x8xf32>
    %106 = tpu.matmul %103, %15, %cst_82 {dimension_numbers = #tpu.dot_dimension_numbers<[1], [0], [0], [1], [0, 0, 1, 1], [], []>} : vector<16x8xbf16>, vector<8x8xbf16>, vector<16x8xf32> -> vector<16x8xf32>
    %107 = arith.truncf %106 : vector<16x8xf32> to vector<16x8xbf16>
    %108 = vector.extract_strided_slice %54 {offsets = [0, 0, 0], sizes = [1, 16, 16], strides = [1, 1, 1]} : vector<3x16x16xbf16> to vector<1x16x16xbf16>
    %109 = vector.shape_cast %108 : vector<1x16x16xbf16> to vector<16x16xbf16>
    %cst_83 = arith.constant dense<0.000000e+00> : vector<16x8xf32>
    %110 = tpu.matmul %109, %105, %cst_83 {dimension_numbers = #tpu.dot_dimension_numbers<[1], [0], [0], [1], [0, 0, 1, 1], [], []>} : vector<16x16xbf16>, vector<16x8xbf16>, vector<16x8xf32> -> vector<16x8xf32>
    %111 = vector.extract_strided_slice %54 {offsets = [1, 0, 0], sizes = [1, 16, 16], strides = [1, 1, 1]} : vector<3x16x16xbf16> to vector<1x16x16xbf16>
    %112 = vector.shape_cast %111 : vector<1x16x16xbf16> to vector<16x16xbf16>
    %cst_84 = arith.constant dense<0.000000e+00> : vector<16x8xf32>
    %113 = tpu.matmul %112, %103, %cst_84 {dimension_numbers = #tpu.dot_dimension_numbers<[1], [0], [0], [1], [0, 0, 1, 1], [], []>} : vector<16x16xbf16>, vector<16x8xbf16>, vector<16x8xf32> -> vector<16x8xf32>
    %114 = arith.addf %110, %113 : vector<16x8xf32>
    %115 = vector.extract_strided_slice %54 {offsets = [2, 0, 0], sizes = [1, 16, 16], strides = [1, 1, 1]} : vector<3x16x16xbf16> to vector<1x16x16xbf16>
    %116 = vector.shape_cast %115 : vector<1x16x16xbf16> to vector<16x16xbf16>
    %cst_85 = arith.constant dense<0.000000e+00> : vector<16x8xf32>
    %117 = tpu.matmul %116, %107, %cst_85 {dimension_numbers = #tpu.dot_dimension_numbers<[1], [0], [0], [1], [0, 0, 1, 1], [], []>} : vector<16x16xbf16>, vector<16x8xbf16>, vector<16x8xf32> -> vector<16x8xf32>
    %118 = arith.addf %114, %117 : vector<16x8xf32>
    %119 = vector.broadcast %55 : vector<16x1xf32> to vector<16x8xf32>
    %120 = arith.mulf %118, %119 : vector<16x8xf32>
    %121 = vector.broadcast %56 : vector<16x1xf32> to vector<16x8xf32>
    %122 = arith.addf %120, %121 : vector<16x8xf32>
    %cst_86 = arith.constant 0.000000e+00 : f32
    %123 = vector.broadcast %cst_86 : f32 to vector<16x8xf32>
    %124 = arith.cmpf ogt, %122, %123 : vector<16x8xf32>
    %cst_87 = arith.constant 2.000000e-01 : f32
    %125 = vector.broadcast %cst_87 : f32 to vector<16x8xf32>
    %126 = arith.mulf %125, %122 : vector<16x8xf32>
    %127 = arith.select %124, %122, %126 : vector<16x8xi1>, vector<16x8xf32>
    %128 = arith.truncf %127 : vector<16x8xf32> to vector<16x8xbf16>
    %cst_88 = arith.constant dense<0.000000e+00> : vector<16x16xf32>
    %129 = tpu.matmul %128, %49, %cst_88 {dimension_numbers = #tpu.dot_dimension_numbers<[1], [0], [0], [1], [0, 0, 1, 1], [], []>} : vector<16x8xbf16>, vector<8x16xbf16>, vector<16x16xf32> -> vector<16x16xf32>
    %c0_89 = arith.constant 0 : index
    %c0_90 = arith.constant 0 : index
    %c0_91 = arith.constant 0 : index
    %130 = vector.load %arg3[%c0_89, %c0_90, %c0_91] : memref<2x8x16xf32, #tpu.memory_space<vmem>>, vector<1x8x16xf32>
    %131 = vector.shape_cast %130 : vector<1x8x16xf32> to vector<8x16xf32>
    %132 = tpu.concatenate %129, %131 in 0 : vector<16x16xf32>, vector<8x16xf32> -> vector<24x16xf32>
    %133 = arith.truncf %132 : vector<24x16xf32> to vector<24x16xbf16>
    %cst_92 = arith.constant dense<0.000000e+00> : vector<24x16xf32>
    %134 = tpu.matmul %133, %24, %cst_92 {dimension_numbers = #tpu.dot_dimension_numbers<[1], [0], [0], [1], [0, 0, 1, 1], [], []>} : vector<24x16xbf16>, vector<16x16xbf16>, vector<24x16xf32> -> vector<24x16xf32>
    %135 = arith.truncf %134 : vector<24x16xf32> to vector<24x16xbf16>
    %cst_93 = arith.constant dense<0.000000e+00> : vector<24x16xf32>
    %136 = tpu.matmul %133, %31, %cst_93 {dimension_numbers = #tpu.dot_dimension_numbers<[1], [0], [0], [1], [0, 0, 1, 1], [], []>} : vector<24x16xbf16>, vector<16x16xbf16>, vector<24x16xf32> -> vector<24x16xf32>
    %137 = arith.truncf %136 : vector<24x16xf32> to vector<24x16xbf16>
    %138 = vector.extract_strided_slice %57 {offsets = [0, 0, 0], sizes = [1, 8, 24], strides = [1, 1, 1]} : vector<3x8x24xbf16> to vector<1x8x24xbf16>
    %139 = vector.shape_cast %138 : vector<1x8x24xbf16> to vector<8x24xbf16>
    %cst_94 = arith.constant dense<0.000000e+00> : vector<8x16xf32>
    %140 = tpu.matmul %139, %135, %cst_94 {dimension_numbers = #tpu.dot_dimension_numbers<[1], [0], [0], [1], [0, 0, 1, 1], [], []>} : vector<8x24xbf16>, vector<24x16xbf16>, vector<8x16xf32> -> vector<8x16xf32>
    %141 = vector.extract_strided_slice %57 {offsets = [1, 0, 0], sizes = [1, 8, 24], strides = [1, 1, 1]} : vector<3x8x24xbf16> to vector<1x8x24xbf16>
    %142 = vector.shape_cast %141 : vector<1x8x24xbf16> to vector<8x24xbf16>
    %cst_95 = arith.constant dense<0.000000e+00> : vector<8x16xf32>
    %143 = tpu.matmul %142, %133, %cst_95 {dimension_numbers = #tpu.dot_dimension_numbers<[1], [0], [0], [1], [0, 0, 1, 1], [], []>} : vector<8x24xbf16>, vector<24x16xbf16>, vector<8x16xf32> -> vector<8x16xf32>
    %144 = arith.addf %140, %143 : vector<8x16xf32>
    %145 = vector.extract_strided_slice %57 {offsets = [2, 0, 0], sizes = [1, 8, 24], strides = [1, 1, 1]} : vector<3x8x24xbf16> to vector<1x8x24xbf16>
    %146 = vector.shape_cast %145 : vector<1x8x24xbf16> to vector<8x24xbf16>
    %cst_96 = arith.constant dense<0.000000e+00> : vector<8x16xf32>
    %147 = tpu.matmul %146, %137, %cst_96 {dimension_numbers = #tpu.dot_dimension_numbers<[1], [0], [0], [1], [0, 0, 1, 1], [], []>} : vector<8x24xbf16>, vector<24x16xbf16>, vector<8x16xf32> -> vector<8x16xf32>
    %148 = arith.addf %144, %147 : vector<8x16xf32>
    %149 = vector.broadcast %58 : vector<8x1xf32> to vector<8x16xf32>
    %150 = arith.mulf %148, %149 : vector<8x16xf32>
    %151 = vector.broadcast %59 : vector<8x1xf32> to vector<8x16xf32>
    %152 = arith.addf %150, %151 : vector<8x16xf32>
    %cst_97 = arith.constant 0.000000e+00 : f32
    %153 = vector.broadcast %cst_97 : f32 to vector<8x16xf32>
    %154 = arith.cmpf ogt, %152, %153 : vector<8x16xf32>
    %cst_98 = arith.constant 2.000000e-01 : f32
    %155 = vector.broadcast %cst_98 : f32 to vector<8x16xf32>
    %156 = arith.mulf %155, %152 : vector<8x16xf32>
    %157 = arith.select %154, %152, %156 : vector<8x16xi1>, vector<8x16xf32>
    %158 = arith.truncf %157 : vector<8x16xf32> to vector<8x16xbf16>
    %cst_99 = arith.constant dense<0.000000e+00> : vector<8x16xf32>
    %159 = tpu.matmul %158, %24, %cst_99 {dimension_numbers = #tpu.dot_dimension_numbers<[1], [0], [0], [1], [0, 0, 1, 1], [], []>} : vector<8x16xbf16>, vector<16x16xbf16>, vector<8x16xf32> -> vector<8x16xf32>
    %160 = arith.truncf %159 : vector<8x16xf32> to vector<8x16xbf16>
    %cst_100 = arith.constant dense<0.000000e+00> : vector<8x16xf32>
    %161 = tpu.matmul %158, %31, %cst_100 {dimension_numbers = #tpu.dot_dimension_numbers<[1], [0], [0], [1], [0, 0, 1, 1], [], []>} : vector<8x16xbf16>, vector<16x16xbf16>, vector<8x16xf32> -> vector<8x16xf32>
    %162 = arith.truncf %161 : vector<8x16xf32> to vector<8x16xbf16>
    %163 = vector.extract_strided_slice %60 {offsets = [0, 0, 0], sizes = [1, 8, 8], strides = [1, 1, 1]} : vector<3x8x8xbf16> to vector<1x8x8xbf16>
    %164 = vector.shape_cast %163 : vector<1x8x8xbf16> to vector<8x8xbf16>
    %cst_101 = arith.constant dense<0.000000e+00> : vector<8x16xf32>
    %165 = tpu.matmul %164, %160, %cst_101 {dimension_numbers = #tpu.dot_dimension_numbers<[1], [0], [0], [1], [0, 0, 1, 1], [], []>} : vector<8x8xbf16>, vector<8x16xbf16>, vector<8x16xf32> -> vector<8x16xf32>
    %166 = vector.extract_strided_slice %60 {offsets = [1, 0, 0], sizes = [1, 8, 8], strides = [1, 1, 1]} : vector<3x8x8xbf16> to vector<1x8x8xbf16>
    %167 = vector.shape_cast %166 : vector<1x8x8xbf16> to vector<8x8xbf16>
    %cst_102 = arith.constant dense<0.000000e+00> : vector<8x16xf32>
    %168 = tpu.matmul %167, %158, %cst_102 {dimension_numbers = #tpu.dot_dimension_numbers<[1], [0], [0], [1], [0, 0, 1, 1], [], []>} : vector<8x8xbf16>, vector<8x16xbf16>, vector<8x16xf32> -> vector<8x16xf32>
    %169 = arith.addf %165, %168 : vector<8x16xf32>
    %170 = vector.extract_strided_slice %60 {offsets = [2, 0, 0], sizes = [1, 8, 8], strides = [1, 1, 1]} : vector<3x8x8xbf16> to vector<1x8x8xbf16>
    %171 = vector.shape_cast %170 : vector<1x8x8xbf16> to vector<8x8xbf16>
    %cst_103 = arith.constant dense<0.000000e+00> : vector<8x16xf32>
    %172 = tpu.matmul %171, %162, %cst_103 {dimension_numbers = #tpu.dot_dimension_numbers<[1], [0], [0], [1], [0, 0, 1, 1], [], []>} : vector<8x8xbf16>, vector<8x16xbf16>, vector<8x16xf32> -> vector<8x16xf32>
    %173 = arith.addf %169, %172 : vector<8x16xf32>
    %174 = vector.broadcast %61 : vector<8x1xf32> to vector<8x16xf32>
    %175 = arith.mulf %173, %174 : vector<8x16xf32>
    %176 = vector.broadcast %62 : vector<8x1xf32> to vector<8x16xf32>
    %177 = arith.addf %175, %176 : vector<8x16xf32>
    %cst_104 = arith.constant 0.000000e+00 : f32
    %178 = vector.broadcast %cst_104 : f32 to vector<8x16xf32>
    %179 = arith.cmpf ogt, %177, %178 : vector<8x16xf32>
    %cst_105 = arith.constant 2.000000e-01 : f32
    %180 = vector.broadcast %cst_105 : f32 to vector<8x16xf32>
    %181 = arith.mulf %180, %177 : vector<8x16xf32>
    %182 = arith.select %179, %177, %181 : vector<8x16xi1>, vector<8x16xf32>
    %183 = arith.truncf %182 : vector<8x16xf32> to vector<8x16xbf16>
    %cst_106 = arith.constant dense<0.000000e+00> : vector<8x32xf32>
    %184 = tpu.matmul %183, %50, %cst_106 {dimension_numbers = #tpu.dot_dimension_numbers<[1], [0], [0], [1], [0, 0, 1, 1], [], []>} : vector<8x16xbf16>, vector<16x32xbf16>, vector<8x32xf32> -> vector<8x32xf32>
    %c0_107 = arith.constant 0 : index
    %c0_108 = arith.constant 0 : index
    %c0_109 = arith.constant 0 : index
    %185 = vector.load %arg2[%c0_107, %c0_108, %c0_109] : memref<2x4x32xf32, #tpu.memory_space<vmem>>, vector<1x4x32xf32>
    %186 = vector.shape_cast %185 : vector<1x4x32xf32> to vector<4x32xf32>
    %187 = tpu.concatenate %184, %186 in 0 : vector<8x32xf32>, vector<4x32xf32> -> vector<12x32xf32>
    %188 = arith.truncf %187 : vector<12x32xf32> to vector<12x32xbf16>
    %cst_110 = arith.constant dense<0.000000e+00> : vector<12x32xf32>
    %189 = tpu.matmul %188, %40, %cst_110 {dimension_numbers = #tpu.dot_dimension_numbers<[1], [0], [0], [1], [0, 0, 1, 1], [], []>} : vector<12x32xbf16>, vector<32x32xbf16>, vector<12x32xf32> -> vector<12x32xf32>
    %190 = arith.truncf %189 : vector<12x32xf32> to vector<12x32xbf16>
    %cst_111 = arith.constant dense<0.000000e+00> : vector<12x32xf32>
    %191 = tpu.matmul %188, %47, %cst_111 {dimension_numbers = #tpu.dot_dimension_numbers<[1], [0], [0], [1], [0, 0, 1, 1], [], []>} : vector<12x32xbf16>, vector<32x32xbf16>, vector<12x32xf32> -> vector<12x32xf32>
    %192 = arith.truncf %191 : vector<12x32xf32> to vector<12x32xbf16>
    %193 = vector.extract_strided_slice %63 {offsets = [0, 0, 0], sizes = [1, 4, 12], strides = [1, 1, 1]} : vector<3x4x12xbf16> to vector<1x4x12xbf16>
    %194 = vector.shape_cast %193 : vector<1x4x12xbf16> to vector<4x12xbf16>
    %cst_112 = arith.constant dense<0.000000e+00> : vector<4x32xf32>
    %195 = tpu.matmul %194, %190, %cst_112 {dimension_numbers = #tpu.dot_dimension_numbers<[1], [0], [0], [1], [0, 0, 1, 1], [], []>} : vector<4x12xbf16>, vector<12x32xbf16>, vector<4x32xf32> -> vector<4x32xf32>
    %196 = vector.extract_strided_slice %63 {offsets = [1, 0, 0], sizes = [1, 4, 12], strides = [1, 1, 1]} : vector<3x4x12xbf16> to vector<1x4x12xbf16>
    %197 = vector.shape_cast %196 : vector<1x4x12xbf16> to vector<4x12xbf16>
    %cst_113 = arith.constant dense<0.000000e+00> : vector<4x32xf32>
    %198 = tpu.matmul %197, %188, %cst_113 {dimension_numbers = #tpu.dot_dimension_numbers<[1], [0], [0], [1], [0, 0, 1, 1], [], []>} : vector<4x12xbf16>, vector<12x32xbf16>, vector<4x32xf32> -> vector<4x32xf32>
    %199 = arith.addf %195, %198 : vector<4x32xf32>
    %200 = vector.extract_strided_slice %63 {offsets = [2, 0, 0], sizes = [1, 4, 12], strides = [1, 1, 1]} : vector<3x4x12xbf16> to vector<1x4x12xbf16>
    %201 = vector.shape_cast %200 : vector<1x4x12xbf16> to vector<4x12xbf16>
    %cst_114 = arith.constant dense<0.000000e+00> : vector<4x32xf32>
    %202 = tpu.matmul %201, %192, %cst_114 {dimension_numbers = #tpu.dot_dimension_numbers<[1], [0], [0], [1], [0, 0, 1, 1], [], []>} : vector<4x12xbf16>, vector<12x32xbf16>, vector<4x32xf32> -> vector<4x32xf32>
    %203 = arith.addf %199, %202 : vector<4x32xf32>
    %204 = vector.broadcast %64 : vector<4x1xf32> to vector<4x32xf32>
    %205 = arith.mulf %203, %204 : vector<4x32xf32>
    %206 = vector.broadcast %65 : vector<4x1xf32> to vector<4x32xf32>
    %207 = arith.addf %205, %206 : vector<4x32xf32>
    %cst_115 = arith.constant 0.000000e+00 : f32
    %208 = vector.broadcast %cst_115 : f32 to vector<4x32xf32>
    %209 = arith.cmpf ogt, %207, %208 : vector<4x32xf32>
    %cst_116 = arith.constant 2.000000e-01 : f32
    %210 = vector.broadcast %cst_116 : f32 to vector<4x32xf32>
    %211 = arith.mulf %210, %207 : vector<4x32xf32>
    %212 = arith.select %209, %207, %211 : vector<4x32xi1>, vector<4x32xf32>
    %213 = arith.truncf %212 : vector<4x32xf32> to vector<4x32xbf16>
    %cst_117 = arith.constant dense<0.000000e+00> : vector<4x32xf32>
    %214 = tpu.matmul %213, %40, %cst_117 {dimension_numbers = #tpu.dot_dimension_numbers<[1], [0], [0], [1], [0, 0, 1, 1], [], []>} : vector<4x32xbf16>, vector<32x32xbf16>, vector<4x32xf32> -> vector<4x32xf32>
    %215 = arith.truncf %214 : vector<4x32xf32> to vector<4x32xbf16>
    %cst_118 = arith.constant dense<0.000000e+00> : vector<4x32xf32>
    %216 = tpu.matmul %213, %47, %cst_118 {dimension_numbers = #tpu.dot_dimension_numbers<[1], [0], [0], [1], [0, 0, 1, 1], [], []>} : vector<4x32xbf16>, vector<32x32xbf16>, vector<4x32xf32> -> vector<4x32xf32>
    %217 = arith.truncf %216 : vector<4x32xf32> to vector<4x32xbf16>
    %218 = vector.extract_strided_slice %66 {offsets = [0, 0, 0], sizes = [1, 4, 4], strides = [1, 1, 1]} : vector<3x4x4xbf16> to vector<1x4x4xbf16>
    %219 = vector.shape_cast %218 : vector<1x4x4xbf16> to vector<4x4xbf16>
    %cst_119 = arith.constant dense<0.000000e+00> : vector<4x32xf32>
    %220 = tpu.matmul %219, %215, %cst_119 {dimension_numbers = #tpu.dot_dimension_numbers<[1], [0], [0], [1], [0, 0, 1, 1], [], []>} : vector<4x4xbf16>, vector<4x32xbf16>, vector<4x32xf32> -> vector<4x32xf32>
    %221 = vector.extract_strided_slice %66 {offsets = [1, 0, 0], sizes = [1, 4, 4], strides = [1, 1, 1]} : vector<3x4x4xbf16> to vector<1x4x4xbf16>
    %222 = vector.shape_cast %221 : vector<1x4x4xbf16> to vector<4x4xbf16>
    %cst_120 = arith.constant dense<0.000000e+00> : vector<4x32xf32>
    %223 = tpu.matmul %222, %213, %cst_120 {dimension_numbers = #tpu.dot_dimension_numbers<[1], [0], [0], [1], [0, 0, 1, 1], [], []>} : vector<4x4xbf16>, vector<4x32xbf16>, vector<4x32xf32> -> vector<4x32xf32>
    %224 = arith.addf %220, %223 : vector<4x32xf32>
    %225 = vector.extract_strided_slice %66 {offsets = [2, 0, 0], sizes = [1, 4, 4], strides = [1, 1, 1]} : vector<3x4x4xbf16> to vector<1x4x4xbf16>
    %226 = vector.shape_cast %225 : vector<1x4x4xbf16> to vector<4x4xbf16>
    %cst_121 = arith.constant dense<0.000000e+00> : vector<4x32xf32>
    %227 = tpu.matmul %226, %217, %cst_121 {dimension_numbers = #tpu.dot_dimension_numbers<[1], [0], [0], [1], [0, 0, 1, 1], [], []>} : vector<4x4xbf16>, vector<4x32xbf16>, vector<4x32xf32> -> vector<4x32xf32>
    %228 = arith.addf %224, %227 : vector<4x32xf32>
    %229 = vector.broadcast %67 : vector<4x1xf32> to vector<4x32xf32>
    %230 = arith.mulf %228, %229 : vector<4x32xf32>
    %231 = vector.broadcast %68 : vector<4x1xf32> to vector<4x32xf32>
    %232 = arith.addf %230, %231 : vector<4x32xf32>
    %cst_122 = arith.constant 0.000000e+00 : f32
    %233 = vector.broadcast %cst_122 : f32 to vector<4x32xf32>
    %234 = arith.cmpf ogt, %232, %233 : vector<4x32xf32>
    %cst_123 = arith.constant 2.000000e-01 : f32
    %235 = vector.broadcast %cst_123 : f32 to vector<4x32xf32>
    %236 = arith.mulf %235, %232 : vector<4x32xf32>
    %237 = arith.select %234, %232, %236 : vector<4x32xi1>, vector<4x32xf32>
    %238 = arith.truncf %237 : vector<4x32xf32> to vector<4x32xbf16>
    %cst_124 = arith.constant dense<0.000000e+00> : vector<16x32xf32>
    %239 = tpu.matmul %69, %238, %cst_124 {dimension_numbers = #tpu.dot_dimension_numbers<[1], [0], [0], [1], [0, 0, 1, 1], [], []>} : vector<16x4xbf16>, vector<4x32xbf16>, vector<16x32xf32> -> vector<16x32xf32>
    %240 = vector.broadcast %70 : vector<16x1xf32> to vector<16x32xf32>
    %241 = arith.addf %239, %240 : vector<16x32xf32>
    %c0_125 = arith.constant 0 : index
    %c0_126 = arith.constant 0 : index
    %c0_127 = arith.constant 0 : index
    %242 = vector.load %arg28[%c0_125, %c0_126, %c0_127] : memref<2x16x32xf32, #tpu.memory_space<vmem>>, vector<1x16x32xf32>
    %243 = vector.shape_cast %242 : vector<1x16x32xf32> to vector<16x32xf32>
    %244 = vector.shape_cast %241 : vector<16x32xf32> to vector<1x16x32xf32>
    tpu.vector_store %arg28[%c0_125, %c0_126, %c0_127], %244 {strides = array<i32>} : memref<2x16x32xf32, #tpu.memory_space<vmem>>, vector<1x16x32xf32>,
    %c1 = arith.constant 1 : index
    %c0_128 = arith.constant 0 : index
    %c0_129 = arith.constant 0 : index
    %245 = vector.load %arg1[%c1, %c0_128, %c0_129] : memref<2x32x4xf32, #tpu.memory_space<vmem>>, vector<1x32x4xf32>
    %246 = vector.shape_cast %245 : vector<1x32x4xf32> to vector<32x4xf32>
    %247 = arith.truncf %246 : vector<32x4xf32> to vector<32x4xbf16>
    %cst_130 = arith.constant dense<0.000000e+00> : vector<32x8xf32>
    %248 = tpu.matmul %247, %48, %cst_130 {dimension_numbers = #tpu.dot_dimension_numbers<[1], [0], [0], [1], [0, 0, 1, 1], [], []>} : vector<32x4xbf16>, vector<4x8xbf16>, vector<32x8xf32> -> vector<32x8xf32>
    %c1_131 = arith.constant 1 : index
    %c0_132 = arith.constant 0 : index
    %c0_133 = arith.constant 0 : index
    %249 = vector.load %arg4[%c1_131, %c0_132, %c0_133] : memref<2x16x8xf32, #tpu.memory_space<vmem>>, vector<1x16x8xf32>
    %250 = vector.shape_cast %249 : vector<1x16x8xf32> to vector<16x8xf32>
    %251 = tpu.concatenate %248, %250 in 0 : vector<32x8xf32>, vector<16x8xf32> -> vector<48x8xf32>
    %252 = arith.truncf %251 : vector<48x8xf32> to vector<48x8xbf16>
    %cst_134 = arith.constant dense<0.000000e+00> : vector<48x8xf32>
    %253 = tpu.matmul %252, %8, %cst_134 {dimension_numbers = #tpu.dot_dimension_numbers<[1], [0], [0], [1], [0, 0, 1, 1], [], []>} : vector<48x8xbf16>, vector<8x8xbf16>, vector<48x8xf32> -> vector<48x8xf32>
    %254 = arith.truncf %253 : vector<48x8xf32> to vector<48x8xbf16>
    %cst_135 = arith.constant dense<0.000000e+00> : vector<48x8xf32>
    %255 = tpu.matmul %252, %15, %cst_135 {dimension_numbers = #tpu.dot_dimension_numbers<[1], [0], [0], [1], [0, 0, 1, 1], [], []>} : vector<48x8xbf16>, vector<8x8xbf16>, vector<48x8xf32> -> vector<48x8xf32>
    %256 = arith.truncf %255 : vector<48x8xf32> to vector<48x8xbf16>
    %257 = vector.extract_strided_slice %51 {offsets = [0, 0, 0], sizes = [1, 16, 48], strides = [1, 1, 1]} : vector<3x16x48xbf16> to vector<1x16x48xbf16>
    %258 = vector.shape_cast %257 : vector<1x16x48xbf16> to vector<16x48xbf16>
    %cst_136 = arith.constant dense<0.000000e+00> : vector<16x8xf32>
    %259 = tpu.matmul %258, %254, %cst_136 {dimension_numbers = #tpu.dot_dimension_numbers<[1], [0], [0], [1], [0, 0, 1, 1], [], []>} : vector<16x48xbf16>, vector<48x8xbf16>, vector<16x8xf32> -> vector<16x8xf32>
    %260 = vector.extract_strided_slice %51 {offsets = [1, 0, 0], sizes = [1, 16, 48], strides = [1, 1, 1]} : vector<3x16x48xbf16> to vector<1x16x48xbf16>
    %261 = vector.shape_cast %260 : vector<1x16x48xbf16> to vector<16x48xbf16>
    %cst_137 = arith.constant dense<0.000000e+00> : vector<16x8xf32>
    %262 = tpu.matmul %261, %252, %cst_137 {dimension_numbers = #tpu.dot_dimension_numbers<[1], [0], [0], [1], [0, 0, 1, 1], [], []>} : vector<16x48xbf16>, vector<48x8xbf16>, vector<16x8xf32> -> vector<16x8xf32>
    %263 = arith.addf %259, %262 : vector<16x8xf32>
    %264 = vector.extract_strided_slice %51 {offsets = [2, 0, 0], sizes = [1, 16, 48], strides = [1, 1, 1]} : vector<3x16x48xbf16> to vector<1x16x48xbf16>
    %265 = vector.shape_cast %264 : vector<1x16x48xbf16> to vector<16x48xbf16>
    %cst_138 = arith.constant dense<0.000000e+00> : vector<16x8xf32>
    %266 = tpu.matmul %265, %256, %cst_138 {dimension_numbers = #tpu.dot_dimension_numbers<[1], [0], [0], [1], [0, 0, 1, 1], [], []>} : vector<16x48xbf16>, vector<48x8xbf16>, vector<16x8xf32> -> vector<16x8xf32>
    %267 = arith.addf %263, %266 : vector<16x8xf32>
    %268 = vector.broadcast %52 : vector<16x1xf32> to vector<16x8xf32>
    %269 = arith.mulf %267, %268 : vector<16x8xf32>
    %270 = vector.broadcast %53 : vector<16x1xf32> to vector<16x8xf32>
    %271 = arith.addf %269, %270 : vector<16x8xf32>
    %cst_139 = arith.constant 0.000000e+00 : f32
    %272 = vector.broadcast %cst_139 : f32 to vector<16x8xf32>
    %273 = arith.cmpf ogt, %271, %272 : vector<16x8xf32>
    %cst_140 = arith.constant 2.000000e-01 : f32
    %274 = vector.broadcast %cst_140 : f32 to vector<16x8xf32>
    %275 = arith.mulf %274, %271 : vector<16x8xf32>
    %276 = arith.select %273, %271, %275 : vector<16x8xi1>, vector<16x8xf32>
    %277 = arith.truncf %276 : vector<16x8xf32> to vector<16x8xbf16>
    %cst_141 = arith.constant dense<0.000000e+00> : vector<16x8xf32>
    %278 = tpu.matmul %277, %8, %cst_141 {dimension_numbers = #tpu.dot_dimension_numbers<[1], [0], [0], [1], [0, 0, 1, 1], [], []>} : vector<16x8xbf16>, vector<8x8xbf16>, vector<16x8xf32> -> vector<16x8xf32>
    %279 = arith.truncf %278 : vector<16x8xf32> to vector<16x8xbf16>
    %cst_142 = arith.constant dense<0.000000e+00> : vector<16x8xf32>
    %280 = tpu.matmul %277, %15, %cst_142 {dimension_numbers = #tpu.dot_dimension_numbers<[1], [0], [0], [1], [0, 0, 1, 1], [], []>} : vector<16x8xbf16>, vector<8x8xbf16>, vector<16x8xf32> -> vector<16x8xf32>
    %281 = arith.truncf %280 : vector<16x8xf32> to vector<16x8xbf16>
    %282 = vector.extract_strided_slice %54 {offsets = [0, 0, 0], sizes = [1, 16, 16], strides = [1, 1, 1]} : vector<3x16x16xbf16> to vector<1x16x16xbf16>
    %283 = vector.shape_cast %282 : vector<1x16x16xbf16> to vector<16x16xbf16>
    %cst_143 = arith.constant dense<0.000000e+00> : vector<16x8xf32>
    %284 = tpu.matmul %283, %279, %cst_143 {dimension_numbers = #tpu.dot_dimension_numbers<[1], [0], [0], [1], [0, 0, 1, 1], [], []>} : vector<16x16xbf16>, vector<16x8xbf16>, vector<16x8xf32> -> vector<16x8xf32>
    %285 = vector.extract_strided_slice %54 {offsets = [1, 0, 0], sizes = [1, 16, 16], strides = [1, 1, 1]} : vector<3x16x16xbf16> to vector<1x16x16xbf16>
    %286 = vector.shape_cast %285 : vector<1x16x16xbf16> to vector<16x16xbf16>
    %cst_144 = arith.constant dense<0.000000e+00> : vector<16x8xf32>
    %287 = tpu.matmul %286, %277, %cst_144 {dimension_numbers = #tpu.dot_dimension_numbers<[1], [0], [0], [1], [0, 0, 1, 1], [], []>} : vector<16x16xbf16>, vector<16x8xbf16>, vector<16x8xf32> -> vector<16x8xf32>
    %288 = arith.addf %284, %287 : vector<16x8xf32>
    %289 = vector.extract_strided_slice %54 {offsets = [2, 0, 0], sizes = [1, 16, 16], strides = [1, 1, 1]} : vector<3x16x16xbf16> to vector<1x16x16xbf16>
    %290 = vector.shape_cast %289 : vector<1x16x16xbf16> to vector<16x16xbf16>
    %cst_145 = arith.constant dense<0.000000e+00> : vector<16x8xf32>
    %291 = tpu.matmul %290, %281, %cst_145 {dimension_numbers = #tpu.dot_dimension_numbers<[1], [0], [0], [1], [0, 0, 1, 1], [], []>} : vector<16x16xbf16>, vector<16x8xbf16>, vector<16x8xf32> -> vector<16x8xf32>
    %292 = arith.addf %288, %291 : vector<16x8xf32>
    %293 = vector.broadcast %55 : vector<16x1xf32> to vector<16x8xf32>
    %294 = arith.mulf %292, %293 : vector<16x8xf32>
    %295 = vector.broadcast %56 : vector<16x1xf32> to vector<16x8xf32>
    %296 = arith.addf %294, %295 : vector<16x8xf32>
    %cst_146 = arith.constant 0.000000e+00 : f32
    %297 = vector.broadcast %cst_146 : f32 to vector<16x8xf32>
    %298 = arith.cmpf ogt, %296, %297 : vector<16x8xf32>
    %cst_147 = arith.constant 2.000000e-01 : f32
    %299 = vector.broadcast %cst_147 : f32 to vector<16x8xf32>
    %300 = arith.mulf %299, %296 : vector<16x8xf32>
    %301 = arith.select %298, %296, %300 : vector<16x8xi1>, vector<16x8xf32>
    %302 = arith.truncf %301 : vector<16x8xf32> to vector<16x8xbf16>
    %cst_148 = arith.constant dense<0.000000e+00> : vector<16x16xf32>
    %303 = tpu.matmul %302, %49, %cst_148 {dimension_numbers = #tpu.dot_dimension_numbers<[1], [0], [0], [1], [0, 0, 1, 1], [], []>} : vector<16x8xbf16>, vector<8x16xbf16>, vector<16x16xf32> -> vector<16x16xf32>
    %c1_149 = arith.constant 1 : index
    %c0_150 = arith.constant 0 : index
    %c0_151 = arith.constant 0 : index
    %304 = vector.load %arg3[%c1_149, %c0_150, %c0_151] : memref<2x8x16xf32, #tpu.memory_space<vmem>>, vector<1x8x16xf32>
    %305 = vector.shape_cast %304 : vector<1x8x16xf32> to vector<8x16xf32>
    %306 = tpu.concatenate %303, %305 in 0 : vector<16x16xf32>, vector<8x16xf32> -> vector<24x16xf32>
    %307 = arith.truncf %306 : vector<24x16xf32> to vector<24x16xbf16>
    %cst_152 = arith.constant dense<0.000000e+00> : vector<24x16xf32>
    %308 = tpu.matmul %307, %24, %cst_152 {dimension_numbers = #tpu.dot_dimension_numbers<[1], [0], [0], [1], [0, 0, 1, 1], [], []>} : vector<24x16xbf16>, vector<16x16xbf16>, vector<24x16xf32> -> vector<24x16xf32>
    %309 = arith.truncf %308 : vector<24x16xf32> to vector<24x16xbf16>
    %cst_153 = arith.constant dense<0.000000e+00> : vector<24x16xf32>
    %310 = tpu.matmul %307, %31, %cst_153 {dimension_numbers = #tpu.dot_dimension_numbers<[1], [0], [0], [1], [0, 0, 1, 1], [], []>} : vector<24x16xbf16>, vector<16x16xbf16>, vector<24x16xf32> -> vector<24x16xf32>
    %311 = arith.truncf %310 : vector<24x16xf32> to vector<24x16xbf16>
    %312 = vector.extract_strided_slice %57 {offsets = [0, 0, 0], sizes = [1, 8, 24], strides = [1, 1, 1]} : vector<3x8x24xbf16> to vector<1x8x24xbf16>
    %313 = vector.shape_cast %312 : vector<1x8x24xbf16> to vector<8x24xbf16>
    %cst_154 = arith.constant dense<0.000000e+00> : vector<8x16xf32>
    %314 = tpu.matmul %313, %309, %cst_154 {dimension_numbers = #tpu.dot_dimension_numbers<[1], [0], [0], [1], [0, 0, 1, 1], [], []>} : vector<8x24xbf16>, vector<24x16xbf16>, vector<8x16xf32> -> vector<8x16xf32>
    %315 = vector.extract_strided_slice %57 {offsets = [1, 0, 0], sizes = [1, 8, 24], strides = [1, 1, 1]} : vector<3x8x24xbf16> to vector<1x8x24xbf16>
    %316 = vector.shape_cast %315 : vector<1x8x24xbf16> to vector<8x24xbf16>
    %cst_155 = arith.constant dense<0.000000e+00> : vector<8x16xf32>
    %317 = tpu.matmul %316, %307, %cst_155 {dimension_numbers = #tpu.dot_dimension_numbers<[1], [0], [0], [1], [0, 0, 1, 1], [], []>} : vector<8x24xbf16>, vector<24x16xbf16>, vector<8x16xf32> -> vector<8x16xf32>
    %318 = arith.addf %314, %317 : vector<8x16xf32>
    %319 = vector.extract_strided_slice %57 {offsets = [2, 0, 0], sizes = [1, 8, 24], strides = [1, 1, 1]} : vector<3x8x24xbf16> to vector<1x8x24xbf16>
    %320 = vector.shape_cast %319 : vector<1x8x24xbf16> to vector<8x24xbf16>
    %cst_156 = arith.constant dense<0.000000e+00> : vector<8x16xf32>
    %321 = tpu.matmul %320, %311, %cst_156 {dimension_numbers = #tpu.dot_dimension_numbers<[1], [0], [0], [1], [0, 0, 1, 1], [], []>} : vector<8x24xbf16>, vector<24x16xbf16>, vector<8x16xf32> -> vector<8x16xf32>
    %322 = arith.addf %318, %321 : vector<8x16xf32>
    %323 = vector.broadcast %58 : vector<8x1xf32> to vector<8x16xf32>
    %324 = arith.mulf %322, %323 : vector<8x16xf32>
    %325 = vector.broadcast %59 : vector<8x1xf32> to vector<8x16xf32>
    %326 = arith.addf %324, %325 : vector<8x16xf32>
    %cst_157 = arith.constant 0.000000e+00 : f32
    %327 = vector.broadcast %cst_157 : f32 to vector<8x16xf32>
    %328 = arith.cmpf ogt, %326, %327 : vector<8x16xf32>
    %cst_158 = arith.constant 2.000000e-01 : f32
    %329 = vector.broadcast %cst_158 : f32 to vector<8x16xf32>
    %330 = arith.mulf %329, %326 : vector<8x16xf32>
    %331 = arith.select %328, %326, %330 : vector<8x16xi1>, vector<8x16xf32>
    %332 = arith.truncf %331 : vector<8x16xf32> to vector<8x16xbf16>
    %cst_159 = arith.constant dense<0.000000e+00> : vector<8x16xf32>
    %333 = tpu.matmul %332, %24, %cst_159 {dimension_numbers = #tpu.dot_dimension_numbers<[1], [0], [0], [1], [0, 0, 1, 1], [], []>} : vector<8x16xbf16>, vector<16x16xbf16>, vector<8x16xf32> -> vector<8x16xf32>
    %334 = arith.truncf %333 : vector<8x16xf32> to vector<8x16xbf16>
    %cst_160 = arith.constant dense<0.000000e+00> : vector<8x16xf32>
    %335 = tpu.matmul %332, %31, %cst_160 {dimension_numbers = #tpu.dot_dimension_numbers<[1], [0], [0], [1], [0, 0, 1, 1], [], []>} : vector<8x16xbf16>, vector<16x16xbf16>, vector<8x16xf32> -> vector<8x16xf32>
    %336 = arith.truncf %335 : vector<8x16xf32> to vector<8x16xbf16>
    %337 = vector.extract_strided_slice %60 {offsets = [0, 0, 0], sizes = [1, 8, 8], strides = [1, 1, 1]} : vector<3x8x8xbf16> to vector<1x8x8xbf16>
    %338 = vector.shape_cast %337 : vector<1x8x8xbf16> to vector<8x8xbf16>
    %cst_161 = arith.constant dense<0.000000e+00> : vector<8x16xf32>
    %339 = tpu.matmul %338, %334, %cst_161 {dimension_numbers = #tpu.dot_dimension_numbers<[1], [0], [0], [1], [0, 0, 1, 1], [], []>} : vector<8x8xbf16>, vector<8x16xbf16>, vector<8x16xf32> -> vector<8x16xf32>
    %340 = vector.extract_strided_slice %60 {offsets = [1, 0, 0], sizes = [1, 8, 8], strides = [1, 1, 1]} : vector<3x8x8xbf16> to vector<1x8x8xbf16>
    %341 = vector.shape_cast %340 : vector<1x8x8xbf16> to vector<8x8xbf16>
    %cst_162 = arith.constant dense<0.000000e+00> : vector<8x16xf32>
    %342 = tpu.matmul %341, %332, %cst_162 {dimension_numbers = #tpu.dot_dimension_numbers<[1], [0], [0], [1], [0, 0, 1, 1], [], []>} : vector<8x8xbf16>, vector<8x16xbf16>, vector<8x16xf32> -> vector<8x16xf32>
    %343 = arith.addf %339, %342 : vector<8x16xf32>
    %344 = vector.extract_strided_slice %60 {offsets = [2, 0, 0], sizes = [1, 8, 8], strides = [1, 1, 1]} : vector<3x8x8xbf16> to vector<1x8x8xbf16>
    %345 = vector.shape_cast %344 : vector<1x8x8xbf16> to vector<8x8xbf16>
    %cst_163 = arith.constant dense<0.000000e+00> : vector<8x16xf32>
    %346 = tpu.matmul %345, %336, %cst_163 {dimension_numbers = #tpu.dot_dimension_numbers<[1], [0], [0], [1], [0, 0, 1, 1], [], []>} : vector<8x8xbf16>, vector<8x16xbf16>, vector<8x16xf32> -> vector<8x16xf32>
    %347 = arith.addf %343, %346 : vector<8x16xf32>
    %348 = vector.broadcast %61 : vector<8x1xf32> to vector<8x16xf32>
    %349 = arith.mulf %347, %348 : vector<8x16xf32>
    %350 = vector.broadcast %62 : vector<8x1xf32> to vector<8x16xf32>
    %351 = arith.addf %349, %350 : vector<8x16xf32>
    %cst_164 = arith.constant 0.000000e+00 : f32
    %352 = vector.broadcast %cst_164 : f32 to vector<8x16xf32>
    %353 = arith.cmpf ogt, %351, %352 : vector<8x16xf32>
    %cst_165 = arith.constant 2.000000e-01 : f32
    %354 = vector.broadcast %cst_165 : f32 to vector<8x16xf32>
    %355 = arith.mulf %354, %351 : vector<8x16xf32>
    %356 = arith.select %353, %351, %355 : vector<8x16xi1>, vector<8x16xf32>
    %357 = arith.truncf %356 : vector<8x16xf32> to vector<8x16xbf16>
    %cst_166 = arith.constant dense<0.000000e+00> : vector<8x32xf32>
    %358 = tpu.matmul %357, %50, %cst_166 {dimension_numbers = #tpu.dot_dimension_numbers<[1], [0], [0], [1], [0, 0, 1, 1], [], []>} : vector<8x16xbf16>, vector<16x32xbf16>, vector<8x32xf32> -> vector<8x32xf32>
    %c1_167 = arith.constant 1 : index
    %c0_168 = arith.constant 0 : index
    %c0_169 = arith.constant 0 : index
    %359 = vector.load %arg2[%c1_167, %c0_168, %c0_169] : memref<2x4x32xf32, #tpu.memory_space<vmem>>, vector<1x4x32xf32>
    %360 = vector.shape_cast %359 : vector<1x4x32xf32> to vector<4x32xf32>
    %361 = tpu.concatenate %358, %360 in 0 : vector<8x32xf32>, vector<4x32xf32> -> vector<12x32xf32>
    %362 = arith.truncf %361 : vector<12x32xf32> to vector<12x32xbf16>
    %cst_170 = arith.constant dense<0.000000e+00> : vector<12x32xf32>
    %363 = tpu.matmul %362, %40, %cst_170 {dimension_numbers = #tpu.dot_dimension_numbers<[1], [0], [0], [1], [0, 0, 1, 1], [], []>} : vector<12x32xbf16>, vector<32x32xbf16>, vector<12x32xf32> -> vector<12x32xf32>
    %364 = arith.truncf %363 : vector<12x32xf32> to vector<12x32xbf16>
    %cst_171 = arith.constant dense<0.000000e+00> : vector<12x32xf32>
    %365 = tpu.matmul %362, %47, %cst_171 {dimension_numbers = #tpu.dot_dimension_numbers<[1], [0], [0], [1], [0, 0, 1, 1], [], []>} : vector<12x32xbf16>, vector<32x32xbf16>, vector<12x32xf32> -> vector<12x32xf32>
    %366 = arith.truncf %365 : vector<12x32xf32> to vector<12x32xbf16>
    %367 = vector.extract_strided_slice %63 {offsets = [0, 0, 0], sizes = [1, 4, 12], strides = [1, 1, 1]} : vector<3x4x12xbf16> to vector<1x4x12xbf16>
    %368 = vector.shape_cast %367 : vector<1x4x12xbf16> to vector<4x12xbf16>
    %cst_172 = arith.constant dense<0.000000e+00> : vector<4x32xf32>
    %369 = tpu.matmul %368, %364, %cst_172 {dimension_numbers = #tpu.dot_dimension_numbers<[1], [0], [0], [1], [0, 0, 1, 1], [], []>} : vector<4x12xbf16>, vector<12x32xbf16>, vector<4x32xf32> -> vector<4x32xf32>
    %370 = vector.extract_strided_slice %63 {offsets = [1, 0, 0], sizes = [1, 4, 12], strides = [1, 1, 1]} : vector<3x4x12xbf16> to vector<1x4x12xbf16>
    %371 = vector.shape_cast %370 : vector<1x4x12xbf16> to vector<4x12xbf16>
    %cst_173 = arith.constant dense<0.000000e+00> : vector<4x32xf32>
    %372 = tpu.matmul %371, %362, %cst_173 {dimension_numbers = #tpu.dot_dimension_numbers<[1], [0], [0], [1], [0, 0, 1, 1], [], []>} : vector<4x12xbf16>, vector<12x32xbf16>, vector<4x32xf32> -> vector<4x32xf32>
    %373 = arith.addf %369, %372 : vector<4x32xf32>
    %374 = vector.extract_strided_slice %63 {offsets = [2, 0, 0], sizes = [1, 4, 12], strides = [1, 1, 1]} : vector<3x4x12xbf16> to vector<1x4x12xbf16>
    %375 = vector.shape_cast %374 : vector<1x4x12xbf16> to vector<4x12xbf16>
    %cst_174 = arith.constant dense<0.000000e+00> : vector<4x32xf32>
    %376 = tpu.matmul %375, %366, %cst_174 {dimension_numbers = #tpu.dot_dimension_numbers<[1], [0], [0], [1], [0, 0, 1, 1], [], []>} : vector<4x12xbf16>, vector<12x32xbf16>, vector<4x32xf32> -> vector<4x32xf32>
    %377 = arith.addf %373, %376 : vector<4x32xf32>
    %378 = vector.broadcast %64 : vector<4x1xf32> to vector<4x32xf32>
    %379 = arith.mulf %377, %378 : vector<4x32xf32>
    %380 = vector.broadcast %65 : vector<4x1xf32> to vector<4x32xf32>
    %381 = arith.addf %379, %380 : vector<4x32xf32>
    %cst_175 = arith.constant 0.000000e+00 : f32
    %382 = vector.broadcast %cst_175 : f32 to vector<4x32xf32>
    %383 = arith.cmpf ogt, %381, %382 : vector<4x32xf32>
    %cst_176 = arith.constant 2.000000e-01 : f32
    %384 = vector.broadcast %cst_176 : f32 to vector<4x32xf32>
    %385 = arith.mulf %384, %381 : vector<4x32xf32>
    %386 = arith.select %383, %381, %385 : vector<4x32xi1>, vector<4x32xf32>
    %387 = arith.truncf %386 : vector<4x32xf32> to vector<4x32xbf16>
    %cst_177 = arith.constant dense<0.000000e+00> : vector<4x32xf32>
    %388 = tpu.matmul %387, %40, %cst_177 {dimension_numbers = #tpu.dot_dimension_numbers<[1], [0], [0], [1], [0, 0, 1, 1], [], []>} : vector<4x32xbf16>, vector<32x32xbf16>, vector<4x32xf32> -> vector<4x32xf32>
    %389 = arith.truncf %388 : vector<4x32xf32> to vector<4x32xbf16>
    %cst_178 = arith.constant dense<0.000000e+00> : vector<4x32xf32>
    %390 = tpu.matmul %387, %47, %cst_178 {dimension_numbers = #tpu.dot_dimension_numbers<[1], [0], [0], [1], [0, 0, 1, 1], [], []>} : vector<4x32xbf16>, vector<32x32xbf16>, vector<4x32xf32> -> vector<4x32xf32>
    %391 = arith.truncf %390 : vector<4x32xf32> to vector<4x32xbf16>
    %392 = vector.extract_strided_slice %66 {offsets = [0, 0, 0], sizes = [1, 4, 4], strides = [1, 1, 1]} : vector<3x4x4xbf16> to vector<1x4x4xbf16>
    %393 = vector.shape_cast %392 : vector<1x4x4xbf16> to vector<4x4xbf16>
    %cst_179 = arith.constant dense<0.000000e+00> : vector<4x32xf32>
    %394 = tpu.matmul %393, %389, %cst_179 {dimension_numbers = #tpu.dot_dimension_numbers<[1], [0], [0], [1], [0, 0, 1, 1], [], []>} : vector<4x4xbf16>, vector<4x32xbf16>, vector<4x32xf32> -> vector<4x32xf32>
    %395 = vector.extract_strided_slice %66 {offsets = [1, 0, 0], sizes = [1, 4, 4], strides = [1, 1, 1]} : vector<3x4x4xbf16> to vector<1x4x4xbf16>
    %396 = vector.shape_cast %395 : vector<1x4x4xbf16> to vector<4x4xbf16>
    %cst_180 = arith.constant dense<0.000000e+00> : vector<4x32xf32>
    %397 = tpu.matmul %396, %387, %cst_180 {dimension_numbers = #tpu.dot_dimension_numbers<[1], [0], [0], [1], [0, 0, 1, 1], [], []>} : vector<4x4xbf16>, vector<4x32xbf16>, vector<4x32xf32> -> vector<4x32xf32>
    %398 = arith.addf %394, %397 : vector<4x32xf32>
    %399 = vector.extract_strided_slice %66 {offsets = [2, 0, 0], sizes = [1, 4, 4], strides = [1, 1, 1]} : vector<3x4x4xbf16> to vector<1x4x4xbf16>
    %400 = vector.shape_cast %399 : vector<1x4x4xbf16> to vector<4x4xbf16>
    %cst_181 = arith.constant dense<0.000000e+00> : vector<4x32xf32>
    %401 = tpu.matmul %400, %391, %cst_181 {dimension_numbers = #tpu.dot_dimension_numbers<[1], [0], [0], [1], [0, 0, 1, 1], [], []>} : vector<4x4xbf16>, vector<4x32xbf16>, vector<4x32xf32> -> vector<4x32xf32>
    %402 = arith.addf %398, %401 : vector<4x32xf32>
    %403 = vector.broadcast %67 : vector<4x1xf32> to vector<4x32xf32>
    %404 = arith.mulf %402, %403 : vector<4x32xf32>
    %405 = vector.broadcast %68 : vector<4x1xf32> to vector<4x32xf32>
    %406 = arith.addf %404, %405 : vector<4x32xf32>
    %cst_182 = arith.constant 0.000000e+00 : f32
    %407 = vector.broadcast %cst_182 : f32 to vector<4x32xf32>
    %408 = arith.cmpf ogt, %406, %407 : vector<4x32xf32>
    %cst_183 = arith.constant 2.000000e-01 : f32
    %409 = vector.broadcast %cst_183 : f32 to vector<4x32xf32>
    %410 = arith.mulf %409, %406 : vector<4x32xf32>
    %411 = arith.select %408, %406, %410 : vector<4x32xi1>, vector<4x32xf32>
    %412 = arith.truncf %411 : vector<4x32xf32> to vector<4x32xbf16>
    %cst_184 = arith.constant dense<0.000000e+00> : vector<16x32xf32>
    %413 = tpu.matmul %69, %412, %cst_184 {dimension_numbers = #tpu.dot_dimension_numbers<[1], [0], [0], [1], [0, 0, 1, 1], [], []>} : vector<16x4xbf16>, vector<4x32xbf16>, vector<16x32xf32> -> vector<16x32xf32>
    %414 = vector.broadcast %70 : vector<16x1xf32> to vector<16x32xf32>
    %415 = arith.addf %413, %414 : vector<16x32xf32>
    %c1_185 = arith.constant 1 : index
    %c0_186 = arith.constant 0 : index
    %c0_187 = arith.constant 0 : index
    %416 = vector.load %arg28[%c1_185, %c0_186, %c0_187] : memref<2x16x32xf32, #tpu.memory_space<vmem>>, vector<1x16x32xf32>
    %417 = vector.shape_cast %416 : vector<1x16x32xf32> to vector<16x32xf32>
    %418 = vector.shape_cast %415 : vector<16x32xf32> to vector<1x16x32xf32>
    tpu.vector_store %arg28[%c1_185, %c0_186, %c0_187], %418 {strides = array<i32>} : memref<2x16x32xf32, #tpu.memory_space<vmem>>, vector<1x16x32xf32>,
    return
  }
  func.func @transform_0(%arg0: i32) -> (i32, i32, i32) {
    %c0_i32 = arith.constant 0 : i32
    %c0_i32_0 = arith.constant 0 : i32
    %c0_i32_1 = arith.constant 0 : i32
    %c0_i32_2 = arith.constant 0 : i32
    return %c0_i32, %c0_i32_0, %c0_i32_1 : i32, i32, i32
  }
  func.func @transform_1(%arg0: i32) -> (i32, i32, i32) {
    %c0_i32 = arith.constant 0 : i32
    %c0_i32_0 = arith.constant 0 : i32
    %c0_i32_1 = arith.constant 0 : i32
    %c0_i32_2 = arith.constant 0 : i32
    return %c0_i32, %c0_i32_0, %c0_i32_1 : i32, i32, i32
  }
  func.func @transform_2(%arg0: i32) -> (i32, i32, i32) {
    %c0_i32 = arith.constant 0 : i32
    %c0_i32_0 = arith.constant 0 : i32
    %c0_i32_1 = arith.constant 0 : i32
    %c0_i32_2 = arith.constant 0 : i32
    return %c0_i32, %c0_i32_0, %c0_i32_1 : i32, i32, i32
  }
  func.func @transform_3(%arg0: i32) -> (i32, i32, i32) {
    %c0_i32 = arith.constant 0 : i32
    %c0_i32_0 = arith.constant 0 : i32
    %c0_i32_1 = arith.constant 0 : i32
    %c0_i32_2 = arith.constant 0 : i32
    return %c0_i32, %c0_i32_0, %c0_i32_1 : i32, i32, i32
  }
  func.func @transform_4(%arg0: i32) -> (i32, i32) {
    %c0_i32 = arith.constant 0 : i32
    %c0_i32_0 = arith.constant 0 : i32
    %c0_i32_1 = arith.constant 0 : i32
    return %c0_i32, %c0_i32_0 : i32, i32
  }
  func.func @transform_5(%arg0: i32) -> (i32, i32) {
    %c0_i32 = arith.constant 0 : i32
    %c0_i32_0 = arith.constant 0 : i32
    %c0_i32_1 = arith.constant 0 : i32
    return %c0_i32, %c0_i32_0 : i32, i32
  }
  func.func @transform_6(%arg0: i32) -> (i32, i32) {
    %c0_i32 = arith.constant 0 : i32
    %c0_i32_0 = arith.constant 0 : i32
    %c0_i32_1 = arith.constant 0 : i32
    return %c0_i32, %c0_i32_0 : i32, i32
  }
  func.func @transform_7(%arg0: i32) -> (i32, i32, i32) {
    %c0_i32 = arith.constant 0 : i32
    %c0_i32_0 = arith.constant 0 : i32
    %c0_i32_1 = arith.constant 0 : i32
    %c0_i32_2 = arith.constant 0 : i32
    return %c0_i32, %c0_i32_0, %c0_i32_1 : i32, i32, i32
  }
  func.func @transform_8(%arg0: i32) -> (i32, i32) {
    %c0_i32 = arith.constant 0 : i32
    %c0_i32_0 = arith.constant 0 : i32
    %c0_i32_1 = arith.constant 0 : i32
    return %c0_i32, %c0_i32_0 : i32, i32
  }
  func.func @transform_9(%arg0: i32) -> (i32, i32) {
    %c0_i32 = arith.constant 0 : i32
    %c0_i32_0 = arith.constant 0 : i32
    %c0_i32_1 = arith.constant 0 : i32
    return %c0_i32, %c0_i32_0 : i32, i32
  }
  func.func @transform_10(%arg0: i32) -> (i32, i32, i32) {
    %c0_i32 = arith.constant 0 : i32
    %c0_i32_0 = arith.constant 0 : i32
    %c0_i32_1 = arith.constant 0 : i32
    %c0_i32_2 = arith.constant 0 : i32
    return %c0_i32, %c0_i32_0, %c0_i32_1 : i32, i32, i32
  }
  func.func @transform_11(%arg0: i32) -> (i32, i32) {
    %c0_i32 = arith.constant 0 : i32
    %c0_i32_0 = arith.constant 0 : i32
    %c0_i32_1 = arith.constant 0 : i32
    return %c0_i32, %c0_i32_0 : i32, i32
  }
  func.func @transform_12(%arg0: i32) -> (i32, i32) {
    %c0_i32 = arith.constant 0 : i32
    %c0_i32_0 = arith.constant 0 : i32
    %c0_i32_1 = arith.constant 0 : i32
    return %c0_i32, %c0_i32_0 : i32, i32
  }
  func.func @transform_13(%arg0: i32) -> (i32, i32, i32) {
    %c0_i32 = arith.constant 0 : i32
    %c0_i32_0 = arith.constant 0 : i32
    %c0_i32_1 = arith.constant 0 : i32
    %c0_i32_2 = arith.constant 0 : i32
    return %c0_i32, %c0_i32_0, %c0_i32_1 : i32, i32, i32
  }
  func.func @transform_14(%arg0: i32) -> (i32, i32) {
    %c0_i32 = arith.constant 0 : i32
    %c0_i32_0 = arith.constant 0 : i32
    %c0_i32_1 = arith.constant 0 : i32
    return %c0_i32, %c0_i32_0 : i32, i32
  }
  func.func @transform_15(%arg0: i32) -> (i32, i32) {
    %c0_i32 = arith.constant 0 : i32
    %c0_i32_0 = arith.constant 0 : i32
    %c0_i32_1 = arith.constant 0 : i32
    return %c0_i32, %c0_i32_0 : i32, i32
  }
  func.func @transform_16(%arg0: i32) -> (i32, i32, i32) {
    %c0_i32 = arith.constant 0 : i32
    %c0_i32_0 = arith.constant 0 : i32
    %c0_i32_1 = arith.constant 0 : i32
    %c0_i32_2 = arith.constant 0 : i32
    return %c0_i32, %c0_i32_0, %c0_i32_1 : i32, i32, i32
  }
  func.func @transform_17(%arg0: i32) -> (i32, i32) {
    %c0_i32 = arith.constant 0 : i32
    %c0_i32_0 = arith.constant 0 : i32
    %c0_i32_1 = arith.constant 0 : i32
    return %c0_i32, %c0_i32_0 : i32, i32
  }
  func.func @transform_18(%arg0: i32) -> (i32, i32) {
    %c0_i32 = arith.constant 0 : i32
    %c0_i32_0 = arith.constant 0 : i32
    %c0_i32_1 = arith.constant 0 : i32
    return %c0_i32, %c0_i32_0 : i32, i32
  }
  func.func @transform_19(%arg0: i32) -> (i32, i32, i32) {
    %c0_i32 = arith.constant 0 : i32
    %c0_i32_0 = arith.constant 0 : i32
    %c0_i32_1 = arith.constant 0 : i32
    %c0_i32_2 = arith.constant 0 : i32
    return %c0_i32, %c0_i32_0, %c0_i32_1 : i32, i32, i32
  }
  func.func @transform_20(%arg0: i32) -> (i32, i32) {
    %c0_i32 = arith.constant 0 : i32
    %c0_i32_0 = arith.constant 0 : i32
    %c0_i32_1 = arith.constant 0 : i32
    return %c0_i32, %c0_i32_0 : i32, i32
  }
  func.func @transform_21(%arg0: i32) -> (i32, i32) {
    %c0_i32 = arith.constant 0 : i32
    %c0_i32_0 = arith.constant 0 : i32
    %c0_i32_1 = arith.constant 0 : i32
    return %c0_i32, %c0_i32_0 : i32, i32
  }
  func.func @transform_22(%arg0: i32) -> (i32, i32, i32) {
    %c0_i32 = arith.constant 0 : i32
    %c0_i32_0 = arith.constant 0 : i32
    %c0_i32_1 = arith.constant 0 : i32
    %c0_i32_2 = arith.constant 0 : i32
    return %c0_i32, %c0_i32_0, %c0_i32_1 : i32, i32, i32
  }
  func.func @transform_23(%arg0: i32) -> (i32, i32) {
    %c0_i32 = arith.constant 0 : i32
    %c0_i32_0 = arith.constant 0 : i32
    %c0_i32_1 = arith.constant 0 : i32
    return %c0_i32, %c0_i32_0 : i32, i32
  }
  func.func @transform_24(%arg0: i32) -> (i32, i32) {
    %c0_i32 = arith.constant 0 : i32
    %c0_i32_0 = arith.constant 0 : i32
    %c0_i32_1 = arith.constant 0 : i32
    return %c0_i32, %c0_i32_0 : i32, i32
  }
  func.func @transform_25(%arg0: i32) -> (i32, i32) {
    %c0_i32 = arith.constant 0 : i32
    %c0_i32_0 = arith.constant 0 : i32
    %c0_i32_1 = arith.constant 0 : i32
    return %c0_i32, %c0_i32_0 : i32, i32
  }
  func.func @transform_26(%arg0: i32) -> (i32, i32) {
    %c0_i32 = arith.constant 0 : i32
    %c0_i32_0 = arith.constant 0 : i32
    %c0_i32_1 = arith.constant 0 : i32
    return %c0_i32, %c0_i32_0 : i32, i32
  }
  func.func @transform_27(%arg0: i32) -> (i32, i32, i32) {
    %c0_i32 = arith.constant 0 : i32
    %c0_i32_0 = arith.constant 0 : i32
    %c0_i32_1 = arith.constant 0 : i32
    %c0_i32_2 = arith.constant 0 : i32
    return %c0_i32, %c0_i32_0, %c0_i32_1 : i32, i32, i32
  }
}

</mosaic_0001>

<llo_original>
// kernel: decoder_forward.1
$region0: #{decoder_forward.1}
  #allocation0 [shape = 'u32[]', space=smem, size = 0x4, offset = 0x4, fixed_abs, tag = 'smem constant byte address 0x4 - core index']
  #allocation1 [shape = 'u32[144,128]{1,0:T(1,128)}', space=vmem, size = 0x12000, scoped, tag = 'internal scratch']
  %s0 = inlined_call_operand.vmem [shape: f32[2,32,4], index: 0, kind: input, shape index: {}]
  %s1 = inlined_call_operand.vmem [shape: f32[2,4,32], index: 1, kind: input, shape index: {}]
  %s2 = inlined_call_operand.vmem [shape: f32[2,8,16], index: 2, kind: input, shape index: {}]
  %s3 = inlined_call_operand.vmem [shape: f32[2,16,8], index: 3, kind: input, shape index: {}]
  %s4 = inlined_call_operand.vmem [shape: bf16[4,8], index: 4, kind: input, shape index: {}]
  %s5 = inlined_call_operand.vmem [shape: bf16[8,16], index: 5, kind: input, shape index: {}]
  %s6 = inlined_call_operand.vmem [shape: bf16[16,32], index: 6, kind: input, shape index: {}]
  %s7 = inlined_call_operand.vmem [shape: bf16[3,16,48], index: 7, kind: input, shape index: {}]
  %s8 = inlined_call_operand.vmem [shape: f32[16,1], index: 8, kind: input, shape index: {}]
  %s9 = inlined_call_operand.vmem [shape: f32[16,1], index: 9, kind: input, shape index: {}]
  %s10 = inlined_call_operand.vmem [shape: bf16[3,16,16], index: 10, kind: input, shape index: {}]
  %s11 = inlined_call_operand.vmem [shape: f32[16,1], index: 11, kind: input, shape index: {}]
  %s12 = inlined_call_operand.vmem [shape: f32[16,1], index: 12, kind: input, shape index: {}]
  %s13 = inlined_call_operand.vmem [shape: bf16[3,8,24], index: 13, kind: input, shape index: {}]
  %s14 = inlined_call_operand.vmem [shape: f32[8,1], index: 14, kind: input, shape index: {}]
  %s15 = inlined_call_operand.vmem [shape: f32[8,1], index: 15, kind: input, shape index: {}]
  %s16 = inlined_call_operand.vmem [shape: bf16[3,8,8], index: 16, kind: input, shape index: {}]
  %s17 = inlined_call_operand.vmem [shape: f32[8,1], index: 17, kind: input, shape index: {}]
  %s18 = inlined_call_operand.vmem [shape: f32[8,1], index: 18, kind: input, shape index: {}]
  %s19 = inlined_call_operand.vmem [shape: bf16[3,4,12], index: 19, kind: input, shape index: {}]
  %s20 = inlined_call_operand.vmem [shape: f32[4,1], index: 20, kind: input, shape index: {}]
  %s21 = inlined_call_operand.vmem [shape: f32[4,1], index: 21, kind: input, shape index: {}]
  %s22 = inlined_call_operand.vmem [shape: bf16[3,4,4], index: 22, kind: input, shape index: {}]
  %s23 = inlined_call_operand.vmem [shape: f32[4,1], index: 23, kind: input, shape index: {}]
  %s24 = inlined_call_operand.vmem [shape: f32[4,1], index: 24, kind: input, shape index: {}]
  %s25 = inlined_call_operand.vmem [shape: bf16[16,4], index: 25, kind: input, shape index: {}]
  %s26 = inlined_call_operand.vmem [shape: f32[16,1], index: 26, kind: input, shape index: {}]
  %s27 = inlined_call_operand.hbm [shape: f32[2,16,32], index: 27, kind: output, shape index: {}]
  %s28 = sld [smem:[#allocation0]]
  $region118: #{decoder_forward.1} parent=0
    _
  %s30 = ssub.s32 1, %s28
  %s31 = scalar_select 0, %s30, %s28
  $region1: #{decoder_forward.1} parent=0
    #allocation2 [shape = 'u8[16384]{0}', space=vmem, size = 0x4000, scoped, tag = 'output window, operand 0, single buffered']
    #allocation3 [shape = 's32[1]{0}', space=sflag, size = 0x4, scoped, tag = 'scoped memory for decoder_forward.1']
    %32 = vsyncpa [#allocation3], 0
    // Predicated region
    $region2: #{decoder_forward.1} parent=1 // pred_check
      _
    $region3: #{decoder_forward.1} parent=1 // pred_check_branch
      %34 = sbr.rel (0) target = $region5
    $region4: #{decoder_forward.1} parent=1 // pred_region
      _
    $region5: #{decoder_forward.1} parent=1 // pred_fallthru
      _
    // Predicated region
    $region6: #{decoder_forward.1} parent=1 // pred_check
      _
    $region7: #{decoder_forward.1} parent=1 // pred_check_branch
      %36 = sbr.rel (0) target = $region9
    $region8: #{decoder_forward.1} parent=1 // pred_region
      _
    $region9: #{decoder_forward.1} parent=1 // pred_fallthru
      _
    // Predicated region
    $region10: #{decoder_forward.1} parent=1 // pred_check
      _
    $region11: #{decoder_forward.1} parent=1 // pred_check_branch
      %38 = sbr.rel (0) target = $region13
    $region12: #{decoder_forward.1} parent=1 // pred_region
      _
    $region13: #{decoder_forward.1} parent=1 // pred_fallthru
      _
    // Predicated region
    $region14: #{decoder_forward.1} parent=1 // pred_check
      _
    $region15: #{decoder_forward.1} parent=1 // pred_check_branch
      %40 = sbr.rel (0) target = $region17
    $region16: #{decoder_forward.1} parent=1 // pred_region
      _
    $region17: #{decoder_forward.1} parent=1 // pred_fallthru
      _
    // Predicated region
    $region18: #{decoder_forward.1} parent=1 // pred_check
      _
    $region19: #{decoder_forward.1} parent=1 // pred_check_branch
      %42 = sbr.rel (0) target = $region21
    $region20: #{decoder_forward.1} parent=1 // pred_region
      _
    $region21: #{decoder_forward.1} parent=1 // pred_fallthru
      _
    // Predicated region
    $region22: #{decoder_forward.1} parent=1 // pred_check
      _
    $region23: #{decoder_forward.1} parent=1 // pred_check_branch
      %44 = sbr.rel (0) target = $region25
    $region24: #{decoder_forward.1} parent=1 // pred_region
      _
    $region25: #{decoder_forward.1} parent=1 // pred_fallthru
      _
    // Predicated region
    $region26: #{decoder_forward.1} parent=1 // pred_check
      _
    $region27: #{decoder_forward.1} parent=1 // pred_check_branch
      %46 = sbr.rel (0) target = $region29
    $region28: #{decoder_forward.1} parent=1 // pred_region
      _
    $region29: #{decoder_forward.1} parent=1 // pred_fallthru
      _
    // Predicated region
    $region30: #{decoder_forward.1} parent=1 // pred_check
      _
    $region31: #{decoder_forward.1} parent=1 // pred_check_branch
      %48 = sbr.rel (0) target = $region33
    $region32: #{decoder_forward.1} parent=1 // pred_region
      _
    $region33: #{decoder_forward.1} parent=1 // pred_fallthru
      _
    // Predicated region
    $region34: #{decoder_forward.1} parent=1 // pred_check
      _
    $region35: #{decoder_forward.1} parent=1 // pred_check_branch
      %50 = sbr.rel (0) target = $region37
    $region36: #{decoder_forward.1} parent=1 // pred_region
      _
    $region37: #{decoder_forward.1} parent=1 // pred_fallthru
      _
    // Predicated region
    $region38: #{decoder_forward.1} parent=1 // pred_check
      _
    $region39: #{decoder_forward.1} parent=1 // pred_check_branch
      %52 = sbr.rel (0) target = $region41
    $region40: #{decoder_forward.1} parent=1 // pred_region
      _
    $region41: #{decoder_forward.1} parent=1 // pred_fallthru
      _
    // Predicated region
    $region42: #{decoder_forward.1} parent=1 // pred_check
      _
    $region43: #{decoder_forward.1} parent=1 // pred_check_branch
      %54 = sbr.rel (0) target = $region45
    $region44: #{decoder_forward.1} parent=1 // pred_region
      _
    $region45: #{decoder_forward.1} parent=1 // pred_fallthru
      _
    // Predicated region
    $region46: #{decoder_forward.1} parent=1 // pred_check
      _
    $region47: #{decoder_forward.1} parent=1 // pred_check_branch
      %56 = sbr.rel (0) target = $region49
    $region48: #{decoder_forward.1} parent=1 // pred_region
      _
    $region49: #{decoder_forward.1} parent=1 // pred_fallthru
      _
    // Predicated region
    $region50: #{decoder_forward.1} parent=1 // pred_check
      _
    $region51: #{decoder_forward.1} parent=1 // pred_check_branch
      %58 = sbr.rel (0) target = $region53
    $region52: #{decoder_forward.1} parent=1 // pred_region
      _
    $region53: #{decoder_forward.1} parent=1 // pred_fallthru
      _
    // Predicated region
    $region54: #{decoder_forward.1} parent=1 // pred_check
      _
    $region55: #{decoder_forward.1} parent=1 // pred_check_branch
      %60 = sbr.rel (0) target = $region57
    $region56: #{decoder_forward.1} parent=1 // pred_region
      _
    $region57: #{decoder_forward.1} parent=1 // pred_fallthru
      _
    // Predicated region
    $region58: #{decoder_forward.1} parent=1 // pred_check
      _
    $region59: #{decoder_forward.1} parent=1 // pred_check_branch
      %62 = sbr.rel (0) target = $region61
    $region60: #{decoder_forward.1} parent=1 // pred_region
      _
    $region61: #{decoder_forward.1} parent=1 // pred_fallthru
      _
    // Predicated region
    $region62: #{decoder_forward.1} parent=1 // pred_check
      _
    $region63: #{decoder_forward.1} parent=1 // pred_check_branch
      %64 = sbr.rel (0) target = $region65
    $region64: #{decoder_forward.1} parent=1 // pred_region
      _
    $region65: #{decoder_forward.1} parent=1 // pred_fallthru
      _
    // Predicated region
    $region66: #{decoder_forward.1} parent=1 // pred_check
      _
    $region67: #{decoder_forward.1} parent=1 // pred_check_branch
      %66 = sbr.rel (0) target = $region69
    $region68: #{decoder_forward.1} parent=1 // pred_region
      _
    $region69: #{decoder_forward.1} parent=1 // pred_fallthru
      _
    // Predicated region
    $region70: #{decoder_forward.1} parent=1 // pred_check
      _
    $region71: #{decoder_forward.1} parent=1 // pred_check_branch
      %68 = sbr.rel (0) target = $region73
    $region72: #{decoder_forward.1} parent=1 // pred_region
      _
    $region73: #{decoder_forward.1} parent=1 // pred_fallthru
      _
    // Predicated region
    $region74: #{decoder_forward.1} parent=1 // pred_check
      _
    $region75: #{decoder_forward.1} parent=1 // pred_check_branch
      %70 = sbr.rel (0) target = $region77
    $region76: #{decoder_forward.1} parent=1 // pred_region
      _
    $region77: #{decoder_forward.1} parent=1 // pred_fallthru
      _
    // Predicated region
    $region78: #{decoder_forward.1} parent=1 // pred_check
      _
    $region79: #{decoder_forward.1} parent=1 // pred_check_branch
      %72 = sbr.rel (0) target = $region81
    $region80: #{decoder_forward.1} parent=1 // pred_region
      _
    $region81: #{decoder_forward.1} parent=1 // pred_fallthru
      _
    // Predicated region
    $region82: #{decoder_forward.1} parent=1 // pred_check
      _
    $region83: #{decoder_forward.1} parent=1 // pred_check_branch
      %74 = sbr.rel (0) target = $region85
    $region84: #{decoder_forward.1} parent=1 // pred_region
      _
    $region85: #{decoder_forward.1} parent=1 // pred_fallthru
      _
    // Predicated region
    $region86: #{decoder_forward.1} parent=1 // pred_check
      _
    $region87: #{decoder_forward.1} parent=1 // pred_check_branch
      %76 = sbr.rel (0) target = $region89
    $region88: #{decoder_forward.1} parent=1 // pred_region
      _
    $region89: #{decoder_forward.1} parent=1 // pred_fallthru
      _
    // Predicated region
    $region90: #{decoder_forward.1} parent=1 // pred_check
      _
    $region91: #{decoder_forward.1} parent=1 // pred_check_branch
      %78 = sbr.rel (0) target = $region93
    $region92: #{decoder_forward.1} parent=1 // pred_region
      _
    $region93: #{decoder_forward.1} parent=1 // pred_fallthru
      _
    // Predicated region
    $region94: #{decoder_forward.1} parent=1 // pred_check
      _
    $region95: #{decoder_forward.1} parent=1 // pred_check_branch
      %80 = sbr.rel (0) target = $region97
    $region96: #{decoder_forward.1} parent=1 // pred_region
      _
    $region97: #{decoder_forward.1} parent=1 // pred_fallthru
      _
    // Predicated region
    $region98: #{decoder_forward.1} parent=1 // pred_check
      _
    $region99: #{decoder_forward.1} parent=1 // pred_check_branch
      %82 = sbr.rel (0) target = $region101
    $region100: #{decoder_forward.1} parent=1 // pred_region
      _
    $region101: #{decoder_forward.1} parent=1 // pred_fallthru
      _
    // Predicated region
    $region102: #{decoder_forward.1} parent=1 // pred_check
      _
    $region103: #{decoder_forward.1} parent=1 // pred_check_branch
      %84 = sbr.rel (0) target = $region105
    $region104: #{decoder_forward.1} parent=1 // pred_region
      _
    $region105: #{decoder_forward.1} parent=1 // pred_fallthru
      _
    // Predicated region
    $region106: #{decoder_forward.1} parent=1 // pred_check
      _
    $region107: #{decoder_forward.1} parent=1 // pred_check_branch
      %86 = sbr.rel (0) target = $region109
    $region108: #{decoder_forward.1} parent=1 // pred_region
      _
    $region109: #{decoder_forward.1} parent=1 // pred_fallthru
      _
    %v88 = vlaneseq
    %v89 = vshrl.u32 %v88, 7
    %v90 = vlaneseq
    %v91 = vand.u32 %v90, 127
    %v92 = vadd.s32 %v89, 1
    %vm93 = vcmp.eq.s32.totalorder %v92, %v91
    %v94 = vsel %vm93, 1.0, 0.0
    %v95 = vpack.c.bf16 %v94, %v94
    %v96 = vadd.s32 %v91, 1
    %vm97 = vcmp.eq.s32.totalorder %v89, %v96
    %v98 = vsel %vm97, 1.0, 0.0
    %v99 = vpack.c.bf16 %v98, %v98
    %v100 = vadd.s32 %v89, 8
    %v101 = vadd.s32 %v100, 1
    %vm102 = vcmp.eq.s32.totalorder %v101, %v91
    %v103 = vsel %vm102, 1.0, 0.0
    %v104 = vpack.c.bf16 %v103, %v94
    %vm105 = vcmp.eq.s32.totalorder %v100, %v96
    %v106 = vsel %vm105, 1.0, 0.0
    %v107 = vpack.c.bf16 %v106, %v98
    %v108 = vadd.s32 %v89, 16
    %v109 = vadd.s32 %v89, 24
    %v110 = vadd.s32 %v108, 1
    %v111 = vadd.s32 %v109, 1
    %vm112 = vcmp.eq.s32.totalorder %v110, %v91
    %vm113 = vcmp.eq.s32.totalorder %v111, %v91
    %v114 = vsel %vm112, 1.0, 0.0
    %v115 = vsel %vm113, 1.0, 0.0
    %v116 = vpack.c.bf16 %v115, %v114
    %vm117 = vcmp.eq.s32.totalorder %v108, %v96
    %vm118 = vcmp.eq.s32.totalorder %v109, %v96
    %v119 = vsel %vm117, 1.0, 0.0
    %v120 = vsel %vm118, 1.0, 0.0
    %v121 = vpack.c.bf16 %v120, %v119
    %v122 = vld [vmem:[%s4] sm:$0x3]
    %v123 = vld [vmem:[%s5] sm:$0xf]
    %v124 = vld [vmem:[%s6] sm:$0xf]
    %v125 = vld [vmem:[%s6 + $0x4] sm:$0xf]
    %v126 = vld [vmem:[%s7] sm:$0xf]
    %v127 = vld [vmem:[%s7 + $0x4] sm:$0xf]
    %v128 = vld [vmem:[%s7 + $0x8] sm:$0xf]
    %v129 = vld [vmem:[%s7 + $0xc] sm:$0xf]
    %v130 = vld [vmem:[%s7 + $0x10] sm:$0xf]
    %v131 = vld [vmem:[%s7 + $0x14] sm:$0xf]
    %v132 = vld [vmem:[%s8] sm:$0xff]
    %v133 = vld [vmem:[%s8 + $0x8] sm:$0xff]
    %v134 = vld [vmem:[%s9] sm:$0xff]
    %v135 = vld [vmem:[%s9 + $0x8] sm:$0xff]
    %v136 = vld [vmem:[%s10] sm:$0xf]
    %v137 = vld [vmem:[%s10 + $0x4] sm:$0xf]
    %v138 = vld [vmem:[%s10 + $0x8] sm:$0xf]
    %v139 = vld [vmem:[%s10 + $0xc] sm:$0xf]
    %v140 = vld [vmem:[%s10 + $0x10] sm:$0xf]
    %v141 = vld [vmem:[%s10 + $0x14] sm:$0xf]
    %v142 = vld [vmem:[%s11] sm:$0xff]
    %v143 = vld [vmem:[%s11 + $0x8] sm:$0xff]
    %v144 = vld [vmem:[%s12] sm:$0xff]
    %v145 = vld [vmem:[%s12 + $0x8] sm:$0xff]
    %v146 = vld [vmem:[%s13] sm:$0xf]
    %v147 = vld [vmem:[%s13 + $0x4] sm:$0xf]
    %v148 = vld [vmem:[%s13 + $0x8] sm:$0xf]
    %v149 = vld [vmem:[%s14] sm:$0xff]
    %v150 = vld [vmem:[%s15] sm:$0xff]
    %v151 = vld [vmem:[%s16] sm:$0xf]
    %v152 = vld [vmem:[%s16 + $0x4] sm:$0xf]
    %v153 = vld [vmem:[%s16 + $0x8] sm:$0xf]
    %v154 = vld [vmem:[%s17] sm:$0xff]
    %v155 = vld [vmem:[%s18] sm:$0xff]
    %v156 = vld [vmem:[%s19] sm:$0x3]
    %v157 = vld [vmem:[%s19 + $0x2] sm:$0x3]
    %v158 = vld [vmem:[%s19 + $0x4] sm:$0x3]
    %v159 = vld [vmem:[%s20] sm:$0xf]
    %v160 = vld [vmem:[%s21] sm:$0xf]
    %v161 = vld [vmem:[%s22] sm:$0x3]
    %v162 = vld [vmem:[%s22 + $0x2] sm:$0x3]
    %v163 = vld [vmem:[%s22 + $0x4] sm:$0x3]
    %v164 = vld [vmem:[%s23] sm:$0xf]
    %v165 = vld [vmem:[%s24] sm:$0xf]
    %v166 = vld [vmem:[%s25] sm:$0xf]
    %v167 = vld [vmem:[%s25 + $0x4] sm:$0xf]
    %v168 = vld [vmem:[%s26] sm:$0xff]
    %v169 = vld [vmem:[%s26 + $0x8] sm:$0xff]
    %v170 = vld [vmem:[%s0] sm:$0xff]
    %v171 = vld [vmem:[%s0 + $0x8] sm:$0xff]
    %v172 = vld [vmem:[%s0 + $0x10] sm:$0xff]
    %v173 = vld [vmem:[%s0 + $0x18] sm:$0xff]
    %v174 = vpack.c.bf16 %v171, %v170
    %v175 = vpack.c.bf16 %v173, %v172
    %vm176 = vcmask 31744
    %v178 = vsel %vm176, %v174, 0
    %v181 = vsel %vm176, %v175, 0
    %vm183 = vcmask 1041408
    %v185 = vsel %vm183, %v122, 0
    %187 = vmatprep.subr.bf16.mxu0 0
    %188 = vmatpush1.bf16.msra.mxu0 %v185
    %189 = vmatprep.subr.bf16.mxu0 0
    %190 = vmatpush1.bf16.msra.mxu0 0
    %191 = vmatprep.subr.bf16.mxu0 0
    %192 = vmatpush1.bf16.msra.mxu0 0
    %193 = vmatprep.subr.bf16.mxu0 0
    %194 = vmatpush1.bf16.msra.mxu0 0
    %195 = vmatprep.subr.bf16.mxu0 0
    %196 = vmatpush1.bf16.msra.mxu0 0
    %197 = vmatprep.subr.bf16.mxu0 0
    %198 = vmatpush1.bf16.msra.mxu0 0
    %199 = vmatprep.subr.bf16.mxu0 0
    %200 = vmatpush1.bf16.msra.mxu0 0
    %201 = vmatprep.subr.bf16.mxu0 0
    %202 = vmatpush1.bf16.msra.mxu0 0
    %203 = vmatprep.subr.bf16.mxu0 0
    %204 = vmatpush1.bf16.msra.mxu0 0
    %205 = vmatprep.subr.bf16.mxu0 0
    %206 = vmatpush1.bf16.msra.mxu0 0
    %207 = vmatprep.subr.bf16.mxu0 0
    %208 = vmatpush1.bf16.msra.mxu0 0
    %209 = vmatprep.subr.bf16.mxu0 0
    %210 = vmatpush1.bf16.msra.mxu0 0
    %211 = vmatprep.subr.bf16.mxu0 0
    %212 = vmatpush1.bf16.msra.mxu0 0
    %213 = vmatprep.subr.bf16.mxu0 0
    %214 = vmatpush1.bf16.msra.mxu0 0
    %215 = vmatprep.subr.bf16.mxu0 0
    %216 = vmatpush1.bf16.msra.mxu0 0
    %217 = vmatprep.subr.bf16.mxu0 0
    %218 = vmatpush1.bf16.msra.mxu0 0
    %219 = vmatprep.mubr.bf16.mxu0 0
    %220 = vmatmul.mubr.bf16.gmra.mrb[0].mxu0 %v178
    %v221 = vpop.f32.mrb[0].mxu0
    %v222 = vadd.f32 0.0, %v221
    %v223 = vpop.f32.mrb[0].mxu0
    %v224 = vpop.f32.mrb[0].mxu0
    %v225 = vadd.f32 0.0, %v224
    %v226 = vpop.f32.mrb[0].mxu0
    %227 = vmatprep.mubr.bf16.mxu0 0
    %228 = vmatmul.mubr.bf16.gmra.mrb[0].mxu0 %v181
    %v229 = vpop.f32.mrb[0].mxu0
    %v230 = vadd.f32 0.0, %v229
    %v231 = vpop.f32.mrb[0].mxu0
    %v232 = vpop.f32.mrb[0].mxu0
    %v233 = vadd.f32 0.0, %v232
    %v234 = vpop.f32.mrb[0].mxu0
    %235 = vdwg.mxu0
    %v236 = vld [vmem:[%s3] sm:$0xff]
    %v237 = vld [vmem:[%s3 + $0x8] sm:$0xff]
    %v238 = vpack.c.bf16 %v225, %v222
    %v239 = vpack.c.bf16 %v233, %v230
    %v240 = vpack.c.bf16 %v237, %v236
    %vm241 = vcmask 64512
    %v243 = vsel %vm241, %v238, 0
    %v246 = vsel %vm241, %v239, 0
    %v249 = vsel %vm241, %v240, 0
    %vm251 = vcmask 1043456
    %v253 = vsel %vm251, %v95, 0
    %255 = vmatprep.subr.bf16.mxu0 0
    %256 = vmatpush1.bf16.msra.mxu0 %v253
    %257 = vmatprep.subr.bf16.mxu0 0
    %258 = vmatpush1.bf16.msra.mxu0 0
    %259 = vmatprep.subr.bf16.mxu0 0
    %260 = vmatpush1.bf16.msra.mxu0 0
    %261 = vmatprep.subr.bf16.mxu0 0
    %262 = vmatpush1.bf16.msra.mxu0 0
    %263 = vmatprep.subr.bf16.mxu0 0
    %264 = vmatpush1.bf16.msra.mxu0 0
    %265 = vmatprep.subr.bf16.mxu0 0
    %266 = vmatpush1.bf16.msra.mxu0 0
    %267 = vmatprep.subr.bf16.mxu0 0
    %268 = vmatpush1.bf16.msra.mxu0 0
    %269 = vmatprep.subr.bf16.mxu0 0
    %270 = vmatpush1.bf16.msra.mxu0 0
    %271 = vmatprep.subr.bf16.mxu0 0
    %272 = vmatpush1.bf16.msra.mxu0 0
    %273 = vmatprep.subr.bf16.mxu0 0
    %274 = vmatpush1.bf16.msra.mxu0 0
    %275 = vmatprep.subr.bf16.mxu0 0
    %276 = vmatpush1.bf16.msra.mxu0 0
    %277 = vmatprep.subr.bf16.mxu0 0
    %278 = vmatpush1.bf16.msra.mxu0 0
    %279 = vmatprep.subr.bf16.mxu0 0
    %280 = vmatpush1.bf16.msra.mxu0 0
    %281 = vmatprep.subr.bf16.mxu0 0
    %282 = vmatpush1.bf16.msra.mxu0 0
    %283 = vmatprep.subr.bf16.mxu0 0
    %284 = vmatpush1.bf16.msra.mxu0 0
    %285 = vmatprep.subr.bf16.mxu0 0
    %286 = vmatpush1.bf16.msra.mxu0 0
    %287 = vmatprep.mubr.bf16.mxu0 0
    %288 = vmatmul.mubr.bf16.gmra.mrb[0].mxu0 %v243
    %v289 = vpop.f32.mrb[0].mxu0
    %v290 = vadd.f32 0.0, %v289
    %v291 = vpop.f32.mrb[0].mxu0
    %v292 = vpop.f32.mrb[0].mxu0
    %v293 = vadd.f32 0.0, %v292
    %v294 = vpop.f32.mrb[0].mxu0
    %295 = vmatprep.mubr.bf16.mxu0 0
    %296 = vmatmul.mubr.bf16.gmra.mrb[0].mxu0 %v246
    %v297 = vpop.f32.mrb[0].mxu0
    %v298 = vadd.f32 0.0, %v297
    %v299 = vpop.f32.mrb[0].mxu0
    %v300 = vpop.f32.mrb[0].mxu0
    %v301 = vadd.f32 0.0, %v300
    %v302 = vpop.f32.mrb[0].mxu0
    %303 = vmatprep.mubr.bf16.mxu0 0
    %304 = vmatmul.mubr.bf16.gmra.mrb[0].mxu0 %v249
    %v305 = vpop.f32.mrb[0].mxu0
    %v306 = vadd.f32 0.0, %v305
    %v307 = vpop.f32.mrb[0].mxu0
    %v308 = vpop.f32.mrb[0].mxu0
    %v309 = vadd.f32 0.0, %v308
    %v310 = vpop.f32.mrb[0].mxu0
    %311 = vdwg.mxu0
    %v312 = vpack.c.bf16 %v293, %v290
    %v313 = vpack.c.bf16 %v301, %v298
    %v314 = vpack.c.bf16 %v309, %v306
    %v316 = vsel %vm251, %v99, 0
    %318 = vmatprep.subr.bf16.mxu0 0
    %319 = vmatpush1.bf16.msra.mxu0 %v316
    %320 = vmatprep.subr.bf16.mxu0 0
    %321 = vmatpush1.bf16.msra.mxu0 0
    %322 = vmatprep.subr.bf16.mxu0 0
    %323 = vmatpush1.bf16.msra.mxu0 0
    %324 = vmatprep.subr.bf16.mxu0 0
    %325 = vmatpush1.bf16.msra.mxu0 0
    %326 = vmatprep.subr.bf16.mxu0 0
    %327 = vmatpush1.bf16.msra.mxu0 0
    %328 = vmatprep.subr.bf16.mxu0 0
    %329 = vmatpush1.bf16.msra.mxu0 0
    %330 = vmatprep.subr.bf16.mxu0 0
    %331 = vmatpush1.bf16.msra.mxu0 0
    %332 = vmatprep.subr.bf16.mxu0 0
    %333 = vmatpush1.bf16.msra.mxu0 0
    %334 = vmatprep.subr.bf16.mxu0 0
    %335 = vmatpush1.bf16.msra.mxu0 0
    %336 = vmatprep.subr.bf16.mxu0 0
    %337 = vmatpush1.bf16.msra.mxu0 0
    %338 = vmatprep.subr.bf16.mxu0 0
    %339 = vmatpush1.bf16.msra.mxu0 0
    %340 = vmatprep.subr.bf16.mxu0 0
    %341 = vmatpush1.bf16.msra.mxu0 0
    %342 = vmatprep.subr.bf16.mxu0 0
    %343 = vmatpush1.bf16.msra.mxu0 0
    %344 = vmatprep.subr.bf16.mxu0 0
    %345 = vmatpush1.bf16.msra.mxu0 0
    %346 = vmatprep.subr.bf16.mxu0 0
    %347 = vmatpush1.bf16.msra.mxu0 0
    %348 = vmatprep.subr.bf16.mxu0 0
    %349 = vmatpush1.bf16.msra.mxu0 0
    %350 = vmatprep.mubr.bf16.mxu0 0
    %351 = vmatmul.mubr.bf16.gmra.mrb[0].mxu0 %v243
    %v352 = vpop.f32.mrb[0].mxu0
    %v353 = vadd.f32 0.0, %v352
    %v354 = vpop.f32.mrb[0].mxu0
    %v355 = vpop.f32.mrb[0].mxu0
    %v356 = vadd.f32 0.0, %v355
    %v357 = vpop.f32.mrb[0].mxu0
    %358 = vmatprep.mubr.bf16.mxu0 0
    %359 = vmatmul.mubr.bf16.gmra.mrb[0].mxu0 %v246
    %v360 = vpop.f32.mrb[0].mxu0
    %v361 = vadd.f32 0.0, %v360
    %v362 = vpop.f32.mrb[0].mxu0
    %v363 = vpop.f32.mrb[0].mxu0
    %v364 = vadd.f32 0.0, %v363
    %v365 = vpop.f32.mrb[0].mxu0
    %366 = vmatprep.mubr.bf16.mxu0 0
    %367 = vmatmul.mubr.bf16.gmra.mrb[0].mxu0 %v249
    %v368 = vpop.f32.mrb[0].mxu0
    %v369 = vadd.f32 0.0, %v368
    %v370 = vpop.f32.mrb[0].mxu0
    %v371 = vpop.f32.mrb[0].mxu0
    %v372 = vadd.f32 0.0, %v371
    %v373 = vpop.f32.mrb[0].mxu0
    %374 = vdwg.mxu0
    %v375 = vpack.c.bf16 %v356, %v353
    %v376 = vpack.c.bf16 %v364, %v361
    %v377 = vpack.c.bf16 %v372, %v369
    %v380 = vunpack.c.l.b16 %v128
    %v381 = vunpack.c.l.b16 %v129
    %v382 = vpack.c.b16 %v381, %v380
    %vm383 = vcmask 392192
    %v385 = vsel %vm383, %v382, 0
    %387 = vmatprep.subr.bf16.mxu0 0
    %388 = vmatpush1.bf16.msra.mxu0 %v238
    %389 = vmatprep.subr.bf16.mxu0 0
    %390 = vmatpush1.bf16.msra.mxu0 %v239
    %391 = vmatprep.subr.bf16.mxu0 0
    %392 = vmatpush1.bf16.msra.mxu0 %v240
    %393 = vmatprep.subr.bf16.mxu0 0
    %394 = vmatpush1.bf16.msra.mxu0 0
    %395 = vmatprep.subr.bf16.mxu0 0
    %396 = vmatpush1.bf16.msra.mxu0 0
    %397 = vmatprep.subr.bf16.mxu0 0
    %398 = vmatpush1.bf16.msra.mxu0 0
    %399 = vmatprep.subr.bf16.mxu0 0
    %400 = vmatpush1.bf16.msra.mxu0 0
    %401 = vmatprep.subr.bf16.mxu0 0
    %402 = vmatpush1.bf16.msra.mxu0 0
    %403 = vmatprep.subr.bf16.mxu0 0
    %404 = vmatpush1.bf16.msra.mxu0 0
    %405 = vmatprep.subr.bf16.mxu0 0
    %406 = vmatpush1.bf16.msra.mxu0 0
    %407 = vmatprep.subr.bf16.mxu0 0
    %408 = vmatpush1.bf16.msra.mxu0 0
    %409 = vmatprep.subr.bf16.mxu0 0
    %410 = vmatpush1.bf16.msra.mxu0 0
    %411 = vmatprep.subr.bf16.mxu0 0
    %412 = vmatpush1.bf16.msra.mxu0 0
    %413 = vmatprep.subr.bf16.mxu0 0
    %414 = vmatpush1.bf16.msra.mxu0 0
    %415 = vmatprep.subr.bf16.mxu0 0
    %416 = vmatpush1.bf16.msra.mxu0 0
    %417 = vmatprep.subr.bf16.mxu0 0
    %418 = vmatpush1.bf16.msra.mxu0 0
    %419 = vmatprep.mubr.bf16.mxu0 0
    %420 = vmatmul.mubr.bf16.gmra.mrb[0].mxu0 %v385
    %v421 = vpop.f32.mrb[0].mxu0
    %v422 = vadd.f32 0.0, %v421
    %v423 = vpop.f32.mrb[0].mxu0
    %v424 = vpop.f32.mrb[0].mxu0
    %v425 = vadd.f32 0.0, %v424
    %v426 = vpop.f32.mrb[0].mxu0
    %427 = vdwg.mxu0
    %v430 = vunpack.c.l.b16 %v126
    %v431 = vunpack.c.l.b16 %v127
    %v432 = vpack.c.b16 %v431, %v430
    %v434 = vsel %vm383, %v432, 0
    %436 = vmatprep.subr.bf16.mxu0 0
    %437 = vmatpush1.bf16.msra.mxu0 %v312
    %438 = vmatprep.subr.bf16.mxu0 0
    %439 = vmatpush1.bf16.msra.mxu0 %v313
    %440 = vmatprep.subr.bf16.mxu0 0
    %441 = vmatpush1.bf16.msra.mxu0 %v314
    %442 = vmatprep.subr.bf16.mxu0 0
    %443 = vmatpush1.bf16.msra.mxu0 0
    %444 = vmatprep.subr.bf16.mxu0 0
    %445 = vmatpush1.bf16.msra.mxu0 0
    %446 = vmatprep.subr.bf16.mxu0 0
    %447 = vmatpush1.bf16.msra.mxu0 0
    %448 = vmatprep.subr.bf16.mxu0 0
    %449 = vmatpush1.bf16.msra.mxu0 0
    %450 = vmatprep.subr.bf16.mxu0 0
    %451 = vmatpush1.bf16.msra.mxu0 0
    %452 = vmatprep.subr.bf16.mxu0 0
    %453 = vmatpush1.bf16.msra.mxu0 0
    %454 = vmatprep.subr.bf16.mxu0 0
    %455 = vmatpush1.bf16.msra.mxu0 0
    %456 = vmatprep.subr.bf16.mxu0 0
    %457 = vmatpush1.bf16.msra.mxu0 0
    %458 = vmatprep.subr.bf16.mxu0 0
    %459 = vmatpush1.bf16.msra.mxu0 0
    %460 = vmatprep.subr.bf16.mxu0 0
    %461 = vmatpush1.bf16.msra.mxu0 0
    %462 = vmatprep.subr.bf16.mxu0 0
    %463 = vmatpush1.bf16.msra.mxu0 0
    %464 = vmatprep.subr.bf16.mxu0 0
    %465 = vmatpush1.bf16.msra.mxu0 0
    %466 = vmatprep.subr.bf16.mxu0 0
    %467 = vmatpush1.bf16.msra.mxu0 0
    %468 = vmatprep.mubr.bf16.mxu0 0
    %469 = vmatmul.mubr.bf16.gmra.mrb[0].mxu0 %v434
    %v470 = vpop.f32.mrb[0].mxu0
    %v471 = vadd.f32 %v422, %v470
    %v472 = vpop.f32.mrb[0].mxu0
    %v473 = vpop.f32.mrb[0].mxu0
    %v474 = vadd.f32 %v425, %v473
    %v475 = vpop.f32.mrb[0].mxu0
    %476 = vdwg.mxu0
    %v479 = vunpack.c.l.b16 %v130
    %v480 = vunpack.c.l.b16 %v131
    %v481 = vpack.c.b16 %v480, %v479
    %v483 = vsel %vm383, %v481, 0
    %485 = vmatprep.subr.bf16.mxu0 0
    %486 = vmatpush1.bf16.msra.mxu0 %v375
    %487 = vmatprep.subr.bf16.mxu0 0
    %488 = vmatpush1.bf16.msra.mxu0 %v376
    %489 = vmatprep.subr.bf16.mxu0 0
    %490 = vmatpush1.bf16.msra.mxu0 %v377
    %491 = vmatprep.subr.bf16.mxu0 0
    %492 = vmatpush1.bf16.msra.mxu0 0
    %493 = vmatprep.subr.bf16.mxu0 0
    %494 = vmatpush1.bf16.msra.mxu0 0
    %495 = vmatprep.subr.bf16.mxu0 0
    %496 = vmatpush1.bf16.msra.mxu0 0
    %497 = vmatprep.subr.bf16.mxu0 0
    %498 = vmatpush1.bf16.msra.mxu0 0
    %499 = vmatprep.subr.bf16.mxu0 0
    %500 = vmatpush1.bf16.msra.mxu0 0
    %501 = vmatprep.subr.bf16.mxu0 0
    %502 = vmatpush1.bf16.msra.mxu0 0
    %503 = vmatprep.subr.bf16.mxu0 0
    %504 = vmatpush1.bf16.msra.mxu0 0
    %505 = vmatprep.subr.bf16.mxu0 0
    %506 = vmatpush1.bf16.msra.mxu0 0
    %507 = vmatprep.subr.bf16.mxu0 0
    %508 = vmatpush1.bf16.msra.mxu0 0
    %509 = vmatprep.subr.bf16.mxu0 0
    %510 = vmatpush1.bf16.msra.mxu0 0
    %511 = vmatprep.subr.bf16.mxu0 0
    %512 = vmatpush1.bf16.msra.mxu0 0
    %513 = vmatprep.subr.bf16.mxu0 0
    %514 = vmatpush1.bf16.msra.mxu0 0
    %515 = vmatprep.subr.bf16.mxu0 0
    %516 = vmatpush1.bf16.msra.mxu0 0
    %517 = vmatprep.mubr.bf16.mxu0 0
    %518 = vmatmul.mubr.bf16.gmra.mrb[0].mxu0 %v483
    %v519 = vpop.f32.mrb[0].mxu0
    %v520 = vadd.f32 0.0, %v519
    %v521 = vpop.f32.mrb[0].mxu0
    %v522 = vpop.f32.mrb[0].mxu0
    %v523 = vadd.f32 0.0, %v522
    %v524 = vpop.f32.mrb[0].mxu0
    %525 = vdwg.mxu0
    %v526 = vadd.f32 %v471, %v520
    %v527 = vadd.f32 %v474, %v523
    %529 = vset.pattern.permute.xlu0 0
    %530 = vperm.xlu0 %529, %v132
    %v531 = vpop.permute.xlu0 %530
    %534 = vset.pattern.permute.xlu0 0
    %535 = vperm.xlu0 %534, %v133
    %v536 = vpop.permute.xlu0 %535
    %v538 = vmul.f32 %v526, %v531
    %v539 = vmul.f32 %v527, %v536
    %541 = vset.pattern.permute.xlu0 0
    %542 = vperm.xlu0 %541, %v134
    %v543 = vpop.permute.xlu0 %542
    %546 = vset.pattern.permute.xlu0 0
    %547 = vperm.xlu0 %546, %v135
    %v548 = vpop.permute.xlu0 %547
    %v550 = vadd.f32 %v538, %v543
    %v551 = vadd.f32 %v539, %v548
    %vm552 = vcmp.gt.f32.partialorder %v550, 0.0
    %vm553 = vcmp.gt.f32.partialorder %v551, 0.0
    %v554 = vmul.f32 %v550, 0.2
    %v555 = vmul.f32 %v551, 0.2
    %v556 = vsel %vm552, %v550, %v554
    %v557 = vsel %vm553, %v551, %v555
    %v558 = vpack.c.bf16 %v557, %v556
    %v560 = vsel %vm241, %v558, 0
    %562 = vmatprep.subr.bf16.mxu0 0
    %563 = vmatpush1.bf16.msra.mxu0 %v253
    %564 = vmatprep.subr.bf16.mxu0 0
    %565 = vmatpush1.bf16.msra.mxu0 0
    %566 = vmatprep.subr.bf16.mxu0 0
    %567 = vmatpush1.bf16.msra.mxu0 0
    %568 = vmatprep.subr.bf16.mxu0 0
    %569 = vmatpush1.bf16.msra.mxu0 0
    %570 = vmatprep.subr.bf16.mxu0 0
    %571 = vmatpush1.bf16.msra.mxu0 0
    %572 = vmatprep.subr.bf16.mxu0 0
    %573 = vmatpush1.bf16.msra.mxu0 0
    %574 = vmatprep.subr.bf16.mxu0 0
    %575 = vmatpush1.bf16.msra.mxu0 0
    %576 = vmatprep.subr.bf16.mxu0 0
    %577 = vmatpush1.bf16.msra.mxu0 0
    %578 = vmatprep.subr.bf16.mxu0 0
    %579 = vmatpush1.bf16.msra.mxu0 0
    %580 = vmatprep.subr.bf16.mxu0 0
    %581 = vmatpush1.bf16.msra.mxu0 0
    %582 = vmatprep.subr.bf16.mxu0 0
    %583 = vmatpush1.bf16.msra.mxu0 0
    %584 = vmatprep.subr.bf16.mxu0 0
    %585 = vmatpush1.bf16.msra.mxu0 0
    %586 = vmatprep.subr.bf16.mxu0 0
    %587 = vmatpush1.bf16.msra.mxu0 0
    %588 = vmatprep.subr.bf16.mxu0 0
    %589 = vmatpush1.bf16.msra.mxu0 0
    %590 = vmatprep.subr.bf16.mxu0 0
    %591 = vmatpush1.bf16.msra.mxu0 0
    %592 = vmatprep.subr.bf16.mxu0 0
    %593 = vmatpush1.bf16.msra.mxu0 0
    %594 = vmatprep.mubr.bf16.mxu0 0
    %595 = vmatmul.mubr.bf16.gmra.mrb[0].mxu0 %v560
    %v596 = vpop.f32.mrb[0].mxu0
    %v597 = vadd.f32 0.0, %v596
    %v598 = vpop.f32.mrb[0].mxu0
    %v599 = vpop.f32.mrb[0].mxu0
    %v600 = vadd.f32 0.0, %v599
    %v601 = vpop.f32.mrb[0].mxu0
    %602 = vdwg.mxu0
    %v603 = vpack.c.bf16 %v600, %v597
    %604 = vmatprep.subr.bf16.mxu0 0
    %605 = vmatpush1.bf16.msra.mxu0 %v316
    %606 = vmatprep.subr.bf16.mxu0 0
    %607 = vmatpush1.bf16.msra.mxu0 0
    %608 = vmatprep.subr.bf16.mxu0 0
    %609 = vmatpush1.bf16.msra.mxu0 0
    %610 = vmatprep.subr.bf16.mxu0 0
    %611 = vmatpush1.bf16.msra.mxu0 0
    %612 = vmatprep.subr.bf16.mxu0 0
    %613 = vmatpush1.bf16.msra.mxu0 0
    %614 = vmatprep.subr.bf16.mxu0 0
    %615 = vmatpush1.bf16.msra.mxu0 0
    %616 = vmatprep.subr.bf16.mxu0 0
    %617 = vmatpush1.bf16.msra.mxu0 0
    %618 = vmatprep.subr.bf16.mxu0 0
    %619 = vmatpush1.bf16.msra.mxu0 0
    %620 = vmatprep.subr.bf16.mxu0 0
    %621 = vmatpush1.bf16.msra.mxu0 0
    %622 = vmatprep.subr.bf16.mxu0 0
    %623 = vmatpush1.bf16.msra.mxu0 0
    %624 = vmatprep.subr.bf16.mxu0 0
    %625 = vmatpush1.bf16.msra.mxu0 0
    %626 = vmatprep.subr.bf16.mxu0 0
    %627 = vmatpush1.bf16.msra.mxu0 0
    %628 = vmatprep.subr.bf16.mxu0 0
    %629 = vmatpush1.bf16.msra.mxu0 0
    %630 = vmatprep.subr.bf16.mxu0 0
    %631 = vmatpush1.bf16.msra.mxu0 0
    %632 = vmatprep.subr.bf16.mxu0 0
    %633 = vmatpush1.bf16.msra.mxu0 0
    %634 = vmatprep.subr.bf16.mxu0 0
    %635 = vmatpush1.bf16.msra.mxu0 0
    %636 = vmatprep.mubr.bf16.mxu0 0
    %637 = vmatmul.mubr.bf16.gmra.mrb[0].mxu0 %v560
    %v638 = vpop.f32.mrb[0].mxu0
    %v639 = vadd.f32 0.0, %v638
    %v640 = vpop.f32.mrb[0].mxu0
    %v641 = vpop.f32.mrb[0].mxu0
    %v642 = vadd.f32 0.0, %v641
    %v643 = vpop.f32.mrb[0].mxu0
    %644 = vdwg.mxu0
    %v645 = vpack.c.bf16 %v642, %v639
    %v648 = vunpack.c.l.b16 %v138
    %v649 = vunpack.c.l.b16 %v139
    %v650 = vpack.c.b16 %v649, %v648
    %vm651 = vcmask 130048
    %v653 = vsel %vm651, %v650, 0
    %655 = vmatprep.subr.bf16.mxu0 0
    %656 = vmatpush1.bf16.msra.mxu0 %v558
    %657 = vmatprep.subr.bf16.mxu0 0
    %658 = vmatpush1.bf16.msra.mxu0 0
    %659 = vmatprep.subr.bf16.mxu0 0
    %660 = vmatpush1.bf16.msra.mxu0 0
    %661 = vmatprep.subr.bf16.mxu0 0
    %662 = vmatpush1.bf16.msra.mxu0 0
    %663 = vmatprep.subr.bf16.mxu0 0
    %664 = vmatpush1.bf16.msra.mxu0 0
    %665 = vmatprep.subr.bf16.mxu0 0
    %666 = vmatpush1.bf16.msra.mxu0 0
    %667 = vmatprep.subr.bf16.mxu0 0
    %668 = vmatpush1.bf16.msra.mxu0 0
    %669 = vmatprep.subr.bf16.mxu0 0
    %670 = vmatpush1.bf16.msra.mxu0 0
    %671 = vmatprep.subr.bf16.mxu0 0
    %672 = vmatpush1.bf16.msra.mxu0 0
    %673 = vmatprep.subr.bf16.mxu0 0
    %674 = vmatpush1.bf16.msra.mxu0 0
    %675 = vmatprep.subr.bf16.mxu0 0
    %676 = vmatpush1.bf16.msra.mxu0 0
    %677 = vmatprep.subr.bf16.mxu0 0
    %678 = vmatpush1.bf16.msra.mxu0 0
    %679 = vmatprep.subr.bf16.mxu0 0
    %680 = vmatpush1.bf16.msra.mxu0 0
    %681 = vmatprep.subr.bf16.mxu0 0
    %682 = vmatpush1.bf16.msra.mxu0 0
    %683 = vmatprep.subr.bf16.mxu0 0
    %684 = vmatpush1.bf16.msra.mxu0 0
    %685 = vmatprep.subr.bf16.mxu0 0
    %686 = vmatpush1.bf16.msra.mxu0 0
    %687 = vmatprep.mubr.bf16.mxu0 0
    %688 = vmatmul.mubr.bf16.gmra.mrb[0].mxu0 %v653
    %v689 = vpop.f32.mrb[0].mxu0
    %v690 = vadd.f32 0.0, %v689
    %v691 = vpop.f32.mrb[0].mxu0
    %v692 = vpop.f32.mrb[0].mxu0
    %v693 = vadd.f32 0.0, %v692
    %v694 = vpop.f32.mrb[0].mxu0
    %695 = vdwg.mxu0
    %v698 = vunpack.c.l.b16 %v136
    %v699 = vunpack.c.l.b16 %v137
    %v700 = vpack.c.b16 %v699, %v698
    %v702 = vsel %vm651, %v700, 0
    %704 = vmatprep.subr.bf16.mxu0 0
    %705 = vmatpush1.bf16.msra.mxu0 %v603
    %706 = vmatprep.subr.bf16.mxu0 0
    %707 = vmatpush1.bf16.msra.mxu0 0
    %708 = vmatprep.subr.bf16.mxu0 0
    %709 = vmatpush1.bf16.msra.mxu0 0
    %710 = vmatprep.subr.bf16.mxu0 0
    %711 = vmatpush1.bf16.msra.mxu0 0
    %712 = vmatprep.subr.bf16.mxu0 0
    %713 = vmatpush1.bf16.msra.mxu0 0
    %714 = vmatprep.subr.bf16.mxu0 0
    %715 = vmatpush1.bf16.msra.mxu0 0
    %716 = vmatprep.subr.bf16.mxu0 0
    %717 = vmatpush1.bf16.msra.mxu0 0
    %718 = vmatprep.subr.bf16.mxu0 0
    %719 = vmatpush1.bf16.msra.mxu0 0
    %720 = vmatprep.subr.bf16.mxu0 0
    %721 = vmatpush1.bf16.msra.mxu0 0
    %722 = vmatprep.subr.bf16.mxu0 0
    %723 = vmatpush1.bf16.msra.mxu0 0
    %724 = vmatprep.subr.bf16.mxu0 0
    %725 = vmatpush1.bf16.msra.mxu0 0
    %726 = vmatprep.subr.bf16.mxu0 0
    %727 = vmatpush1.bf16.msra.mxu0 0
    %728 = vmatprep.subr.bf16.mxu0 0
    %729 = vmatpush1.bf16.msra.mxu0 0
    %730 = vmatprep.subr.bf16.mxu0 0
    %731 = vmatpush1.bf16.msra.mxu0 0
    %732 = vmatprep.subr.bf16.mxu0 0
    %733 = vmatpush1.bf16.msra.mxu0 0
    %734 = vmatprep.subr.bf16.mxu0 0
    %735 = vmatpush1.bf16.msra.mxu0 0
    %736 = vmatprep.mubr.bf16.mxu0 0
    %737 = vmatmul.mubr.bf16.gmra.mrb[0].mxu0 %v702
    %v738 = vpop.f32.mrb[0].mxu0
    %v739 = vadd.f32 %v690, %v738
    %v740 = vpop.f32.mrb[0].mxu0
    %v741 = vpop.f32.mrb[0].mxu0
    %v742 = vadd.f32 %v693, %v741
    %v743 = vpop.f32.mrb[0].mxu0
    %744 = vdwg.mxu0
    %v747 = vunpack.c.l.b16 %v140
    %v748 = vunpack.c.l.b16 %v141
    %v749 = vpack.c.b16 %v748, %v747
    %v751 = vsel %vm651, %v749, 0
    %753 = vmatprep.subr.bf16.mxu0 0
    %754 = vmatpush1.bf16.msra.mxu0 %v645
    %755 = vmatprep.subr.bf16.mxu0 0
    %756 = vmatpush1.bf16.msra.mxu0 0
    %757 = vmatprep.subr.bf16.mxu0 0
    %758 = vmatpush1.bf16.msra.mxu0 0
    %759 = vmatprep.subr.bf16.mxu0 0
    %760 = vmatpush1.bf16.msra.mxu0 0
    %761 = vmatprep.subr.bf16.mxu0 0
    %762 = vmatpush1.bf16.msra.mxu0 0
    %763 = vmatprep.subr.bf16.mxu0 0
    %764 = vmatpush1.bf16.msra.mxu0 0
    %765 = vmatprep.subr.bf16.mxu0 0
    %766 = vmatpush1.bf16.msra.mxu0 0
    %767 = vmatprep.subr.bf16.mxu0 0
    %768 = vmatpush1.bf16.msra.mxu0 0
    %769 = vmatprep.subr.bf16.mxu0 0
    %770 = vmatpush1.bf16.msra.mxu0 0
    %771 = vmatprep.subr.bf16.mxu0 0
    %772 = vmatpush1.bf16.msra.mxu0 0
    %773 = vmatprep.subr.bf16.mxu0 0
    %774 = vmatpush1.bf16.msra.mxu0 0
    %775 = vmatprep.subr.bf16.mxu0 0
    %776 = vmatpush1.bf16.msra.mxu0 0
    %777 = vmatprep.subr.bf16.mxu0 0
    %778 = vmatpush1.bf16.msra.mxu0 0
    %779 = vmatprep.subr.bf16.mxu0 0
    %780 = vmatpush1.bf16.msra.mxu0 0
    %781 = vmatprep.subr.bf16.mxu0 0
    %782 = vmatpush1.bf16.msra.mxu0 0
    %783 = vmatprep.subr.bf16.mxu0 0
    %784 = vmatpush1.bf16.msra.mxu0 0
    %785 = vmatprep.mubr.bf16.mxu0 0
    %786 = vmatmul.mubr.bf16.gmra.mrb[0].mxu0 %v751
    %v787 = vpop.f32.mrb[0].mxu0
    %v788 = vadd.f32 0.0, %v787
    %v789 = vpop.f32.mrb[0].mxu0
    %v790 = vpop.f32.mrb[0].mxu0
    %v791 = vadd.f32 0.0, %v790
    %v792 = vpop.f32.mrb[0].mxu0
    %793 = vdwg.mxu0
    %v794 = vadd.f32 %v739, %v788
    %v795 = vadd.f32 %v742, %v791
    %797 = vset.pattern.permute.xlu0 0
    %798 = vperm.xlu0 %797, %v142
    %v799 = vpop.permute.xlu0 %798
    %802 = vset.pattern.permute.xlu0 0
    %803 = vperm.xlu0 %802, %v143
    %v804 = vpop.permute.xlu0 %803
    %v806 = vmul.f32 %v794, %v799
    %v807 = vmul.f32 %v795, %v804
    %809 = vset.pattern.permute.xlu0 0
    %810 = vperm.xlu0 %809, %v144
    %v811 = vpop.permute.xlu0 %810
    %814 = vset.pattern.permute.xlu0 0
    %815 = vperm.xlu0 %814, %v145
    %v816 = vpop.permute.xlu0 %815
    %v818 = vadd.f32 %v806, %v811
    %v819 = vadd.f32 %v807, %v816
    %vm820 = vcmp.gt.f32.partialorder %v818, 0.0
    %vm821 = vcmp.gt.f32.partialorder %v819, 0.0
    %v822 = vmul.f32 %v818, 0.2
    %v823 = vmul.f32 %v819, 0.2
    %v824 = vsel %vm820, %v818, %v822
    %v825 = vsel %vm821, %v819, %v823
    %v826 = vpack.c.bf16 %v825, %v824
    %v828 = vsel %vm241, %v826, 0
    %v831 = vsel %vm251, %v123, 0
    %833 = vmatprep.subr.bf16.mxu0 0
    %834 = vmatpush1.bf16.msra.mxu0 %v831
    %835 = vmatprep.subr.bf16.mxu0 0
    %836 = vmatpush1.bf16.msra.mxu0 0
    %837 = vmatprep.subr.bf16.mxu0 0
    %838 = vmatpush1.bf16.msra.mxu0 0
    %839 = vmatprep.subr.bf16.mxu0 0
    %840 = vmatpush1.bf16.msra.mxu0 0
    %841 = vmatprep.subr.bf16.mxu0 0
    %842 = vmatpush1.bf16.msra.mxu0 0
    %843 = vmatprep.subr.bf16.mxu0 0
    %844 = vmatpush1.bf16.msra.mxu0 0
    %845 = vmatprep.subr.bf16.mxu0 0
    %846 = vmatpush1.bf16.msra.mxu0 0
    %847 = vmatprep.subr.bf16.mxu0 0
    %848 = vmatpush1.bf16.msra.mxu0 0
    %849 = vmatprep.subr.bf16.mxu0 0
    %850 = vmatpush1.bf16.msra.mxu0 0
    %851 = vmatprep.subr.bf16.mxu0 0
    %852 = vmatpush1.bf16.msra.mxu0 0
    %853 = vmatprep.subr.bf16.mxu0 0
    %854 = vmatpush1.bf16.msra.mxu0 0
    %855 = vmatprep.subr.bf16.mxu0 0
    %856 = vmatpush1.bf16.msra.mxu0 0
    %857 = vmatprep.subr.bf16.mxu0 0
    %858 = vmatpush1.bf16.msra.mxu0 0
    %859 = vmatprep.subr.bf16.mxu0 0
    %860 = vmatpush1.bf16.msra.mxu0 0
    %861 = vmatprep.subr.bf16.mxu0 0
    %862 = vmatpush1.bf16.msra.mxu0 0
    %863 = vmatprep.subr.bf16.mxu0 0
    %864 = vmatpush1.bf16.msra.mxu0 0
    %865 = vmatprep.mubr.bf16.mxu0 0
    %866 = vmatmul.mubr.bf16.gmra.mrb[0].mxu0 %v828
    %v867 = vpop.f32.mrb[0].mxu0
    %v868 = vadd.f32 0.0, %v867
    %v869 = vpop.f32.mrb[0].mxu0
    %v870 = vpop.f32.mrb[0].mxu0
    %v871 = vadd.f32 0.0, %v870
    %v872 = vpop.f32.mrb[0].mxu0
    %873 = vdwg.mxu0
    %v874 = vld [vmem:[%s2] sm:$0xff]
    %v875 = vpack.c.bf16 %v871, %v868
    %v876 = vpack.c.bf16 %v874, %v874
    %v878 = vsel %vm651, %v875, 0
    %v881 = vsel %vm651, %v876, 0
    %883 = vmatprep.subr.bf16.mxu0 0
    %884 = vmatpush1.bf16.msra.mxu0 %v104
    %885 = vmatprep.subr.bf16.mxu0 0
    %886 = vmatpush1.bf16.msra.mxu0 0
    %887 = vmatprep.subr.bf16.mxu0 0
    %888 = vmatpush1.bf16.msra.mxu0 0
    %889 = vmatprep.subr.bf16.mxu0 0
    %890 = vmatpush1.bf16.msra.mxu0 0
    %891 = vmatprep.subr.bf16.mxu0 0
    %892 = vmatpush1.bf16.msra.mxu0 0
    %893 = vmatprep.subr.bf16.mxu0 0
    %894 = vmatpush1.bf16.msra.mxu0 0
    %895 = vmatprep.subr.bf16.mxu0 0
    %896 = vmatpush1.bf16.msra.mxu0 0
    %897 = vmatprep.subr.bf16.mxu0 0
    %898 = vmatpush1.bf16.msra.mxu0 0
    %899 = vmatprep.subr.bf16.mxu0 0
    %900 = vmatpush1.bf16.msra.mxu0 0
    %901 = vmatprep.subr.bf16.mxu0 0
    %902 = vmatpush1.bf16.msra.mxu0 0
    %903 = vmatprep.subr.bf16.mxu0 0
    %904 = vmatpush1.bf16.msra.mxu0 0
    %905 = vmatprep.subr.bf16.mxu0 0
    %906 = vmatpush1.bf16.msra.mxu0 0
    %907 = vmatprep.subr.bf16.mxu0 0
    %908 = vmatpush1.bf16.msra.mxu0 0
    %909 = vmatprep.subr.bf16.mxu0 0
    %910 = vmatpush1.bf16.msra.mxu0 0
    %911 = vmatprep.subr.bf16.mxu0 0
    %912 = vmatpush1.bf16.msra.mxu0 0
    %913 = vmatprep.subr.bf16.mxu0 0
    %914 = vmatpush1.bf16.msra.mxu0 0
    %915 = vmatprep.mubr.bf16.mxu0 0
    %916 = vmatmul.mubr.bf16.gmra.mrb[0].mxu0 %v878
    %v917 = vpop.f32.mrb[0].mxu0
    %v918 = vadd.f32 0.0, %v917
    %v919 = vpop.f32.mrb[0].mxu0
    %v920 = vpop.f32.mrb[0].mxu0
    %v921 = vadd.f32 0.0, %v920
    %v922 = vpop.f32.mrb[0].mxu0
    %923 = vmatprep.mubr.bf16.mxu0 0
    %924 = vmatmul.mubr.bf16.gmra.mrb[0].mxu0 %v881
    %v925 = vpop.f32.mrb[0].mxu0
    %v926 = vadd.f32 0.0, %v925
    %v927 = vpop.f32.mrb[0].mxu0
    %v928 = vpop.f32.mrb[0].mxu0
    %v929 = vpop.f32.mrb[0].mxu0
    %930 = vdwg.mxu0
    %v931 = vpack.c.bf16 %v921, %v918
    %v932 = vpack.c.bf16 %v926, %v926
    %933 = vmatprep.subr.bf16.mxu0 0
    %934 = vmatpush1.bf16.msra.mxu0 %v107
    %935 = vmatprep.subr.bf16.mxu0 0
    %936 = vmatpush1.bf16.msra.mxu0 0
    %937 = vmatprep.subr.bf16.mxu0 0
    %938 = vmatpush1.bf16.msra.mxu0 0
    %939 = vmatprep.subr.bf16.mxu0 0
    %940 = vmatpush1.bf16.msra.mxu0 0
    %941 = vmatprep.subr.bf16.mxu0 0
    %942 = vmatpush1.bf16.msra.mxu0 0
    %943 = vmatprep.subr.bf16.mxu0 0
    %944 = vmatpush1.bf16.msra.mxu0 0
    %945 = vmatprep.subr.bf16.mxu0 0
    %946 = vmatpush1.bf16.msra.mxu0 0
    %947 = vmatprep.subr.bf16.mxu0 0
    %948 = vmatpush1.bf16.msra.mxu0 0
    %949 = vmatprep.subr.bf16.mxu0 0
    %950 = vmatpush1.bf16.msra.mxu0 0
    %951 = vmatprep.subr.bf16.mxu0 0
    %952 = vmatpush1.bf16.msra.mxu0 0
    %953 = vmatprep.subr.bf16.mxu0 0
    %954 = vmatpush1.bf16.msra.mxu0 0
    %955 = vmatprep.subr.bf16.mxu0 0
    %956 = vmatpush1.bf16.msra.mxu0 0
    %957 = vmatprep.subr.bf16.mxu0 0
    %958 = vmatpush1.bf16.msra.mxu0 0
    %959 = vmatprep.subr.bf16.mxu0 0
    %960 = vmatpush1.bf16.msra.mxu0 0
    %961 = vmatprep.subr.bf16.mxu0 0
    %962 = vmatpush1.bf16.msra.mxu0 0
    %963 = vmatprep.subr.bf16.mxu0 0
    %964 = vmatpush1.bf16.msra.mxu0 0
    %965 = vmatprep.mubr.bf16.mxu0 0
    %966 = vmatmul.mubr.bf16.gmra.mrb[0].mxu0 %v878
    %v967 = vpop.f32.mrb[0].mxu0
    %v968 = vadd.f32 0.0, %v967
    %v969 = vpop.f32.mrb[0].mxu0
    %v970 = vpop.f32.mrb[0].mxu0
    %v971 = vadd.f32 0.0, %v970
    %v972 = vpop.f32.mrb[0].mxu0
    %973 = vmatprep.mubr.bf16.mxu0 0
    %974 = vmatmul.mubr.bf16.gmra.mrb[0].mxu0 %v881
    %v975 = vpop.f32.mrb[0].mxu0
    %v976 = vadd.f32 0.0, %v975
    %v977 = vpop.f32.mrb[0].mxu0
    %v978 = vpop.f32.mrb[0].mxu0
    %v979 = vpop.f32.mrb[0].mxu0
    %980 = vdwg.mxu0
    %v981 = vpack.c.bf16 %v971, %v968
    %v982 = vpack.c.bf16 %v976, %v976
    %vm983 = vcmask 195584
    %v985 = vsel %vm983, %v147, 0
    %v987 = vsel %vm251, %v876, 0
    %989 = vmatprep.subr.bf16.mxu0 0
    %990 = vmatpush1.bf16.msra.mxu0 %v875
    %991 = vmatprep.subr.bf16.mxu0 0
    %992 = vmatpush1.bf16.msra.mxu0 %v987
    %993 = vmatprep.subr.bf16.mxu0 0
    %994 = vmatpush1.bf16.msra.mxu0 0
    %995 = vmatprep.subr.bf16.mxu0 0
    %996 = vmatpush1.bf16.msra.mxu0 0
    %997 = vmatprep.subr.bf16.mxu0 0
    %998 = vmatpush1.bf16.msra.mxu0 0
    %999 = vmatprep.subr.bf16.mxu0 0
    %1000 = vmatpush1.bf16.msra.mxu0 0
    %1001 = vmatprep.subr.bf16.mxu0 0
    %1002 = vmatpush1.bf16.msra.mxu0 0
    %1003 = vmatprep.subr.bf16.mxu0 0
    %1004 = vmatpush1.bf16.msra.mxu0 0
    %1005 = vmatprep.subr.bf16.mxu0 0
    %1006 = vmatpush1.bf16.msra.mxu0 0
    %1007 = vmatprep.subr.bf16.mxu0 0
    %1008 = vmatpush1.bf16.msra.mxu0 0
    %1009 = vmatprep.subr.bf16.mxu0 0
    %1010 = vmatpush1.bf16.msra.mxu0 0
    %1011 = vmatprep.subr.bf16.mxu0 0
    %1012 = vmatpush1.bf16.msra.mxu0 0
    %1013 = vmatprep.subr.bf16.mxu0 0
    %1014 = vmatpush1.bf16.msra.mxu0 0
    %1015 = vmatprep.subr.bf16.mxu0 0
    %1016 = vmatpush1.bf16.msra.mxu0 0
    %1017 = vmatprep.subr.bf16.mxu0 0
    %1018 = vmatpush1.bf16.msra.mxu0 0
    %1019 = vmatprep.subr.bf16.mxu0 0
    %1020 = vmatpush1.bf16.msra.mxu0 0
    %1021 = vmatprep.mubr.bf16.mxu0 0
    %1022 = vmatmul.mubr.bf16.gmra.mrb[0].mxu0 %v985
    %v1023 = vpop.f32.mrb[0].mxu0
    %v1024 = vadd.f32 0.0, %v1023
    %v1025 = vpop.f32.mrb[0].mxu0
    %v1026 = vpop.f32.mrb[0].mxu0
    %v1027 = vpop.f32.mrb[0].mxu0
    %1028 = vdwg.mxu0
    %v1030 = vsel %vm983, %v146, 0
    %v1033 = vsel %vm251, %v932, 0
    %1035 = vmatprep.subr.bf16.mxu0 0
    %1036 = vmatpush1.bf16.msra.mxu0 %v931
    %1037 = vmatprep.subr.bf16.mxu0 0
    %1038 = vmatpush1.bf16.msra.mxu0 %v1033
    %1039 = vmatprep.subr.bf16.mxu0 0
    %1040 = vmatpush1.bf16.msra.mxu0 0
    %1041 = vmatprep.subr.bf16.mxu0 0
    %1042 = vmatpush1.bf16.msra.mxu0 0
    %1043 = vmatprep.subr.bf16.mxu0 0
    %1044 = vmatpush1.bf16.msra.mxu0 0
    %1045 = vmatprep.subr.bf16.mxu0 0
    %1046 = vmatpush1.bf16.msra.mxu0 0
    %1047 = vmatprep.subr.bf16.mxu0 0
    %1048 = vmatpush1.bf16.msra.mxu0 0
    %1049 = vmatprep.subr.bf16.mxu0 0
    %1050 = vmatpush1.bf16.msra.mxu0 0
    %1051 = vmatprep.subr.bf16.mxu0 0
    %1052 = vmatpush1.bf16.msra.mxu0 0
    %1053 = vmatprep.subr.bf16.mxu0 0
    %1054 = vmatpush1.bf16.msra.mxu0 0
    %1055 = vmatprep.subr.bf16.mxu0 0
    %1056 = vmatpush1.bf16.msra.mxu0 0
    %1057 = vmatprep.subr.bf16.mxu0 0
    %1058 = vmatpush1.bf16.msra.mxu0 0
    %1059 = vmatprep.subr.bf16.mxu0 0
    %1060 = vmatpush1.bf16.msra.mxu0 0
    %1061 = vmatprep.subr.bf16.mxu0 0
    %1062 = vmatpush1.bf16.msra.mxu0 0
    %1063 = vmatprep.subr.bf16.mxu0 0
    %1064 = vmatpush1.bf16.msra.mxu0 0
    %1065 = vmatprep.subr.bf16.mxu0 0
    %1066 = vmatpush1.bf16.msra.mxu0 0
    %1067 = vmatprep.mubr.bf16.mxu0 0
    %1068 = vmatmul.mubr.bf16.gmra.mrb[0].mxu0 %v1030
    %v1069 = vpop.f32.mrb[0].mxu0
    %v1070 = vadd.f32 %v1024, %v1069
    %v1071 = vpop.f32.mrb[0].mxu0
    %v1072 = vpop.f32.mrb[0].mxu0
    %v1073 = vpop.f32.mrb[0].mxu0
    %1074 = vdwg.mxu0
    %v1076 = vsel %vm983, %v148, 0
    %v1079 = vsel %vm251, %v982, 0
    %1081 = vmatprep.subr.bf16.mxu0 0
    %1082 = vmatpush1.bf16.msra.mxu0 %v981
    %1083 = vmatprep.subr.bf16.mxu0 0
    %1084 = vmatpush1.bf16.msra.mxu0 %v1079
    %1085 = vmatprep.subr.bf16.mxu0 0
    %1086 = vmatpush1.bf16.msra.mxu0 0
    %1087 = vmatprep.subr.bf16.mxu0 0
    %1088 = vmatpush1.bf16.msra.mxu0 0
    %1089 = vmatprep.subr.bf16.mxu0 0
    %1090 = vmatpush1.bf16.msra.mxu0 0
    %1091 = vmatprep.subr.bf16.mxu0 0
    %1092 = vmatpush1.bf16.msra.mxu0 0
    %1093 = vmatprep.subr.bf16.mxu0 0
    %1094 = vmatpush1.bf16.msra.mxu0 0
    %1095 = vmatprep.subr.bf16.mxu0 0
    %1096 = vmatpush1.bf16.msra.mxu0 0
    %1097 = vmatprep.subr.bf16.mxu0 0
    %1098 = vmatpush1.bf16.msra.mxu0 0
    %1099 = vmatprep.subr.bf16.mxu0 0
    %1100 = vmatpush1.bf16.msra.mxu0 0
    %1101 = vmatprep.subr.bf16.mxu0 0
    %1102 = vmatpush1.bf16.msra.mxu0 0
    %1103 = vmatprep.subr.bf16.mxu0 0
    %1104 = vmatpush1.bf16.msra.mxu0 0
    %1105 = vmatprep.subr.bf16.mxu0 0
    %1106 = vmatpush1.bf16.msra.mxu0 0
    %1107 = vmatprep.subr.bf16.mxu0 0
    %1108 = vmatpush1.bf16.msra.mxu0 0
    %1109 = vmatprep.subr.bf16.mxu0 0
    %1110 = vmatpush1.bf16.msra.mxu0 0
    %1111 = vmatprep.subr.bf16.mxu0 0
    %1112 = vmatpush1.bf16.msra.mxu0 0
    %1113 = vmatprep.mubr.bf16.mxu0 0
    %1114 = vmatmul.mubr.bf16.gmra.mrb[0].mxu0 %v1076
    %v1115 = vpop.f32.mrb[0].mxu0
    %v1116 = vadd.f32 0.0, %v1115
    %v1117 = vpop.f32.mrb[0].mxu0
    %v1118 = vpop.f32.mrb[0].mxu0
    %v1119 = vpop.f32.mrb[0].mxu0
    %1120 = vdwg.mxu0
    %v1121 = vadd.f32 %v1070, %v1116
    %1123 = vset.pattern.permute.xlu0 0
    %1124 = vperm.xlu0 %1123, %v149
    %v1125 = vpop.permute.xlu0 %1124
    %v1127 = vmul.f32 %v1121, %v1125
    %1129 = vset.pattern.permute.xlu0 0
    %1130 = vperm.xlu0 %1129, %v150
    %v1131 = vpop.permute.xlu0 %1130
    %v1133 = vadd.f32 %v1127, %v1131
    %vm1134 = vcmp.gt.f32.partialorder %v1133, 0.0
    %v1135 = vmul.f32 %v1133, 0.2
    %v1136 = vsel %vm1134, %v1133, %v1135
    %v1137 = vpack.c.bf16 %v1136, %v1136
    %v1139 = vsel %vm651, %v1137, 0
    %1141 = vmatprep.subr.bf16.mxu0 0
    %1142 = vmatpush1.bf16.msra.mxu0 %v104
    %1143 = vmatprep.subr.bf16.mxu0 0
    %1144 = vmatpush1.bf16.msra.mxu0 0
    %1145 = vmatprep.subr.bf16.mxu0 0
    %1146 = vmatpush1.bf16.msra.mxu0 0
    %1147 = vmatprep.subr.bf16.mxu0 0
    %1148 = vmatpush1.bf16.msra.mxu0 0
    %1149 = vmatprep.subr.bf16.mxu0 0
    %1150 = vmatpush1.bf16.msra.mxu0 0
    %1151 = vmatprep.subr.bf16.mxu0 0
    %1152 = vmatpush1.bf16.msra.mxu0 0
    %1153 = vmatprep.subr.bf16.mxu0 0
    %1154 = vmatpush1.bf16.msra.mxu0 0
    %1155 = vmatprep.subr.bf16.mxu0 0
    %1156 = vmatpush1.bf16.msra.mxu0 0
    %1157 = vmatprep.subr.bf16.mxu0 0
    %1158 = vmatpush1.bf16.msra.mxu0 0
    %1159 = vmatprep.subr.bf16.mxu0 0
    %1160 = vmatpush1.bf16.msra.mxu0 0
    %1161 = vmatprep.subr.bf16.mxu0 0
    %1162 = vmatpush1.bf16.msra.mxu0 0
    %1163 = vmatprep.subr.bf16.mxu0 0
    %1164 = vmatpush1.bf16.msra.mxu0 0
    %1165 = vmatprep.subr.bf16.mxu0 0
    %1166 = vmatpush1.bf16.msra.mxu0 0
    %1167 = vmatprep.subr.bf16.mxu0 0
    %1168 = vmatpush1.bf16.msra.mxu0 0
    %1169 = vmatprep.subr.bf16.mxu0 0
    %1170 = vmatpush1.bf16.msra.mxu0 0
    %1171 = vmatprep.subr.bf16.mxu0 0
    %1172 = vmatpush1.bf16.msra.mxu0 0
    %1173 = vmatprep.mubr.bf16.mxu0 0
    %1174 = vmatmul.mubr.bf16.gmra.mrb[0].mxu0 %v1139
    %v1175 = vpop.f32.mrb[0].mxu0
    %v1176 = vadd.f32 0.0, %v1175
    %v1177 = vpop.f32.mrb[0].mxu0
    %v1178 = vpop.f32.mrb[0].mxu0
    %v1179 = vpop.f32.mrb[0].mxu0
    %1180 = vdwg.mxu0
    %v1181 = vpack.c.bf16 %v1176, %v1176
    %1182 = vmatprep.subr.bf16.mxu0 0
    %1183 = vmatpush1.bf16.msra.mxu0 %v107
    %1184 = vmatprep.subr.bf16.mxu0 0
    %1185 = vmatpush1.bf16.msra.mxu0 0
    %1186 = vmatprep.subr.bf16.mxu0 0
    %1187 = vmatpush1.bf16.msra.mxu0 0
    %1188 = vmatprep.subr.bf16.mxu0 0
    %1189 = vmatpush1.bf16.msra.mxu0 0
    %1190 = vmatprep.subr.bf16.mxu0 0
    %1191 = vmatpush1.bf16.msra.mxu0 0
    %1192 = vmatprep.subr.bf16.mxu0 0
    %1193 = vmatpush1.bf16.msra.mxu0 0
    %1194 = vmatprep.subr.bf16.mxu0 0
    %1195 = vmatpush1.bf16.msra.mxu0 0
    %1196 = vmatprep.subr.bf16.mxu0 0
    %1197 = vmatpush1.bf16.msra.mxu0 0
    %1198 = vmatprep.subr.bf16.mxu0 0
    %1199 = vmatpush1.bf16.msra.mxu0 0
    %1200 = vmatprep.subr.bf16.mxu0 0
    %1201 = vmatpush1.bf16.msra.mxu0 0
    %1202 = vmatprep.subr.bf16.mxu0 0
    %1203 = vmatpush1.bf16.msra.mxu0 0
    %1204 = vmatprep.subr.bf16.mxu0 0
    %1205 = vmatpush1.bf16.msra.mxu0 0
    %1206 = vmatprep.subr.bf16.mxu0 0
    %1207 = vmatpush1.bf16.msra.mxu0 0
    %1208 = vmatprep.subr.bf16.mxu0 0
    %1209 = vmatpush1.bf16.msra.mxu0 0
    %1210 = vmatprep.subr.bf16.mxu0 0
    %1211 = vmatpush1.bf16.msra.mxu0 0
    %1212 = vmatprep.subr.bf16.mxu0 0
    %1213 = vmatpush1.bf16.msra.mxu0 0
    %1214 = vmatprep.mubr.bf16.mxu0 0
    %1215 = vmatmul.mubr.bf16.gmra.mrb[0].mxu0 %v1139
    %v1216 = vpop.f32.mrb[0].mxu0
    %v1217 = vadd.f32 0.0, %v1216
    %v1218 = vpop.f32.mrb[0].mxu0
    %v1219 = vpop.f32.mrb[0].mxu0
    %v1220 = vpop.f32.mrb[0].mxu0
    %1221 = vdwg.mxu0
    %v1222 = vpack.c.bf16 %v1217, %v1217
    %v1224 = vsel %vm241, %v152, 0
    %v1226 = vsel %vm251, %v1137, 0
    %1228 = vmatprep.subr.bf16.mxu0 0
    %1229 = vmatpush1.bf16.msra.mxu0 %v1226
    %1230 = vmatprep.subr.bf16.mxu0 0
    %1231 = vmatpush1.bf16.msra.mxu0 0
    %1232 = vmatprep.subr.bf16.mxu0 0
    %1233 = vmatpush1.bf16.msra.mxu0 0
    %1234 = vmatprep.subr.bf16.mxu0 0
    %1235 = vmatpush1.bf16.msra.mxu0 0
    %1236 = vmatprep.subr.bf16.mxu0 0
    %1237 = vmatpush1.bf16.msra.mxu0 0
    %1238 = vmatprep.subr.bf16.mxu0 0
    %1239 = vmatpush1.bf16.msra.mxu0 0
    %1240 = vmatprep.subr.bf16.mxu0 0
    %1241 = vmatpush1.bf16.msra.mxu0 0
    %1242 = vmatprep.subr.bf16.mxu0 0
    %1243 = vmatpush1.bf16.msra.mxu0 0
    %1244 = vmatprep.subr.bf16.mxu0 0
    %1245 = vmatpush1.bf16.msra.mxu0 0
    %1246 = vmatprep.subr.bf16.mxu0 0
    %1247 = vmatpush1.bf16.msra.mxu0 0
    %1248 = vmatprep.subr.bf16.mxu0 0
    %1249 = vmatpush1.bf16.msra.mxu0 0
    %1250 = vmatprep.subr.bf16.mxu0 0
    %1251 = vmatpush1.bf16.msra.mxu0 0
    %1252 = vmatprep.subr.bf16.mxu0 0
    %1253 = vmatpush1.bf16.msra.mxu0 0
    %1254 = vmatprep.subr.bf16.mxu0 0
    %1255 = vmatpush1.bf16.msra.mxu0 0
    %1256 = vmatprep.subr.bf16.mxu0 0
    %1257 = vmatpush1.bf16.msra.mxu0 0
    %1258 = vmatprep.subr.bf16.mxu0 0
    %1259 = vmatpush1.bf16.msra.mxu0 0
    %1260 = vmatprep.mubr.bf16.mxu0 0
    %1261 = vmatmul.mubr.bf16.gmra.mrb[0].mxu0 %v1224
    %v1262 = vpop.f32.mrb[0].mxu0
    %v1263 = vadd.f32 0.0, %v1262
    %v1264 = vpop.f32.mrb[0].mxu0
    %v1265 = vpop.f32.mrb[0].mxu0
    %v1266 = vpop.f32.mrb[0].mxu0
    %1267 = vdwg.mxu0
    %v1269 = vsel %vm241, %v151, 0
    %v1272 = vsel %vm251, %v1181, 0
    %1274 = vmatprep.subr.bf16.mxu0 0
    %1275 = vmatpush1.bf16.msra.mxu0 %v1272
    %1276 = vmatprep.subr.bf16.mxu0 0
    %1277 = vmatpush1.bf16.msra.mxu0 0
    %1278 = vmatprep.subr.bf16.mxu0 0
    %1279 = vmatpush1.bf16.msra.mxu0 0
    %1280 = vmatprep.subr.bf16.mxu0 0
    %1281 = vmatpush1.bf16.msra.mxu0 0
    %1282 = vmatprep.subr.bf16.mxu0 0
    %1283 = vmatpush1.bf16.msra.mxu0 0
    %1284 = vmatprep.subr.bf16.mxu0 0
    %1285 = vmatpush1.bf16.msra.mxu0 0
    %1286 = vmatprep.subr.bf16.mxu0 0
    %1287 = vmatpush1.bf16.msra.mxu0 0
    %1288 = vmatprep.subr.bf16.mxu0 0
    %1289 = vmatpush1.bf16.msra.mxu0 0
    %1290 = vmatprep.subr.bf16.mxu0 0
    %1291 = vmatpush1.bf16.msra.mxu0 0
    %1292 = vmatprep.subr.bf16.mxu0 0
    %1293 = vmatpush1.bf16.msra.mxu0 0
    %1294 = vmatprep.subr.bf16.mxu0 0
    %1295 = vmatpush1.bf16.msra.mxu0 0
    %1296 = vmatprep.subr.bf16.mxu0 0
    %1297 = vmatpush1.bf16.msra.mxu0 0
    %1298 = vmatprep.subr.bf16.mxu0 0
    %1299 = vmatpush1.bf16.msra.mxu0 0
    %1300 = vmatprep.subr.bf16.mxu0 0
    %1301 = vmatpush1.bf16.msra.mxu0 0
    %1302 = vmatprep.subr.bf16.mxu0 0
    %1303 = vmatpush1.bf16.msra.mxu0 0
    %1304 = vmatprep.subr.bf16.mxu0 0
    %1305 = vmatpush1.bf16.msra.mxu0 0
    %1306 = vmatprep.mubr.bf16.mxu0 0
    %1307 = vmatmul.mubr.bf16.gmra.mrb[0].mxu0 %v1269
    %v1308 = vpop.f32.mrb[0].mxu0
    %v1309 = vadd.f32 %v1263, %v1308
    %v1310 = vpop.f32.mrb[0].mxu0
    %v1311 = vpop.f32.mrb[0].mxu0
    %v1312 = vpop.f32.mrb[0].mxu0
    %1313 = vdwg.mxu0
    %v1315 = vsel %vm241, %v153, 0
    %v1318 = vsel %vm251, %v1222, 0
    %1320 = vmatprep.subr.bf16.mxu0 0
    %1321 = vmatpush1.bf16.msra.mxu0 %v1318
    %1322 = vmatprep.subr.bf16.mxu0 0
    %1323 = vmatpush1.bf16.msra.mxu0 0
    %1324 = vmatprep.subr.bf16.mxu0 0
    %1325 = vmatpush1.bf16.msra.mxu0 0
    %1326 = vmatprep.subr.bf16.mxu0 0
    %1327 = vmatpush1.bf16.msra.mxu0 0
    %1328 = vmatprep.subr.bf16.mxu0 0
    %1329 = vmatpush1.bf16.msra.mxu0 0
    %1330 = vmatprep.subr.bf16.mxu0 0
    %1331 = vmatpush1.bf16.msra.mxu0 0
    %1332 = vmatprep.subr.bf16.mxu0 0
    %1333 = vmatpush1.bf16.msra.mxu0 0
    %1334 = vmatprep.subr.bf16.mxu0 0
    %1335 = vmatpush1.bf16.msra.mxu0 0
    %1336 = vmatprep.subr.bf16.mxu0 0
    %1337 = vmatpush1.bf16.msra.mxu0 0
    %1338 = vmatprep.subr.bf16.mxu0 0
    %1339 = vmatpush1.bf16.msra.mxu0 0
    %1340 = vmatprep.subr.bf16.mxu0 0
    %1341 = vmatpush1.bf16.msra.mxu0 0
    %1342 = vmatprep.subr.bf16.mxu0 0
    %1343 = vmatpush1.bf16.msra.mxu0 0
    %1344 = vmatprep.subr.bf16.mxu0 0
    %1345 = vmatpush1.bf16.msra.mxu0 0
    %1346 = vmatprep.subr.bf16.mxu0 0
    %1347 = vmatpush1.bf16.msra.mxu0 0
    %1348 = vmatprep.subr.bf16.mxu0 0
    %1349 = vmatpush1.bf16.msra.mxu0 0
    %1350 = vmatprep.subr.bf16.mxu0 0
    %1351 = vmatpush1.bf16.msra.mxu0 0
    %1352 = vmatprep.mubr.bf16.mxu0 0
    %1353 = vmatmul.mubr.bf16.gmra.mrb[0].mxu0 %v1315
    %v1354 = vpop.f32.mrb[0].mxu0
    %v1355 = vadd.f32 0.0, %v1354
    %v1356 = vpop.f32.mrb[0].mxu0
    %v1357 = vpop.f32.mrb[0].mxu0
    %v1358 = vpop.f32.mrb[0].mxu0
    %1359 = vdwg.mxu0
    %v1360 = vadd.f32 %v1309, %v1355
    %1362 = vset.pattern.permute.xlu0 0
    %1363 = vperm.xlu0 %1362, %v154
    %v1364 = vpop.permute.xlu0 %1363
    %v1366 = vmul.f32 %v1360, %v1364
    %1368 = vset.pattern.permute.xlu0 0
    %1369 = vperm.xlu0 %1368, %v155
    %v1370 = vpop.permute.xlu0 %1369
    %v1372 = vadd.f32 %v1366, %v1370
    %vm1373 = vcmp.gt.f32.partialorder %v1372, 0.0
    %v1374 = vmul.f32 %v1372, 0.2
    %v1375 = vsel %vm1373, %v1372, %v1374
    %v1376 = vpack.c.bf16 %v1375, %v1375
    %v1379 = vunpack.c.l.b16 %v124
    %v1380 = vunpack.c.l.b16 %v125
    %v1381 = vpack.c.b16 %v1380, %v1379
    %v1384 = vsel %vm651, %v1376, 0
    %1386 = vmatprep.subr.bf16.mxu0 0
    %1387 = vmatpush1.bf16.msra.mxu0 %v1381
    %1388 = vmatprep.subr.bf16.mxu0 0
    %1389 = vmatpush1.bf16.msra.mxu0 0
    %1390 = vmatprep.subr.bf16.mxu0 0
    %1391 = vmatpush1.bf16.msra.mxu0 0
    %1392 = vmatprep.subr.bf16.mxu0 0
    %1393 = vmatpush1.bf16.msra.mxu0 0
    %1394 = vmatprep.subr.bf16.mxu0 0
    %1395 = vmatpush1.bf16.msra.mxu0 0
    %1396 = vmatprep.subr.bf16.mxu0 0
    %1397 = vmatpush1.bf16.msra.mxu0 0
    %1398 = vmatprep.subr.bf16.mxu0 0
    %1399 = vmatpush1.bf16.msra.mxu0 0
    %1400 = vmatprep.subr.bf16.mxu0 0
    %1401 = vmatpush1.bf16.msra.mxu0 0
    %1402 = vmatprep.subr.bf16.mxu0 0
    %1403 = vmatpush1.bf16.msra.mxu0 0
    %1404 = vmatprep.subr.bf16.mxu0 0
    %1405 = vmatpush1.bf16.msra.mxu0 0
    %1406 = vmatprep.subr.bf16.mxu0 0
    %1407 = vmatpush1.bf16.msra.mxu0 0
    %1408 = vmatprep.subr.bf16.mxu0 0
    %1409 = vmatpush1.bf16.msra.mxu0 0
    %1410 = vmatprep.subr.bf16.mxu0 0
    %1411 = vmatpush1.bf16.msra.mxu0 0
    %1412 = vmatprep.subr.bf16.mxu0 0
    %1413 = vmatpush1.bf16.msra.mxu0 0
    %1414 = vmatprep.subr.bf16.mxu0 0
    %1415 = vmatpush1.bf16.msra.mxu0 0
    %1416 = vmatprep.subr.bf16.mxu0 0
    %1417 = vmatpush1.bf16.msra.mxu0 0
    %1418 = vmatprep.mubr.bf16.mxu0 0
    %1419 = vmatmul.mubr.bf16.gmra.mrb[0].mxu0 %v1384
    %v1420 = vpop.f32.mrb[0].mxu0
    %v1421 = vadd.f32 0.0, %v1420
    %v1422 = vpop.f32.mrb[0].mxu0
    %v1423 = vpop.f32.mrb[0].mxu0
    %v1424 = vpop.f32.mrb[0].mxu0
    %1425 = vdwg.mxu0
    %v1426 = vld [vmem:[%s1] sm:$0xf]
    %v1427 = vpack.c.bf16 %v1426, %v1421
    %vm1428 = vcmask 261120
    %v1430 = vsel %vm1428, %v1427, 0
    %1432 = vmatprep.subr.bf16.mxu0 0
    %1433 = vmatpush1.bf16.msra.mxu0 %v104
    %1434 = vmatprep.subr.bf16.mxu0 0
    %1435 = vmatpush1.bf16.msra.mxu0 %v116
    %1436 = vmatprep.subr.bf16.mxu0 0
    %1437 = vmatpush1.bf16.msra.mxu0 0
    %1438 = vmatprep.subr.bf16.mxu0 0
    %1439 = vmatpush1.bf16.msra.mxu0 0
    %1440 = vmatprep.subr.bf16.mxu0 0
    %1441 = vmatpush1.bf16.msra.mxu0 0
    %1442 = vmatprep.subr.bf16.mxu0 0
    %1443 = vmatpush1.bf16.msra.mxu0 0
    %1444 = vmatprep.subr.bf16.mxu0 0
    %1445 = vmatpush1.bf16.msra.mxu0 0
    %1446 = vmatprep.subr.bf16.mxu0 0
    %1447 = vmatpush1.bf16.msra.mxu0 0
    %1448 = vmatprep.subr.bf16.mxu0 0
    %1449 = vmatpush1.bf16.msra.mxu0 0
    %1450 = vmatprep.subr.bf16.mxu0 0
    %1451 = vmatpush1.bf16.msra.mxu0 0
    %1452 = vmatprep.subr.bf16.mxu0 0
    %1453 = vmatpush1.bf16.msra.mxu0 0
    %1454 = vmatprep.subr.bf16.mxu0 0
    %1455 = vmatpush1.bf16.msra.mxu0 0
    %1456 = vmatprep.subr.bf16.mxu0 0
    %1457 = vmatpush1.bf16.msra.mxu0 0
    %1458 = vmatprep.subr.bf16.mxu0 0
    %1459 = vmatpush1.bf16.msra.mxu0 0
    %1460 = vmatprep.subr.bf16.mxu0 0
    %1461 = vmatpush1.bf16.msra.mxu0 0
    %1462 = vmatprep.subr.bf16.mxu0 0
    %1463 = vmatpush1.bf16.msra.mxu0 0
    %1464 = vmatprep.mubr.bf16.mxu0 0
    %1465 = vmatmul.mubr.bf16.gmra.mrb[0].mxu0 %v1430
    %v1466 = vpop.f32.mrb[0].mxu0
    %v1467 = vadd.f32 0.0, %v1466
    %v1468 = vpop.f32.mrb[0].mxu0
    %v1469 = vpop.f32.mrb[0].mxu0
    %v1470 = vadd.f32 0.0, %v1469
    %v1471 = vpop.f32.mrb[0].mxu0
    %1472 = vdwg.mxu0
    %v1473 = vpack.c.bf16 %v1470, %v1467
    %1474 = vmatprep.subr.bf16.mxu0 0
    %1475 = vmatpush1.bf16.msra.mxu0 %v107
    %1476 = vmatprep.subr.bf16.mxu0 0
    %1477 = vmatpush1.bf16.msra.mxu0 %v121
    %1478 = vmatprep.subr.bf16.mxu0 0
    %1479 = vmatpush1.bf16.msra.mxu0 0
    %1480 = vmatprep.subr.bf16.mxu0 0
    %1481 = vmatpush1.bf16.msra.mxu0 0
    %1482 = vmatprep.subr.bf16.mxu0 0
    %1483 = vmatpush1.bf16.msra.mxu0 0
    %1484 = vmatprep.subr.bf16.mxu0 0
    %1485 = vmatpush1.bf16.msra.mxu0 0
    %1486 = vmatprep.subr.bf16.mxu0 0
    %1487 = vmatpush1.bf16.msra.mxu0 0
    %1488 = vmatprep.subr.bf16.mxu0 0
    %1489 = vmatpush1.bf16.msra.mxu0 0
    %1490 = vmatprep.subr.bf16.mxu0 0
    %1491 = vmatpush1.bf16.msra.mxu0 0
    %1492 = vmatprep.subr.bf16.mxu0 0
    %1493 = vmatpush1.bf16.msra.mxu0 0
    %1494 = vmatprep.subr.bf16.mxu0 0
    %1495 = vmatpush1.bf16.msra.mxu0 0
    %1496 = vmatprep.subr.bf16.mxu0 0
    %1497 = vmatpush1.bf16.msra.mxu0 0
    %1498 = vmatprep.subr.bf16.mxu0 0
    %1499 = vmatpush1.bf16.msra.mxu0 0
    %1500 = vmatprep.subr.bf16.mxu0 0
    %1501 = vmatpush1.bf16.msra.mxu0 0
    %1502 = vmatprep.subr.bf16.mxu0 0
    %1503 = vmatpush1.bf16.msra.mxu0 0
    %1504 = vmatprep.subr.bf16.mxu0 0
    %1505 = vmatpush1.bf16.msra.mxu0 0
    %1506 = vmatprep.mubr.bf16.mxu0 0
    %1507 = vmatmul.mubr.bf16.gmra.mrb[0].mxu0 %v1430
    %v1508 = vpop.f32.mrb[0].mxu0
    %v1509 = vadd.f32 0.0, %v1508
    %v1510 = vpop.f32.mrb[0].mxu0
    %v1511 = vpop.f32.mrb[0].mxu0
    %v1512 = vadd.f32 0.0, %v1511
    %v1513 = vpop.f32.mrb[0].mxu0
    %1514 = vdwg.mxu0
    %v1515 = vpack.c.bf16 %v1512, %v1509
    %vm1516 = vcmask 97280
    %v1518 = vsel %vm1516, %v157, 0
    %vm1520 = vcmask 1045504
    %v1521 = vsel %vm1520, %v1427, 0
    %1523 = vmatprep.subr.bf16.mxu0 0
    %1524 = vmatpush1.bf16.msra.mxu0 %v1521
    %1525 = vmatprep.subr.bf16.mxu0 0
    %1526 = vmatpush1.bf16.msra.mxu0 0
    %1527 = vmatprep.subr.bf16.mxu0 0
    %1528 = vmatpush1.bf16.msra.mxu0 0
    %1529 = vmatprep.subr.bf16.mxu0 0
    %1530 = vmatpush1.bf16.msra.mxu0 0
    %1531 = vmatprep.subr.bf16.mxu0 0
    %1532 = vmatpush1.bf16.msra.mxu0 0
    %1533 = vmatprep.subr.bf16.mxu0 0
    %1534 = vmatpush1.bf16.msra.mxu0 0
    %1535 = vmatprep.subr.bf16.mxu0 0
    %1536 = vmatpush1.bf16.msra.mxu0 0
    %1537 = vmatprep.subr.bf16.mxu0 0
    %1538 = vmatpush1.bf16.msra.mxu0 0
    %1539 = vmatprep.subr.bf16.mxu0 0
    %1540 = vmatpush1.bf16.msra.mxu0 0
    %1541 = vmatprep.subr.bf16.mxu0 0
    %1542 = vmatpush1.bf16.msra.mxu0 0
    %1543 = vmatprep.subr.bf16.mxu0 0
    %1544 = vmatpush1.bf16.msra.mxu0 0
    %1545 = vmatprep.subr.bf16.mxu0 0
    %1546 = vmatpush1.bf16.msra.mxu0 0
    %1547 = vmatprep.subr.bf16.mxu0 0
    %1548 = vmatpush1.bf16.msra.mxu0 0
    %1549 = vmatprep.subr.bf16.mxu0 0
    %1550 = vmatpush1.bf16.msra.mxu0 0
    %1551 = vmatprep.subr.bf16.mxu0 0
    %1552 = vmatpush1.bf16.msra.mxu0 0
    %1553 = vmatprep.subr.bf16.mxu0 0
    %1554 = vmatpush1.bf16.msra.mxu0 0
    %1555 = vmatprep.mubr.bf16.mxu0 0
    %1556 = vmatmul.mubr.bf16.gmra.mrb[0].mxu0 %v1518
    %v1557 = vpop.f32.mrb[0].mxu0
    %v1558 = vadd.f32 0.0, %v1557
    %v1559 = vpop.f32.mrb[0].mxu0
    %v1560 = vpop.f32.mrb[0].mxu0
    %v1561 = vpop.f32.mrb[0].mxu0
    %1562 = vdwg.mxu0
    %v1564 = vsel %vm1516, %v156, 0
    %v1567 = vsel %vm1520, %v1473, 0
    %1569 = vmatprep.subr.bf16.mxu0 0
    %1570 = vmatpush1.bf16.msra.mxu0 %v1567
    %1571 = vmatprep.subr.bf16.mxu0 0
    %1572 = vmatpush1.bf16.msra.mxu0 0
    %1573 = vmatprep.subr.bf16.mxu0 0
    %1574 = vmatpush1.bf16.msra.mxu0 0
    %1575 = vmatprep.subr.bf16.mxu0 0
    %1576 = vmatpush1.bf16.msra.mxu0 0
    %1577 = vmatprep.subr.bf16.mxu0 0
    %1578 = vmatpush1.bf16.msra.mxu0 0
    %1579 = vmatprep.subr.bf16.mxu0 0
    %1580 = vmatpush1.bf16.msra.mxu0 0
    %1581 = vmatprep.subr.bf16.mxu0 0
    %1582 = vmatpush1.bf16.msra.mxu0 0
    %1583 = vmatprep.subr.bf16.mxu0 0
    %1584 = vmatpush1.bf16.msra.mxu0 0
    %1585 = vmatprep.subr.bf16.mxu0 0
    %1586 = vmatpush1.bf16.msra.mxu0 0
    %1587 = vmatprep.subr.bf16.mxu0 0
    %1588 = vmatpush1.bf16.msra.mxu0 0
    %1589 = vmatprep.subr.bf16.mxu0 0
    %1590 = vmatpush1.bf16.msra.mxu0 0
    %1591 = vmatprep.subr.bf16.mxu0 0
    %1592 = vmatpush1.bf16.msra.mxu0 0
    %1593 = vmatprep.subr.bf16.mxu0 0
    %1594 = vmatpush1.bf16.msra.mxu0 0
    %1595 = vmatprep.subr.bf16.mxu0 0
    %1596 = vmatpush1.bf16.msra.mxu0 0
    %1597 = vmatprep.subr.bf16.mxu0 0
    %1598 = vmatpush1.bf16.msra.mxu0 0
    %1599 = vmatprep.subr.bf16.mxu0 0
    %1600 = vmatpush1.bf16.msra.mxu0 0
    %1601 = vmatprep.mubr.bf16.mxu0 0
    %1602 = vmatmul.mubr.bf16.gmra.mrb[0].mxu0 %v1564
    %v1603 = vpop.f32.mrb[0].mxu0
    %v1604 = vadd.f32 %v1558, %v1603
    %v1605 = vpop.f32.mrb[0].mxu0
    %v1606 = vpop.f32.mrb[0].mxu0
    %v1607 = vpop.f32.mrb[0].mxu0
    %1608 = vdwg.mxu0
    %v1610 = vsel %vm1516, %v158, 0
    %v1613 = vsel %vm1520, %v1515, 0
    %1615 = vmatprep.subr.bf16.mxu0 0
    %1616 = vmatpush1.bf16.msra.mxu0 %v1613
    %1617 = vmatprep.subr.bf16.mxu0 0
    %1618 = vmatpush1.bf16.msra.mxu0 0
    %1619 = vmatprep.subr.bf16.mxu0 0
    %1620 = vmatpush1.bf16.msra.mxu0 0
    %1621 = vmatprep.subr.bf16.mxu0 0
    %1622 = vmatpush1.bf16.msra.mxu0 0
    %1623 = vmatprep.subr.bf16.mxu0 0
    %1624 = vmatpush1.bf16.msra.mxu0 0
    %1625 = vmatprep.subr.bf16.mxu0 0
    %1626 = vmatpush1.bf16.msra.mxu0 0
    %1627 = vmatprep.subr.bf16.mxu0 0
    %1628 = vmatpush1.bf16.msra.mxu0 0
    %1629 = vmatprep.subr.bf16.mxu0 0
    %1630 = vmatpush1.bf16.msra.mxu0 0
    %1631 = vmatprep.subr.bf16.mxu0 0
    %1632 = vmatpush1.bf16.msra.mxu0 0
    %1633 = vmatprep.subr.bf16.mxu0 0
    %1634 = vmatpush1.bf16.msra.mxu0 0
    %1635 = vmatprep.subr.bf16.mxu0 0
    %1636 = vmatpush1.bf16.msra.mxu0 0
    %1637 = vmatprep.subr.bf16.mxu0 0
    %1638 = vmatpush1.bf16.msra.mxu0 0
    %1639 = vmatprep.subr.bf16.mxu0 0
    %1640 = vmatpush1.bf16.msra.mxu0 0
    %1641 = vmatprep.subr.bf16.mxu0 0
    %1642 = vmatpush1.bf16.msra.mxu0 0
    %1643 = vmatprep.subr.bf16.mxu0 0
    %1644 = vmatpush1.bf16.msra.mxu0 0
    %1645 = vmatprep.subr.bf16.mxu0 0
    %1646 = vmatpush1.bf16.msra.mxu0 0
    %1647 = vmatprep.mubr.bf16.mxu0 0
    %1648 = vmatmul.mubr.bf16.gmra.mrb[0].mxu0 %v1610
    %v1649 = vpop.f32.mrb[0].mxu0
    %v1650 = vadd.f32 0.0, %v1649
    %v1651 = vpop.f32.mrb[0].mxu0
    %v1652 = vpop.f32.mrb[0].mxu0
    %v1653 = vpop.f32.mrb[0].mxu0
    %1654 = vdwg.mxu0
    %v1655 = vadd.f32 %v1604, %v1650
    %1657 = vset.pattern.permute.xlu0 0
    %1658 = vperm.xlu0 %1657, %v159
    %v1659 = vpop.permute.xlu0 %1658
    %v1661 = vmul.f32 %v1655, %v1659
    %1663 = vset.pattern.permute.xlu0 0
    %1664 = vperm.xlu0 %1663, %v160
    %v1665 = vpop.permute.xlu0 %1664
    %v1667 = vadd.f32 %v1661, %v1665
    %vm1668 = vcmp.gt.f32.partialorder %v1667, 0.0
    %v1669 = vmul.f32 %v1667, 0.2
    %v1670 = vsel %vm1668, %v1667, %v1669
    %v1671 = vpack.c.bf16 %v1670, %v1670
    %v1673 = vsel %vm1428, %v1671, 0
    %1675 = vmatprep.subr.bf16.mxu0 0
    %1676 = vmatpush1.bf16.msra.mxu0 %v104
    %1677 = vmatprep.subr.bf16.mxu0 0
    %1678 = vmatpush1.bf16.msra.mxu0 %v116
    %1679 = vmatprep.subr.bf16.mxu0 0
    %1680 = vmatpush1.bf16.msra.mxu0 0
    %1681 = vmatprep.subr.bf16.mxu0 0
    %1682 = vmatpush1.bf16.msra.mxu0 0
    %1683 = vmatprep.subr.bf16.mxu0 0
    %1684 = vmatpush1.bf16.msra.mxu0 0
    %1685 = vmatprep.subr.bf16.mxu0 0
    %1686 = vmatpush1.bf16.msra.mxu0 0
    %1687 = vmatprep.subr.bf16.mxu0 0
    %1688 = vmatpush1.bf16.msra.mxu0 0
    %1689 = vmatprep.subr.bf16.mxu0 0
    %1690 = vmatpush1.bf16.msra.mxu0 0
    %1691 = vmatprep.subr.bf16.mxu0 0
    %1692 = vmatpush1.bf16.msra.mxu0 0
    %1693 = vmatprep.subr.bf16.mxu0 0
    %1694 = vmatpush1.bf16.msra.mxu0 0
    %1695 = vmatprep.subr.bf16.mxu0 0
    %1696 = vmatpush1.bf16.msra.mxu0 0
    %1697 = vmatprep.subr.bf16.mxu0 0
    %1698 = vmatpush1.bf16.msra.mxu0 0
    %1699 = vmatprep.subr.bf16.mxu0 0
    %1700 = vmatpush1.bf16.msra.mxu0 0
    %1701 = vmatprep.subr.bf16.mxu0 0
    %1702 = vmatpush1.bf16.msra.mxu0 0
    %1703 = vmatprep.subr.bf16.mxu0 0
    %1704 = vmatpush1.bf16.msra.mxu0 0
    %1705 = vmatprep.subr.bf16.mxu0 0
    %1706 = vmatpush1.bf16.msra.mxu0 0
    %1707 = vmatprep.mubr.bf16.mxu0 0
    %1708 = vmatmul.mubr.bf16.gmra.mrb[0].mxu0 %v1673
    %v1709 = vpop.f32.mrb[0].mxu0
    %v1710 = vadd.f32 0.0, %v1709
    %v1711 = vpop.f32.mrb[0].mxu0
    %v1712 = vpop.f32.mrb[0].mxu0
    %v1713 = vpop.f32.mrb[0].mxu0
    %1714 = vdwg.mxu0
    %v1715 = vpack.c.bf16 %v1710, %v1710
    %1716 = vmatprep.subr.bf16.mxu0 0
    %1717 = vmatpush1.bf16.msra.mxu0 %v107
    %1718 = vmatprep.subr.bf16.mxu0 0
    %1719 = vmatpush1.bf16.msra.mxu0 %v121
    %1720 = vmatprep.subr.bf16.mxu0 0
    %1721 = vmatpush1.bf16.msra.mxu0 0
    %1722 = vmatprep.subr.bf16.mxu0 0
    %1723 = vmatpush1.bf16.msra.mxu0 0
    %1724 = vmatprep.subr.bf16.mxu0 0
    %1725 = vmatpush1.bf16.msra.mxu0 0
    %1726 = vmatprep.subr.bf16.mxu0 0
    %1727 = vmatpush1.bf16.msra.mxu0 0
    %1728 = vmatprep.subr.bf16.mxu0 0
    %1729 = vmatpush1.bf16.msra.mxu0 0
    %1730 = vmatprep.subr.bf16.mxu0 0
    %1731 = vmatpush1.bf16.msra.mxu0 0
    %1732 = vmatprep.subr.bf16.mxu0 0
    %1733 = vmatpush1.bf16.msra.mxu0 0
    %1734 = vmatprep.subr.bf16.mxu0 0
    %1735 = vmatpush1.bf16.msra.mxu0 0
    %1736 = vmatprep.subr.bf16.mxu0 0
    %1737 = vmatpush1.bf16.msra.mxu0 0
    %1738 = vmatprep.subr.bf16.mxu0 0
    %1739 = vmatpush1.bf16.msra.mxu0 0
    %1740 = vmatprep.subr.bf16.mxu0 0
    %1741 = vmatpush1.bf16.msra.mxu0 0
    %1742 = vmatprep.subr.bf16.mxu0 0
    %1743 = vmatpush1.bf16.msra.mxu0 0
    %1744 = vmatprep.subr.bf16.mxu0 0
    %1745 = vmatpush1.bf16.msra.mxu0 0
    %1746 = vmatprep.subr.bf16.mxu0 0
    %1747 = vmatpush1.bf16.msra.mxu0 0
    %1748 = vmatprep.mubr.bf16.mxu0 0
    %1749 = vmatmul.mubr.bf16.gmra.mrb[0].mxu0 %v1673
    %v1750 = vpop.f32.mrb[0].mxu0
    %v1751 = vadd.f32 0.0, %v1750
    %v1752 = vpop.f32.mrb[0].mxu0
    %v1753 = vpop.f32.mrb[0].mxu0
    %v1754 = vpop.f32.mrb[0].mxu0
    %1755 = vdwg.mxu0
    %v1756 = vpack.c.bf16 %v1751, %v1751
    %v1758 = vsel %vm176, %v162, 0
    %v1760 = vsel %vm183, %v1671, 0
    %1762 = vmatprep.subr.bf16.mxu0 0
    %1763 = vmatpush1.bf16.msra.mxu0 %v1760
    %1764 = vmatprep.subr.bf16.mxu0 0
    %1765 = vmatpush1.bf16.msra.mxu0 0
    %1766 = vmatprep.subr.bf16.mxu0 0
    %1767 = vmatpush1.bf16.msra.mxu0 0
    %1768 = vmatprep.subr.bf16.mxu0 0
    %1769 = vmatpush1.bf16.msra.mxu0 0
    %1770 = vmatprep.subr.bf16.mxu0 0
    %1771 = vmatpush1.bf16.msra.mxu0 0
    %1772 = vmatprep.subr.bf16.mxu0 0
    %1773 = vmatpush1.bf16.msra.mxu0 0
    %1774 = vmatprep.subr.bf16.mxu0 0
    %1775 = vmatpush1.bf16.msra.mxu0 0
    %1776 = vmatprep.subr.bf16.mxu0 0
    %1777 = vmatpush1.bf16.msra.mxu0 0
    %1778 = vmatprep.subr.bf16.mxu0 0
    %1779 = vmatpush1.bf16.msra.mxu0 0
    %1780 = vmatprep.subr.bf16.mxu0 0
    %1781 = vmatpush1.bf16.msra.mxu0 0
    %1782 = vmatprep.subr.bf16.mxu0 0
    %1783 = vmatpush1.bf16.msra.mxu0 0
    %1784 = vmatprep.subr.bf16.mxu0 0
    %1785 = vmatpush1.bf16.msra.mxu0 0
    %1786 = vmatprep.subr.bf16.mxu0 0
    %1787 = vmatpush1.bf16.msra.mxu0 0
    %1788 = vmatprep.subr.bf16.mxu0 0
    %1789 = vmatpush1.bf16.msra.mxu0 0
    %1790 = vmatprep.subr.bf16.mxu0 0
    %1791 = vmatpush1.bf16.msra.mxu0 0
    %1792 = vmatprep.subr.bf16.mxu0 0
    %1793 = vmatpush1.bf16.msra.mxu0 0
    %1794 = vmatprep.mubr.bf16.mxu0 0
    %1795 = vmatmul.mubr.bf16.gmra.mrb[0].mxu0 %v1758
    %v1796 = vpop.f32.mrb[0].mxu0
    %v1797 = vadd.f32 0.0, %v1796
    %v1798 = vpop.f32.mrb[0].mxu0
    %v1799 = vpop.f32.mrb[0].mxu0
    %v1800 = vpop.f32.mrb[0].mxu0
    %1801 = vdwg.mxu0
    %v1803 = vsel %vm176, %v161, 0
    %v1806 = vsel %vm183, %v1715, 0
    %1808 = vmatprep.subr.bf16.mxu0 0
    %1809 = vmatpush1.bf16.msra.mxu0 %v1806
    %1810 = vmatprep.subr.bf16.mxu0 0
    %1811 = vmatpush1.bf16.msra.mxu0 0
    %1812 = vmatprep.subr.bf16.mxu0 0
    %1813 = vmatpush1.bf16.msra.mxu0 0
    %1814 = vmatprep.subr.bf16.mxu0 0
    %1815 = vmatpush1.bf16.msra.mxu0 0
    %1816 = vmatprep.subr.bf16.mxu0 0
    %1817 = vmatpush1.bf16.msra.mxu0 0
    %1818 = vmatprep.subr.bf16.mxu0 0
    %1819 = vmatpush1.bf16.msra.mxu0 0
    %1820 = vmatprep.subr.bf16.mxu0 0
    %1821 = vmatpush1.bf16.msra.mxu0 0
    %1822 = vmatprep.subr.bf16.mxu0 0
    %1823 = vmatpush1.bf16.msra.mxu0 0
    %1824 = vmatprep.subr.bf16.mxu0 0
    %1825 = vmatpush1.bf16.msra.mxu0 0
    %1826 = vmatprep.subr.bf16.mxu0 0
    %1827 = vmatpush1.bf16.msra.mxu0 0
    %1828 = vmatprep.subr.bf16.mxu0 0
    %1829 = vmatpush1.bf16.msra.mxu0 0
    %1830 = vmatprep.subr.bf16.mxu0 0
    %1831 = vmatpush1.bf16.msra.mxu0 0
    %1832 = vmatprep.subr.bf16.mxu0 0
    %1833 = vmatpush1.bf16.msra.mxu0 0
    %1834 = vmatprep.subr.bf16.mxu0 0
    %1835 = vmatpush1.bf16.msra.mxu0 0
    %1836 = vmatprep.subr.bf16.mxu0 0
    %1837 = vmatpush1.bf16.msra.mxu0 0
    %1838 = vmatprep.subr.bf16.mxu0 0
    %1839 = vmatpush1.bf16.msra.mxu0 0
    %1840 = vmatprep.mubr.bf16.mxu0 0
    %1841 = vmatmul.mubr.bf16.gmra.mrb[0].mxu0 %v1803
    %v1842 = vpop.f32.mrb[0].mxu0
    %v1843 = vadd.f32 %v1797, %v1842
    %v1844 = vpop.f32.mrb[0].mxu0
    %v1845 = vpop.f32.mrb[0].mxu0
    %v1846 = vpop.f32.mrb[0].mxu0
    %1847 = vdwg.mxu0
    %v1849 = vsel %vm176, %v163, 0
    %v1852 = vsel %vm183, %v1756, 0
    %1854 = vmatprep.subr.bf16.mxu0 0
    %1855 = vmatpush1.bf16.msra.mxu0 %v1852
    %1856 = vmatprep.subr.bf16.mxu0 0
    %1857 = vmatpush1.bf16.msra.mxu0 0
    %1858 = vmatprep.subr.bf16.mxu0 0
    %1859 = vmatpush1.bf16.msra.mxu0 0
    %1860 = vmatprep.subr.bf16.mxu0 0
    %1861 = vmatpush1.bf16.msra.mxu0 0
    %1862 = vmatprep.subr.bf16.mxu0 0
    %1863 = vmatpush1.bf16.msra.mxu0 0
    %1864 = vmatprep.subr.bf16.mxu0 0
    %1865 = vmatpush1.bf16.msra.mxu0 0
    %1866 = vmatprep.subr.bf16.mxu0 0
    %1867 = vmatpush1.bf16.msra.mxu0 0
    %1868 = vmatprep.subr.bf16.mxu0 0
    %1869 = vmatpush1.bf16.msra.mxu0 0
    %1870 = vmatprep.subr.bf16.mxu0 0
    %1871 = vmatpush1.bf16.msra.mxu0 0
    %1872 = vmatprep.subr.bf16.mxu0 0
    %1873 = vmatpush1.bf16.msra.mxu0 0
    %1874 = vmatprep.subr.bf16.mxu0 0
    %1875 = vmatpush1.bf16.msra.mxu0 0
    %1876 = vmatprep.subr.bf16.mxu0 0
    %1877 = vmatpush1.bf16.msra.mxu0 0
    %1878 = vmatprep.subr.bf16.mxu0 0
    %1879 = vmatpush1.bf16.msra.mxu0 0
    %1880 = vmatprep.subr.bf16.mxu0 0
    %1881 = vmatpush1.bf16.msra.mxu0 0
    %1882 = vmatprep.subr.bf16.mxu0 0
    %1883 = vmatpush1.bf16.msra.mxu0 0
    %1884 = vmatprep.subr.bf16.mxu0 0
    %1885 = vmatpush1.bf16.msra.mxu0 0
    %1886 = vmatprep.mubr.bf16.mxu0 0
    %1887 = vmatmul.mubr.bf16.gmra.mrb[0].mxu0 %v1849
    %v1888 = vpop.f32.mrb[0].mxu0
    %v1889 = vadd.f32 0.0, %v1888
    %v1890 = vpop.f32.mrb[0].mxu0
    %v1891 = vpop.f32.mrb[0].mxu0
    %v1892 = vpop.f32.mrb[0].mxu0
    %1893 = vdwg.mxu0
    %v1894 = vadd.f32 %v1843, %v1889
    %1896 = vset.pattern.permute.xlu0 0
    %1897 = vperm.xlu0 %1896, %v164
    %v1898 = vpop.permute.xlu0 %1897
    %v1900 = vmul.f32 %v1894, %v1898
    %1902 = vset.pattern.permute.xlu0 0
    %1903 = vperm.xlu0 %1902, %v165
    %v1904 = vpop.permute.xlu0 %1903
    %v1906 = vadd.f32 %v1900, %v1904
    %vm1907 = vcmp.gt.f32.partialorder %v1906, 0.0
    %v1908 = vmul.f32 %v1906, 0.2
    %v1909 = vsel %vm1907, %v1906, %v1908
    %v1910 = vpack.c.bf16 %v1909, %v1909
    %1912 = vset.pattern.permute.xlu0 0
    %1913 = vperm.xlu0 %1912, %v168
    %v1914 = vpop.permute.xlu0 %1913
    %1917 = vset.pattern.permute.xlu0 0
    %1918 = vperm.xlu0 %1917, %v169
    %v1919 = vpop.permute.xlu0 %1918
    %v1923 = vunpack.c.l.b16 %v166
    %v1924 = vunpack.c.l.b16 %v167
    %v1925 = vpack.c.b16 %v1924, %v1923
    %v1927 = vsel %vm176, %v1925, 0
    %v1930 = vsel %vm183, %v1910, 0
    %1932 = vmatprep.subr.bf16.mxu0 0
    %1933 = vmatpush1.bf16.msra.mxu0 %v1930
    %1934 = vmatprep.subr.bf16.mxu0 0
    %1935 = vmatpush1.bf16.msra.mxu0 0
    %1936 = vmatprep.subr.bf16.mxu0 0
    %1937 = vmatpush1.bf16.msra.mxu0 0
    %1938 = vmatprep.subr.bf16.mxu0 0
    %1939 = vmatpush1.bf16.msra.mxu0 0
    %1940 = vmatprep.subr.bf16.mxu0 0
    %1941 = vmatpush1.bf16.msra.mxu0 0
    %1942 = vmatprep.subr.bf16.mxu0 0
    %1943 = vmatpush1.bf16.msra.mxu0 0
    %1944 = vmatprep.subr.bf16.mxu0 0
    %1945 = vmatpush1.bf16.msra.mxu0 0
    %1946 = vmatprep.subr.bf16.mxu0 0
    %1947 = vmatpush1.bf16.msra.mxu0 0
    %1948 = vmatprep.subr.bf16.mxu0 0
    %1949 = vmatpush1.bf16.msra.mxu0 0
    %1950 = vmatprep.subr.bf16.mxu0 0
    %1951 = vmatpush1.bf16.msra.mxu0 0
    %1952 = vmatprep.subr.bf16.mxu0 0
    %1953 = vmatpush1.bf16.msra.mxu0 0
    %1954 = vmatprep.subr.bf16.mxu0 0
    %1955 = vmatpush1.bf16.msra.mxu0 0
    %1956 = vmatprep.subr.bf16.mxu0 0
    %1957 = vmatpush1.bf16.msra.mxu0 0
    %1958 = vmatprep.subr.bf16.mxu0 0
    %1959 = vmatpush1.bf16.msra.mxu0 0
    %1960 = vmatprep.subr.bf16.mxu0 0
    %1961 = vmatpush1.bf16.msra.mxu0 0
    %1962 = vmatprep.subr.bf16.mxu0 0
    %1963 = vmatpush1.bf16.msra.mxu0 0
    %1964 = vmatprep.mubr.bf16.mxu0 0
    %1965 = vmatmul.mubr.bf16.gmra.mrb[0].mxu0 %v1927
    %v1966 = vpop.f32.mrb[0].mxu0
    %v1967 = vadd.f32 %v1914, %v1966
    %v1968 = vpop.f32.mrb[0].mxu0
    %v1969 = vpop.f32.mrb[0].mxu0
    %v1970 = vadd.f32 %v1919, %v1969
    %v1971 = vpop.f32.mrb[0].mxu0
    %1972 = vdwg.mxu0
    %1973 = vst.msk [vmem:[#allocation2] sm:$0xff] %vm1428, %v1967
    %1974 = vst.msk [vmem:[#allocation2 + $0x8] sm:$0xff] %vm1428, %v1970
    %s1975 = scalar_lea.vmem %s0, 32
    %v1976 = vld [vmem:[%s1975] sm:$0xff]
    %v1977 = vld [vmem:[%s1975 + $0x8] sm:$0xff]
    %v1978 = vld [vmem:[%s1975 + $0x10] sm:$0xff]
    %v1979 = vld [vmem:[%s1975 + $0x18] sm:$0xff]
    %v1980 = vpack.c.bf16 %v1977, %v1976
    %v1981 = vpack.c.bf16 %v1979, %v1978
    %v1983 = vsel %vm176, %v1980, 0
    %v1986 = vsel %vm176, %v1981, 0
    %1988 = vmatprep.subr.bf16.mxu0 0
    %1989 = vmatpush1.bf16.msra.mxu0 %v185
    %1990 = vmatprep.subr.bf16.mxu0 0
    %1991 = vmatpush1.bf16.msra.mxu0 0
    %1992 = vmatprep.subr.bf16.mxu0 0
    %1993 = vmatpush1.bf16.msra.mxu0 0
    %1994 = vmatprep.subr.bf16.mxu0 0
    %1995 = vmatpush1.bf16.msra.mxu0 0
    %1996 = vmatprep.subr.bf16.mxu0 0
    %1997 = vmatpush1.bf16.msra.mxu0 0
    %1998 = vmatprep.subr.bf16.mxu0 0
    %1999 = vmatpush1.bf16.msra.mxu0 0
    %2000 = vmatprep.subr.bf16.mxu0 0
    %2001 = vmatpush1.bf16.msra.mxu0 0
    %2002 = vmatprep.subr.bf16.mxu0 0
    %2003 = vmatpush1.bf16.msra.mxu0 0
    %2004 = vmatprep.subr.bf16.mxu0 0
    %2005 = vmatpush1.bf16.msra.mxu0 0
    %2006 = vmatprep.subr.bf16.mxu0 0
    %2007 = vmatpush1.bf16.msra.mxu0 0
    %2008 = vmatprep.subr.bf16.mxu0 0
    %2009 = vmatpush1.bf16.msra.mxu0 0
    %2010 = vmatprep.subr.bf16.mxu0 0
    %2011 = vmatpush1.bf16.msra.mxu0 0
    %2012 = vmatprep.subr.bf16.mxu0 0
    %2013 = vmatpush1.bf16.msra.mxu0 0
    %2014 = vmatprep.subr.bf16.mxu0 0
    %2015 = vmatpush1.bf16.msra.mxu0 0
    %2016 = vmatprep.subr.bf16.mxu0 0
    %2017 = vmatpush1.bf16.msra.mxu0 0
    %2018 = vmatprep.subr.bf16.mxu0 0
    %2019 = vmatpush1.bf16.msra.mxu0 0
    %2020 = vmatprep.mubr.bf16.mxu0 0
    %2021 = vmatmul.mubr.bf16.gmra.mrb[0].mxu0 %v1983
    %v2022 = vpop.f32.mrb[0].mxu0
    %v2023 = vadd.f32 0.0, %v2022
    %v2024 = vpop.f32.mrb[0].mxu0
    %v2025 = vpop.f32.mrb[0].mxu0
    %v2026 = vadd.f32 0.0, %v2025
    %v2027 = vpop.f32.mrb[0].mxu0
    %2028 = vmatprep.mubr.bf16.mxu0 0
    %2029 = vmatmul.mubr.bf16.gmra.mrb[0].mxu0 %v1986
    %v2030 = vpop.f32.mrb[0].mxu0
    %v2031 = vadd.f32 0.0, %v2030
    %v2032 = vpop.f32.mrb[0].mxu0
    %v2033 = vpop.f32.mrb[0].mxu0
    %v2034 = vadd.f32 0.0, %v2033
    %v2035 = vpop.f32.mrb[0].mxu0
    %2036 = vdwg.mxu0
    %s2037 = scalar_lea.vmem %s3, 16
    %v2038 = vld [vmem:[%s2037] sm:$0xff]
    %v2039 = vld [vmem:[%s2037 + $0x8] sm:$0xff]
    %v2040 = vpack.c.bf16 %v2026, %v2023
    %v2041 = vpack.c.bf16 %v2034, %v2031
    %v2042 = vpack.c.bf16 %v2039, %v2038
    %v2044 = vsel %vm241, %v2040, 0
    %v2047 = vsel %vm241, %v2041, 0
    %v2050 = vsel %vm241, %v2042, 0
    %2052 = vmatprep.subr.bf16.mxu0 0
    %2053 = vmatpush1.bf16.msra.mxu0 %v253
    %2054 = vmatprep.subr.bf16.mxu0 0
    %2055 = vmatpush1.bf16.msra.mxu0 0
    %2056 = vmatprep.subr.bf16.mxu0 0
    %2057 = vmatpush1.bf16.msra.mxu0 0
    %2058 = vmatprep.subr.bf16.mxu0 0
    %2059 = vmatpush1.bf16.msra.mxu0 0
    %2060 = vmatprep.subr.bf16.mxu0 0
    %2061 = vmatpush1.bf16.msra.mxu0 0
    %2062 = vmatprep.subr.bf16.mxu0 0
    %2063 = vmatpush1.bf16.msra.mxu0 0
    %2064 = vmatprep.subr.bf16.mxu0 0
    %2065 = vmatpush1.bf16.msra.mxu0 0
    %2066 = vmatprep.subr.bf16.mxu0 0
    %2067 = vmatpush1.bf16.msra.mxu0 0
    %2068 = vmatprep.subr.bf16.mxu0 0
    %2069 = vmatpush1.bf16.msra.mxu0 0
    %2070 = vmatprep.subr.bf16.mxu0 0
    %2071 = vmatpush1.bf16.msra.mxu0 0
    %2072 = vmatprep.subr.bf16.mxu0 0
    %2073 = vmatpush1.bf16.msra.mxu0 0
    %2074 = vmatprep.subr.bf16.mxu0 0
    %2075 = vmatpush1.bf16.msra.mxu0 0
    %2076 = vmatprep.subr.bf16.mxu0 0
    %2077 = vmatpush1.bf16.msra.mxu0 0
    %2078 = vmatprep.subr.bf16.mxu0 0
    %2079 = vmatpush1.bf16.msra.mxu0 0
    %2080 = vmatprep.subr.bf16.mxu0 0
    %2081 = vmatpush1.bf16.msra.mxu0 0
    %2082 = vmatprep.subr.bf16.mxu0 0
    %2083 = vmatpush1.bf16.msra.mxu0 0
    %2084 = vmatprep.mubr.bf16.mxu0 0
    %2085 = vmatmul.mubr.bf16.gmra.mrb[0].mxu0 %v2044
    %v2086 = vpop.f32.mrb[0].mxu0
    %v2087 = vadd.f32 0.0, %v2086
    %v2088 = vpop.f32.mrb[0].mxu0
    %v2089 = vpop.f32.mrb[0].mxu0
    %v2090 = vadd.f32 0.0, %v2089
    %v2091 = vpop.f32.mrb[0].mxu0
    %2092 = vmatprep.mubr.bf16.mxu0 0
    %2093 = vmatmul.mubr.bf16.gmra.mrb[0].mxu0 %v2047
    %v2094 = vpop.f32.mrb[0].mxu0
    %v2095 = vadd.f32 0.0, %v2094
    %v2096 = vpop.f32.mrb[0].mxu0
    %v2097 = vpop.f32.mrb[0].mxu0
    %v2098 = vadd.f32 0.0, %v2097
    %v2099 = vpop.f32.mrb[0].mxu0
    %2100 = vmatprep.mubr.bf16.mxu0 0
    %2101 = vmatmul.mubr.bf16.gmra.mrb[0].mxu0 %v2050
    %v2102 = vpop.f32.mrb[0].mxu0
    %v2103 = vadd.f32 0.0, %v2102
    %v2104 = vpop.f32.mrb[0].mxu0
    %v2105 = vpop.f32.mrb[0].mxu0
    %v2106 = vadd.f32 0.0, %v2105
    %v2107 = vpop.f32.mrb[0].mxu0
    %2108 = vdwg.mxu0
    %v2109 = vpack.c.bf16 %v2090, %v2087
    %v2110 = vpack.c.bf16 %v2098, %v2095
    %v2111 = vpack.c.bf16 %v2106, %v2103
    %2112 = vmatprep.subr.bf16.mxu0 0
    %2113 = vmatpush1.bf16.msra.mxu0 %v316
    %2114 = vmatprep.subr.bf16.mxu0 0
    %2115 = vmatpush1.bf16.msra.mxu0 0
    %2116 = vmatprep.subr.bf16.mxu0 0
    %2117 = vmatpush1.bf16.msra.mxu0 0
    %2118 = vmatprep.subr.bf16.mxu0 0
    %2119 = vmatpush1.bf16.msra.mxu0 0
    %2120 = vmatprep.subr.bf16.mxu0 0
    %2121 = vmatpush1.bf16.msra.mxu0 0
    %2122 = vmatprep.subr.bf16.mxu0 0
    %2123 = vmatpush1.bf16.msra.mxu0 0
    %2124 = vmatprep.subr.bf16.mxu0 0
    %2125 = vmatpush1.bf16.msra.mxu0 0
    %2126 = vmatprep.subr.bf16.mxu0 0
    %2127 = vmatpush1.bf16.msra.mxu0 0
    %2128 = vmatprep.subr.bf16.mxu0 0
    %2129 = vmatpush1.bf16.msra.mxu0 0
    %2130 = vmatprep.subr.bf16.mxu0 0
    %2131 = vmatpush1.bf16.msra.mxu0 0
    %2132 = vmatprep.subr.bf16.mxu0 0
    %2133 = vmatpush1.bf16.msra.mxu0 0
    %2134 = vmatprep.subr.bf16.mxu0 0
    %2135 = vmatpush1.bf16.msra.mxu0 0
    %2136 = vmatprep.subr.bf16.mxu0 0
    %2137 = vmatpush1.bf16.msra.mxu0 0
    %2138 = vmatprep.subr.bf16.mxu0 0
    %2139 = vmatpush1.bf16.msra.mxu0 0
    %2140 = vmatprep.subr.bf16.mxu0 0
    %2141 = vmatpush1.bf16.msra.mxu0 0
    %2142 = vmatprep.subr.bf16.mxu0 0
    %2143 = vmatpush1.bf16.msra.mxu0 0
    %2144 = vmatprep.mubr.bf16.mxu0 0
    %2145 = vmatmul.mubr.bf16.gmra.mrb[0].mxu0 %v2044
    %v2146 = vpop.f32.mrb[0].mxu0
    %v2147 = vadd.f32 0.0, %v2146
    %v2148 = vpop.f32.mrb[0].mxu0
    %v2149 = vpop.f32.mrb[0].mxu0
    %v2150 = vadd.f32 0.0, %v2149
    %v2151 = vpop.f32.mrb[0].mxu0
    %2152 = vmatprep.mubr.bf16.mxu0 0
    %2153 = vmatmul.mubr.bf16.gmra.mrb[0].mxu0 %v2047
    %v2154 = vpop.f32.mrb[0].mxu0
    %v2155 = vadd.f32 0.0, %v2154
    %v2156 = vpop.f32.mrb[0].mxu0
    %v2157 = vpop.f32.mrb[0].mxu0
    %v2158 = vadd.f32 0.0, %v2157
    %v2159 = vpop.f32.mrb[0].mxu0
    %2160 = vmatprep.mubr.bf16.mxu0 0
    %2161 = vmatmul.mubr.bf16.gmra.mrb[0].mxu0 %v2050
    %v2162 = vpop.f32.mrb[0].mxu0
    %v2163 = vadd.f32 0.0, %v2162
    %v2164 = vpop.f32.mrb[0].mxu0
    %v2165 = vpop.f32.mrb[0].mxu0
    %v2166 = vadd.f32 0.0, %v2165
    %v2167 = vpop.f32.mrb[0].mxu0
    %2168 = vdwg.mxu0
    %v2169 = vpack.c.bf16 %v2150, %v2147
    %v2170 = vpack.c.bf16 %v2158, %v2155
    %v2171 = vpack.c.bf16 %v2166, %v2163
    %2172 = vmatprep.subr.bf16.mxu0 0
    %2173 = vmatpush1.bf16.msra.mxu0 %v2040
    %2174 = vmatprep.subr.bf16.mxu0 0
    %2175 = vmatpush1.bf16.msra.mxu0 %v2041
    %2176 = vmatprep.subr.bf16.mxu0 0
    %2177 = vmatpush1.bf16.msra.mxu0 %v2042
    %2178 = vmatprep.subr.bf16.mxu0 0
    %2179 = vmatpush1.bf16.msra.mxu0 0
    %2180 = vmatprep.subr.bf16.mxu0 0
    %2181 = vmatpush1.bf16.msra.mxu0 0
    %2182 = vmatprep.subr.bf16.mxu0 0
    %2183 = vmatpush1.bf16.msra.mxu0 0
    %2184 = vmatprep.subr.bf16.mxu0 0
    %2185 = vmatpush1.bf16.msra.mxu0 0
    %2186 = vmatprep.subr.bf16.mxu0 0
    %2187 = vmatpush1.bf16.msra.mxu0 0
    %2188 = vmatprep.subr.bf16.mxu0 0
    %2189 = vmatpush1.bf16.msra.mxu0 0
    %2190 = vmatprep.subr.bf16.mxu0 0
    %2191 = vmatpush1.bf16.msra.mxu0 0
    %2192 = vmatprep.subr.bf16.mxu0 0
    %2193 = vmatpush1.bf16.msra.mxu0 0
    %2194 = vmatprep.subr.bf16.mxu0 0
    %2195 = vmatpush1.bf16.msra.mxu0 0
    %2196 = vmatprep.subr.bf16.mxu0 0
    %2197 = vmatpush1.bf16.msra.mxu0 0
    %2198 = vmatprep.subr.bf16.mxu0 0
    %2199 = vmatpush1.bf16.msra.mxu0 0
    %2200 = vmatprep.subr.bf16.mxu0 0
    %2201 = vmatpush1.bf16.msra.mxu0 0
    %2202 = vmatprep.subr.bf16.mxu0 0
    %2203 = vmatpush1.bf16.msra.mxu0 0
    %2204 = vmatprep.mubr.bf16.mxu0 0
    %2205 = vmatmul.mubr.bf16.gmra.mrb[0].mxu0 %v385
    %v2206 = vpop.f32.mrb[0].mxu0
    %v2207 = vadd.f32 0.0, %v2206
    %v2208 = vpop.f32.mrb[0].mxu0
    %v2209 = vpop.f32.mrb[0].mxu0
    %v2210 = vadd.f32 0.0, %v2209
    %v2211 = vpop.f32.mrb[0].mxu0
    %2212 = vdwg.mxu0
    %2213 = vmatprep.subr.bf16.mxu0 0
    %2214 = vmatpush1.bf16.msra.mxu0 %v2109
    %2215 = vmatprep.subr.bf16.mxu0 0
    %2216 = vmatpush1.bf16.msra.mxu0 %v2110
    %2217 = vmatprep.subr.bf16.mxu0 0
    %2218 = vmatpush1.bf16.msra.mxu0 %v2111
    %2219 = vmatprep.subr.bf16.mxu0 0
    %2220 = vmatpush1.bf16.msra.mxu0 0
    %2221 = vmatprep.subr.bf16.mxu0 0
    %2222 = vmatpush1.bf16.msra.mxu0 0
    %2223 = vmatprep.subr.bf16.mxu0 0
    %2224 = vmatpush1.bf16.msra.mxu0 0
    %2225 = vmatprep.subr.bf16.mxu0 0
    %2226 = vmatpush1.bf16.msra.mxu0 0
    %2227 = vmatprep.subr.bf16.mxu0 0
    %2228 = vmatpush1.bf16.msra.mxu0 0
    %2229 = vmatprep.subr.bf16.mxu0 0
    %2230 = vmatpush1.bf16.msra.mxu0 0
    %2231 = vmatprep.subr.bf16.mxu0 0
    %2232 = vmatpush1.bf16.msra.mxu0 0
    %2233 = vmatprep.subr.bf16.mxu0 0
    %2234 = vmatpush1.bf16.msra.mxu0 0
    %2235 = vmatprep.subr.bf16.mxu0 0
    %2236 = vmatpush1.bf16.msra.mxu0 0
    %2237 = vmatprep.subr.bf16.mxu0 0
    %2238 = vmatpush1.bf16.msra.mxu0 0
    %2239 = vmatprep.subr.bf16.mxu0 0
    %2240 = vmatpush1.bf16.msra.mxu0 0
    %2241 = vmatprep.subr.bf16.mxu0 0
    %2242 = vmatpush1.bf16.msra.mxu0 0
    %2243 = vmatprep.subr.bf16.mxu0 0
    %2244 = vmatpush1.bf16.msra.mxu0 0
    %2245 = vmatprep.mubr.bf16.mxu0 0
    %2246 = vmatmul.mubr.bf16.gmra.mrb[0].mxu0 %v434
    %v2247 = vpop.f32.mrb[0].mxu0
    %v2248 = vadd.f32 %v2207, %v2247
    %v2249 = vpop.f32.mrb[0].mxu0
    %v2250 = vpop.f32.mrb[0].mxu0
    %v2251 = vadd.f32 %v2210, %v2250
    %v2252 = vpop.f32.mrb[0].mxu0
    %2253 = vdwg.mxu0
    %2254 = vmatprep.subr.bf16.mxu0 0
    %2255 = vmatpush1.bf16.msra.mxu0 %v2169
    %2256 = vmatprep.subr.bf16.mxu0 0
    %2257 = vmatpush1.bf16.msra.mxu0 %v2170
    %2258 = vmatprep.subr.bf16.mxu0 0
    %2259 = vmatpush1.bf16.msra.mxu0 %v2171
    %2260 = vmatprep.subr.bf16.mxu0 0
    %2261 = vmatpush1.bf16.msra.mxu0 0
    %2262 = vmatprep.subr.bf16.mxu0 0
    %2263 = vmatpush1.bf16.msra.mxu0 0
    %2264 = vmatprep.subr.bf16.mxu0 0
    %2265 = vmatpush1.bf16.msra.mxu0 0
    %2266 = vmatprep.subr.bf16.mxu0 0
    %2267 = vmatpush1.bf16.msra.mxu0 0
    %2268 = vmatprep.subr.bf16.mxu0 0
    %2269 = vmatpush1.bf16.msra.mxu0 0
    %2270 = vmatprep.subr.bf16.mxu0 0
    %2271 = vmatpush1.bf16.msra.mxu0 0
    %2272 = vmatprep.subr.bf16.mxu0 0
    %2273 = vmatpush1.bf16.msra.mxu0 0
    %2274 = vmatprep.subr.bf16.mxu0 0
    %2275 = vmatpush1.bf16.msra.mxu0 0
    %2276 = vmatprep.subr.bf16.mxu0 0
    %2277 = vmatpush1.bf16.msra.mxu0 0
    %2278 = vmatprep.subr.bf16.mxu0 0
    %2279 = vmatpush1.bf16.msra.mxu0 0
    %2280 = vmatprep.subr.bf16.mxu0 0
    %2281 = vmatpush1.bf16.msra.mxu0 0
    %2282 = vmatprep.subr.bf16.mxu0 0
    %2283 = vmatpush1.bf16.msra.mxu0 0
    %2284 = vmatprep.subr.bf16.mxu0 0
    %2285 = vmatpush1.bf16.msra.mxu0 0
    %2286 = vmatprep.mubr.bf16.mxu0 0
    %2287 = vmatmul.mubr.bf16.gmra.mrb[0].mxu0 %v483
    %v2288 = vpop.f32.mrb[0].mxu0
    %v2289 = vadd.f32 0.0, %v2288
    %v2290 = vpop.f32.mrb[0].mxu0
    %v2291 = vpop.f32.mrb[0].mxu0
    %v2292 = vadd.f32 0.0, %v2291
    %v2293 = vpop.f32.mrb[0].mxu0
    %2294 = vdwg.mxu0
    %v2295 = vadd.f32 %v2248, %v2289
    %v2296 = vadd.f32 %v2251, %v2292
    %v2297 = vmul.f32 %v2295, %v531
    %v2298 = vmul.f32 %v2296, %v536
    %v2299 = vadd.f32 %v2297, %v543
    %v2300 = vadd.f32 %v2298, %v548
    %vm2301 = vcmp.gt.f32.partialorder %v2299, 0.0
    %vm2302 = vcmp.gt.f32.partialorder %v2300, 0.0
    %v2303 = vmul.f32 %v2299, 0.2
    %v2304 = vmul.f32 %v2300, 0.2
    %v2305 = vsel %vm2301, %v2299, %v2303
    %v2306 = vsel %vm2302, %v2300, %v2304
    %v2307 = vpack.c.bf16 %v2306, %v2305
    %v2309 = vsel %vm241, %v2307, 0
    %2311 = vmatprep.subr.bf16.mxu0 0
    %2312 = vmatpush1.bf16.msra.mxu0 %v253
    %2313 = vmatprep.subr.bf16.mxu0 0
    %2314 = vmatpush1.bf16.msra.mxu0 0
    %2315 = vmatprep.subr.bf16.mxu0 0
    %2316 = vmatpush1.bf16.msra.mxu0 0
    %2317 = vmatprep.subr.bf16.mxu0 0
    %2318 = vmatpush1.bf16.msra.mxu0 0
    %2319 = vmatprep.subr.bf16.mxu0 0
    %2320 = vmatpush1.bf16.msra.mxu0 0
    %2321 = vmatprep.subr.bf16.mxu0 0
    %2322 = vmatpush1.bf16.msra.mxu0 0
    %2323 = vmatprep.subr.bf16.mxu0 0
    %2324 = vmatpush1.bf16.msra.mxu0 0
    %2325 = vmatprep.subr.bf16.mxu0 0
    %2326 = vmatpush1.bf16.msra.mxu0 0
    %2327 = vmatprep.subr.bf16.mxu0 0
    %2328 = vmatpush1.bf16.msra.mxu0 0
    %2329 = vmatprep.subr.bf16.mxu0 0
    %2330 = vmatpush1.bf16.msra.mxu0 0
    %2331 = vmatprep.subr.bf16.mxu0 0
    %2332 = vmatpush1.bf16.msra.mxu0 0
    %2333 = vmatprep.subr.bf16.mxu0 0
    %2334 = vmatpush1.bf16.msra.mxu0 0
    %2335 = vmatprep.subr.bf16.mxu0 0
    %2336 = vmatpush1.bf16.msra.mxu0 0
    %2337 = vmatprep.subr.bf16.mxu0 0
    %2338 = vmatpush1.bf16.msra.mxu0 0
    %2339 = vmatprep.subr.bf16.mxu0 0
    %2340 = vmatpush1.bf16.msra.mxu0 0
    %2341 = vmatprep.subr.bf16.mxu0 0
    %2342 = vmatpush1.bf16.msra.mxu0 0
    %2343 = vmatprep.mubr.bf16.mxu0 0
    %2344 = vmatmul.mubr.bf16.gmra.mrb[0].mxu0 %v2309
    %v2345 = vpop.f32.mrb[0].mxu0
    %v2346 = vadd.f32 0.0, %v2345
    %v2347 = vpop.f32.mrb[0].mxu0
    %v2348 = vpop.f32.mrb[0].mxu0
    %v2349 = vadd.f32 0.0, %v2348
    %v2350 = vpop.f32.mrb[0].mxu0
    %2351 = vdwg.mxu0
    %v2352 = vpack.c.bf16 %v2349, %v2346
    %2353 = vmatprep.subr.bf16.mxu0 0
    %2354 = vmatpush1.bf16.msra.mxu0 %v316
    %2355 = vmatprep.subr.bf16.mxu0 0
    %2356 = vmatpush1.bf16.msra.mxu0 0
    %2357 = vmatprep.subr.bf16.mxu0 0
    %2358 = vmatpush1.bf16.msra.mxu0 0
    %2359 = vmatprep.subr.bf16.mxu0 0
    %2360 = vmatpush1.bf16.msra.mxu0 0
    %2361 = vmatprep.subr.bf16.mxu0 0
    %2362 = vmatpush1.bf16.msra.mxu0 0
    %2363 = vmatprep.subr.bf16.mxu0 0
    %2364 = vmatpush1.bf16.msra.mxu0 0
    %2365 = vmatprep.subr.bf16.mxu0 0
    %2366 = vmatpush1.bf16.msra.mxu0 0
    %2367 = vmatprep.subr.bf16.mxu0 0
    %2368 = vmatpush1.bf16.msra.mxu0 0
    %2369 = vmatprep.subr.bf16.mxu0 0
    %2370 = vmatpush1.bf16.msra.mxu0 0
    %2371 = vmatprep.subr.bf16.mxu0 0
    %2372 = vmatpush1.bf16.msra.mxu0 0
    %2373 = vmatprep.subr.bf16.mxu0 0
    %2374 = vmatpush1.bf16.msra.mxu0 0
    %2375 = vmatprep.subr.bf16.mxu0 0
    %2376 = vmatpush1.bf16.msra.mxu0 0
    %2377 = vmatprep.subr.bf16.mxu0 0
    %2378 = vmatpush1.bf16.msra.mxu0 0
    %2379 = vmatprep.subr.bf16.mxu0 0
    %2380 = vmatpush1.bf16.msra.mxu0 0
    %2381 = vmatprep.subr.bf16.mxu0 0
    %2382 = vmatpush1.bf16.msra.mxu0 0
    %2383 = vmatprep.subr.bf16.mxu0 0
    %2384 = vmatpush1.bf16.msra.mxu0 0
    %2385 = vmatprep.mubr.bf16.mxu0 0
    %2386 = vmatmul.mubr.bf16.gmra.mrb[0].mxu0 %v2309
    %v2387 = vpop.f32.mrb[0].mxu0
    %v2388 = vadd.f32 0.0, %v2387
    %v2389 = vpop.f32.mrb[0].mxu0
    %v2390 = vpop.f32.mrb[0].mxu0
    %v2391 = vadd.f32 0.0, %v2390
    %v2392 = vpop.f32.mrb[0].mxu0
    %2393 = vdwg.mxu0
    %v2394 = vpack.c.bf16 %v2391, %v2388
    %2395 = vmatprep.subr.bf16.mxu0 0
    %2396 = vmatpush1.bf16.msra.mxu0 %v2307
    %2397 = vmatprep.subr.bf16.mxu0 0
    %2398 = vmatpush1.bf16.msra.mxu0 0
    %2399 = vmatprep.subr.bf16.mxu0 0
    %2400 = vmatpush1.bf16.msra.mxu0 0
    %2401 = vmatprep.subr.bf16.mxu0 0
    %2402 = vmatpush1.bf16.msra.mxu0 0
    %2403 = vmatprep.subr.bf16.mxu0 0
    %2404 = vmatpush1.bf16.msra.mxu0 0
    %2405 = vmatprep.subr.bf16.mxu0 0
    %2406 = vmatpush1.bf16.msra.mxu0 0
    %2407 = vmatprep.subr.bf16.mxu0 0
    %2408 = vmatpush1.bf16.msra.mxu0 0
    %2409 = vmatprep.subr.bf16.mxu0 0
    %2410 = vmatpush1.bf16.msra.mxu0 0
    %2411 = vmatprep.subr.bf16.mxu0 0
    %2412 = vmatpush1.bf16.msra.mxu0 0
    %2413 = vmatprep.subr.bf16.mxu0 0
    %2414 = vmatpush1.bf16.msra.mxu0 0
    %2415 = vmatprep.subr.bf16.mxu0 0
    %2416 = vmatpush1.bf16.msra.mxu0 0
    %2417 = vmatprep.subr.bf16.mxu0 0
    %2418 = vmatpush1.bf16.msra.mxu0 0
    %2419 = vmatprep.subr.bf16.mxu0 0
    %2420 = vmatpush1.bf16.msra.mxu0 0
    %2421 = vmatprep.subr.bf16.mxu0 0
    %2422 = vmatpush1.bf16.msra.mxu0 0
    %2423 = vmatprep.subr.bf16.mxu0 0
    %2424 = vmatpush1.bf16.msra.mxu0 0
    %2425 = vmatprep.subr.bf16.mxu0 0
    %2426 = vmatpush1.bf16.msra.mxu0 0
    %2427 = vmatprep.mubr.bf16.mxu0 0
    %2428 = vmatmul.mubr.bf16.gmra.mrb[0].mxu0 %v653
    %v2429 = vpop.f32.mrb[0].mxu0
    %v2430 = vadd.f32 0.0, %v2429
    %v2431 = vpop.f32.mrb[0].mxu0
    %v2432 = vpop.f32.mrb[0].mxu0
    %v2433 = vadd.f32 0.0, %v2432
    %v2434 = vpop.f32.mrb[0].mxu0
    %2435 = vdwg.mxu0
    %2436 = vmatprep.subr.bf16.mxu0 0
    %2437 = vmatpush1.bf16.msra.mxu0 %v2352
    %2438 = vmatprep.subr.bf16.mxu0 0
    %2439 = vmatpush1.bf16.msra.mxu0 0
    %2440 = vmatprep.subr.bf16.mxu0 0
    %2441 = vmatpush1.bf16.msra.mxu0 0
    %2442 = vmatprep.subr.bf16.mxu0 0
    %2443 = vmatpush1.bf16.msra.mxu0 0
    %2444 = vmatprep.subr.bf16.mxu0 0
    %2445 = vmatpush1.bf16.msra.mxu0 0
    %2446 = vmatprep.subr.bf16.mxu0 0
    %2447 = vmatpush1.bf16.msra.mxu0 0
    %2448 = vmatprep.subr.bf16.mxu0 0
    %2449 = vmatpush1.bf16.msra.mxu0 0
    %2450 = vmatprep.subr.bf16.mxu0 0
    %2451 = vmatpush1.bf16.msra.mxu0 0
    %2452 = vmatprep.subr.bf16.mxu0 0
    %2453 = vmatpush1.bf16.msra.mxu0 0
    %2454 = vmatprep.subr.bf16.mxu0 0
    %2455 = vmatpush1.bf16.msra.mxu0 0
    %2456 = vmatprep.subr.bf16.mxu0 0
    %2457 = vmatpush1.bf16.msra.mxu0 0
    %2458 = vmatprep.subr.bf16.mxu0 0
    %2459 = vmatpush1.bf16.msra.mxu0 0
    %2460 = vmatprep.subr.bf16.mxu0 0
    %2461 = vmatpush1.bf16.msra.mxu0 0
    %2462 = vmatprep.subr.bf16.mxu0 0
    %2463 = vmatpush1.bf16.msra.mxu0 0
    %2464 = vmatprep.subr.bf16.mxu0 0
    %2465 = vmatpush1.bf16.msra.mxu0 0
    %2466 = vmatprep.subr.bf16.mxu0 0
    %2467 = vmatpush1.bf16.msra.mxu0 0
    %2468 = vmatprep.mubr.bf16.mxu0 0
    %2469 = vmatmul.mubr.bf16.gmra.mrb[0].mxu0 %v702
    %v2470 = vpop.f32.mrb[0].mxu0
    %v2471 = vadd.f32 %v2430, %v2470
    %v2472 = vpop.f32.mrb[0].mxu0
    %v2473 = vpop.f32.mrb[0].mxu0
    %v2474 = vadd.f32 %v2433, %v2473
    %v2475 = vpop.f32.mrb[0].mxu0
    %2476 = vdwg.mxu0
    %2477 = vmatprep.subr.bf16.mxu0 0
    %2478 = vmatpush1.bf16.msra.mxu0 %v2394
    %2479 = vmatprep.subr.bf16.mxu0 0
    %2480 = vmatpush1.bf16.msra.mxu0 0
    %2481 = vmatprep.subr.bf16.mxu0 0
    %2482 = vmatpush1.bf16.msra.mxu0 0
    %2483 = vmatprep.subr.bf16.mxu0 0
    %2484 = vmatpush1.bf16.msra.mxu0 0
    %2485 = vmatprep.subr.bf16.mxu0 0
    %2486 = vmatpush1.bf16.msra.mxu0 0
    %2487 = vmatprep.subr.bf16.mxu0 0
    %2488 = vmatpush1.bf16.msra.mxu0 0
    %2489 = vmatprep.subr.bf16.mxu0 0
    %2490 = vmatpush1.bf16.msra.mxu0 0
    %2491 = vmatprep.subr.bf16.mxu0 0
    %2492 = vmatpush1.bf16.msra.mxu0 0
    %2493 = vmatprep.subr.bf16.mxu0 0
    %2494 = vmatpush1.bf16.msra.mxu0 0
    %2495 = vmatprep.subr.bf16.mxu0 0
    %2496 = vmatpush1.bf16.msra.mxu0 0
    %2497 = vmatprep.subr.bf16.mxu0 0
    %2498 = vmatpush1.bf16.msra.mxu0 0
    %2499 = vmatprep.subr.bf16.mxu0 0
    %2500 = vmatpush1.bf16.msra.mxu0 0
    %2501 = vmatprep.subr.bf16.mxu0 0
    %2502 = vmatpush1.bf16.msra.mxu0 0
    %2503 = vmatprep.subr.bf16.mxu0 0
    %2504 = vmatpush1.bf16.msra.mxu0 0
    %2505 = vmatprep.subr.bf16.mxu0 0
    %2506 = vmatpush1.bf16.msra.mxu0 0
    %2507 = vmatprep.subr.bf16.mxu0 0
    %2508 = vmatpush1.bf16.msra.mxu0 0
    %2509 = vmatprep.mubr.bf16.mxu0 0
    %2510 = vmatmul.mubr.bf16.gmra.mrb[0].mxu0 %v751
    %v2511 = vpop.f32.mrb[0].mxu0
    %v2512 = vadd.f32 0.0, %v2511
    %v2513 = vpop.f32.mrb[0].mxu0
    %v2514 = vpop.f32.mrb[0].mxu0
    %v2515 = vadd.f32 0.0, %v2514
    %v2516 = vpop.f32.mrb[0].mxu0
    %2517 = vdwg.mxu0
    %v2518 = vadd.f32 %v2471, %v2512
    %v2519 = vadd.f32 %v2474, %v2515
    %v2520 = vmul.f32 %v2518, %v799
    %v2521 = vmul.f32 %v2519, %v804
    %v2522 = vadd.f32 %v2520, %v811
    %v2523 = vadd.f32 %v2521, %v816
    %vm2524 = vcmp.gt.f32.partialorder %v2522, 0.0
    %vm2525 = vcmp.gt.f32.partialorder %v2523, 0.0
    %v2526 = vmul.f32 %v2522, 0.2
    %v2527 = vmul.f32 %v2523, 0.2
    %v2528 = vsel %vm2524, %v2522, %v2526
    %v2529 = vsel %vm2525, %v2523, %v2527
    %v2530 = vpack.c.bf16 %v2529, %v2528
    %v2532 = vsel %vm241, %v2530, 0
    %2534 = vmatprep.subr.bf16.mxu0 0
    %2535 = vmatpush1.bf16.msra.mxu0 %v831
    %2536 = vmatprep.subr.bf16.mxu0 0
    %2537 = vmatpush1.bf16.msra.mxu0 0
    %2538 = vmatprep.subr.bf16.mxu0 0
    %2539 = vmatpush1.bf16.msra.mxu0 0
    %2540 = vmatprep.subr.bf16.mxu0 0
    %2541 = vmatpush1.bf16.msra.mxu0 0
    %2542 = vmatprep.subr.bf16.mxu0 0
    %2543 = vmatpush1.bf16.msra.mxu0 0
    %2544 = vmatprep.subr.bf16.mxu0 0
    %2545 = vmatpush1.bf16.msra.mxu0 0
    %2546 = vmatprep.subr.bf16.mxu0 0
    %2547 = vmatpush1.bf16.msra.mxu0 0
    %2548 = vmatprep.subr.bf16.mxu0 0
    %2549 = vmatpush1.bf16.msra.mxu0 0
    %2550 = vmatprep.subr.bf16.mxu0 0
    %2551 = vmatpush1.bf16.msra.mxu0 0
    %2552 = vmatprep.subr.bf16.mxu0 0
    %2553 = vmatpush1.bf16.msra.mxu0 0
    %2554 = vmatprep.subr.bf16.mxu0 0
    %2555 = vmatpush1.bf16.msra.mxu0 0
    %2556 = vmatprep.subr.bf16.mxu0 0
    %2557 = vmatpush1.bf16.msra.mxu0 0
    %2558 = vmatprep.subr.bf16.mxu0 0
    %2559 = vmatpush1.bf16.msra.mxu0 0
    %2560 = vmatprep.subr.bf16.mxu0 0
    %2561 = vmatpush1.bf16.msra.mxu0 0
    %2562 = vmatprep.subr.bf16.mxu0 0
    %2563 = vmatpush1.bf16.msra.mxu0 0
    %2564 = vmatprep.subr.bf16.mxu0 0
    %2565 = vmatpush1.bf16.msra.mxu0 0
    %2566 = vmatprep.mubr.bf16.mxu0 0
    %2567 = vmatmul.mubr.bf16.gmra.mrb[0].mxu0 %v2532
    %v2568 = vpop.f32.mrb[0].mxu0
    %v2569 = vadd.f32 0.0, %v2568
    %v2570 = vpop.f32.mrb[0].mxu0
    %v2571 = vpop.f32.mrb[0].mxu0
    %v2572 = vadd.f32 0.0, %v2571
    %v2573 = vpop.f32.mrb[0].mxu0
    %2574 = vdwg.mxu0
    %s2575 = scalar_lea.vmem %s2, 8
    %v2576 = vld [vmem:[%s2575] sm:$0xff]
    %v2577 = vpack.c.bf16 %v2572, %v2569
    %v2578 = vpack.c.bf16 %v2576, %v2576
    %v2580 = vsel %vm651, %v2577, 0
    %v2583 = vsel %vm651, %v2578, 0
    %2585 = vmatprep.subr.bf16.mxu0 0
    %2586 = vmatpush1.bf16.msra.mxu0 %v104
    %2587 = vmatprep.subr.bf16.mxu0 0
    %2588 = vmatpush1.bf16.msra.mxu0 0
    %2589 = vmatprep.subr.bf16.mxu0 0
    %2590 = vmatpush1.bf16.msra.mxu0 0
    %2591 = vmatprep.subr.bf16.mxu0 0
    %2592 = vmatpush1.bf16.msra.mxu0 0
    %2593 = vmatprep.subr.bf16.mxu0 0
    %2594 = vmatpush1.bf16.msra.mxu0 0
    %2595 = vmatprep.subr.bf16.mxu0 0
    %2596 = vmatpush1.bf16.msra.mxu0 0
    %2597 = vmatprep.subr.bf16.mxu0 0
    %2598 = vmatpush1.bf16.msra.mxu0 0
    %2599 = vmatprep.subr.bf16.mxu0 0
    %2600 = vmatpush1.bf16.msra.mxu0 0
    %2601 = vmatprep.subr.bf16.mxu0 0
    %2602 = vmatpush1.bf16.msra.mxu0 0
    %2603 = vmatprep.subr.bf16.mxu0 0
    %2604 = vmatpush1.bf16.msra.mxu0 0
    %2605 = vmatprep.subr.bf16.mxu0 0
    %2606 = vmatpush1.bf16.msra.mxu0 0
    %2607 = vmatprep.subr.bf16.mxu0 0
    %2608 = vmatpush1.bf16.msra.mxu0 0
    %2609 = vmatprep.subr.bf16.mxu0 0
    %2610 = vmatpush1.bf16.msra.mxu0 0
    %2611 = vmatprep.subr.bf16.mxu0 0
    %2612 = vmatpush1.bf16.msra.mxu0 0
    %2613 = vmatprep.subr.bf16.mxu0 0
    %2614 = vmatpush1.bf16.msra.mxu0 0
    %2615 = vmatprep.subr.bf16.mxu0 0
    %2616 = vmatpush1.bf16.msra.mxu0 0
    %2617 = vmatprep.mubr.bf16.mxu0 0
    %2618 = vmatmul.mubr.bf16.gmra.mrb[0].mxu0 %v2580
    %v2619 = vpop.f32.mrb[0].mxu0
    %v2620 = vadd.f32 0.0, %v2619
    %v2621 = vpop.f32.mrb[0].mxu0
    %v2622 = vpop.f32.mrb[0].mxu0
    %v2623 = vadd.f32 0.0, %v2622
    %v2624 = vpop.f32.mrb[0].mxu0
    %2625 = vmatprep.mubr.bf16.mxu0 0
    %2626 = vmatmul.mubr.bf16.gmra.mrb[0].mxu0 %v2583
    %v2627 = vpop.f32.mrb[0].mxu0
    %v2628 = vadd.f32 0.0, %v2627
    %v2629 = vpop.f32.mrb[0].mxu0
    %v2630 = vpop.f32.mrb[0].mxu0
    %v2631 = vpop.f32.mrb[0].mxu0
    %2632 = vdwg.mxu0
    %v2633 = vpack.c.bf16 %v2623, %v2620
    %v2634 = vpack.c.bf16 %v2628, %v2628
    %2635 = vmatprep.subr.bf16.mxu0 0
    %2636 = vmatpush1.bf16.msra.mxu0 %v107
    %2637 = vmatprep.subr.bf16.mxu0 0
    %2638 = vmatpush1.bf16.msra.mxu0 0
    %2639 = vmatprep.subr.bf16.mxu0 0
    %2640 = vmatpush1.bf16.msra.mxu0 0
    %2641 = vmatprep.subr.bf16.mxu0 0
    %2642 = vmatpush1.bf16.msra.mxu0 0
    %2643 = vmatprep.subr.bf16.mxu0 0
    %2644 = vmatpush1.bf16.msra.mxu0 0
    %2645 = vmatprep.subr.bf16.mxu0 0
    %2646 = vmatpush1.bf16.msra.mxu0 0
    %2647 = vmatprep.subr.bf16.mxu0 0
    %2648 = vmatpush1.bf16.msra.mxu0 0
    %2649 = vmatprep.subr.bf16.mxu0 0
    %2650 = vmatpush1.bf16.msra.mxu0 0
    %2651 = vmatprep.subr.bf16.mxu0 0
    %2652 = vmatpush1.bf16.msra.mxu0 0
    %2653 = vmatprep.subr.bf16.mxu0 0
    %2654 = vmatpush1.bf16.msra.mxu0 0
    %2655 = vmatprep.subr.bf16.mxu0 0
    %2656 = vmatpush1.bf16.msra.mxu0 0
    %2657 = vmatprep.subr.bf16.mxu0 0
    %2658 = vmatpush1.bf16.msra.mxu0 0
    %2659 = vmatprep.subr.bf16.mxu0 0
    %2660 = vmatpush1.bf16.msra.mxu0 0
    %2661 = vmatprep.subr.bf16.mxu0 0
    %2662 = vmatpush1.bf16.msra.mxu0 0
    %2663 = vmatprep.subr.bf16.mxu0 0
    %2664 = vmatpush1.bf16.msra.mxu0 0
    %2665 = vmatprep.subr.bf16.mxu0 0
    %2666 = vmatpush1.bf16.msra.mxu0 0
    %2667 = vmatprep.mubr.bf16.mxu0 0
    %2668 = vmatmul.mubr.bf16.gmra.mrb[0].mxu0 %v2580
    %v2669 = vpop.f32.mrb[0].mxu0
    %v2670 = vadd.f32 0.0, %v2669
    %v2671 = vpop.f32.mrb[0].mxu0
    %v2672 = vpop.f32.mrb[0].mxu0
    %v2673 = vadd.f32 0.0, %v2672
    %v2674 = vpop.f32.mrb[0].mxu0
    %2675 = vmatprep.mubr.bf16.mxu0 0
    %2676 = vmatmul.mubr.bf16.gmra.mrb[0].mxu0 %v2583
    %v2677 = vpop.f32.mrb[0].mxu0
    %v2678 = vadd.f32 0.0, %v2677
    %v2679 = vpop.f32.mrb[0].mxu0
    %v2680 = vpop.f32.mrb[0].mxu0
    %v2681 = vpop.f32.mrb[0].mxu0
    %2682 = vdwg.mxu0
    %v2683 = vpack.c.bf16 %v2673, %v2670
    %v2684 = vpack.c.bf16 %v2678, %v2678
    %v2685 = vsel %vm251, %v2578, 0
    %2687 = vmatprep.subr.bf16.mxu0 0
    %2688 = vmatpush1.bf16.msra.mxu0 %v2577
    %2689 = vmatprep.subr.bf16.mxu0 0
    %2690 = vmatpush1.bf16.msra.mxu0 %v2685
    %2691 = vmatprep.subr.bf16.mxu0 0
    %2692 = vmatpush1.bf16.msra.mxu0 0
    %2693 = vmatprep.subr.bf16.mxu0 0
    %2694 = vmatpush1.bf16.msra.mxu0 0
    %2695 = vmatprep.subr.bf16.mxu0 0
    %2696 = vmatpush1.bf16.msra.mxu0 0
    %2697 = vmatprep.subr.bf16.mxu0 0
    %2698 = vmatpush1.bf16.msra.mxu0 0
    %2699 = vmatprep.subr.bf16.mxu0 0
    %2700 = vmatpush1.bf16.msra.mxu0 0
    %2701 = vmatprep.subr.bf16.mxu0 0
    %2702 = vmatpush1.bf16.msra.mxu0 0
    %2703 = vmatprep.subr.bf16.mxu0 0
    %2704 = vmatpush1.bf16.msra.mxu0 0
    %2705 = vmatprep.subr.bf16.mxu0 0
    %2706 = vmatpush1.bf16.msra.mxu0 0
    %2707 = vmatprep.subr.bf16.mxu0 0
    %2708 = vmatpush1.bf16.msra.mxu0 0
    %2709 = vmatprep.subr.bf16.mxu0 0
    %2710 = vmatpush1.bf16.msra.mxu0 0
    %2711 = vmatprep.subr.bf16.mxu0 0
    %2712 = vmatpush1.bf16.msra.mxu0 0
    %2713 = vmatprep.subr.bf16.mxu0 0
    %2714 = vmatpush1.bf16.msra.mxu0 0
    %2715 = vmatprep.subr.bf16.mxu0 0
    %2716 = vmatpush1.bf16.msra.mxu0 0
    %2717 = vmatprep.subr.bf16.mxu0 0
    %2718 = vmatpush1.bf16.msra.mxu0 0
    %2719 = vmatprep.mubr.bf16.mxu0 0
    %2720 = vmatmul.mubr.bf16.gmra.mrb[0].mxu0 %v985
    %v2721 = vpop.f32.mrb[0].mxu0
    %v2722 = vadd.f32 0.0, %v2721
    %v2723 = vpop.f32.mrb[0].mxu0
    %v2724 = vpop.f32.mrb[0].mxu0
    %v2725 = vpop.f32.mrb[0].mxu0
    %2726 = vdwg.mxu0
    %v2728 = vsel %vm251, %v2634, 0
    %2730 = vmatprep.subr.bf16.mxu0 0
    %2731 = vmatpush1.bf16.msra.mxu0 %v2633
    %2732 = vmatprep.subr.bf16.mxu0 0
    %2733 = vmatpush1.bf16.msra.mxu0 %v2728
    %2734 = vmatprep.subr.bf16.mxu0 0
    %2735 = vmatpush1.bf16.msra.mxu0 0
    %2736 = vmatprep.subr.bf16.mxu0 0
    %2737 = vmatpush1.bf16.msra.mxu0 0
    %2738 = vmatprep.subr.bf16.mxu0 0
    %2739 = vmatpush1.bf16.msra.mxu0 0
    %2740 = vmatprep.subr.bf16.mxu0 0
    %2741 = vmatpush1.bf16.msra.mxu0 0
    %2742 = vmatprep.subr.bf16.mxu0 0
    %2743 = vmatpush1.bf16.msra.mxu0 0
    %2744 = vmatprep.subr.bf16.mxu0 0
    %2745 = vmatpush1.bf16.msra.mxu0 0
    %2746 = vmatprep.subr.bf16.mxu0 0
    %2747 = vmatpush1.bf16.msra.mxu0 0
    %2748 = vmatprep.subr.bf16.mxu0 0
    %2749 = vmatpush1.bf16.msra.mxu0 0
    %2750 = vmatprep.subr.bf16.mxu0 0
    %2751 = vmatpush1.bf16.msra.mxu0 0
    %2752 = vmatprep.subr.bf16.mxu0 0
    %2753 = vmatpush1.bf16.msra.mxu0 0
    %2754 = vmatprep.subr.bf16.mxu0 0
    %2755 = vmatpush1.bf16.msra.mxu0 0
    %2756 = vmatprep.subr.bf16.mxu0 0
    %2757 = vmatpush1.bf16.msra.mxu0 0
    %2758 = vmatprep.subr.bf16.mxu0 0
    %2759 = vmatpush1.bf16.msra.mxu0 0
    %2760 = vmatprep.subr.bf16.mxu0 0
    %2761 = vmatpush1.bf16.msra.mxu0 0
    %2762 = vmatprep.mubr.bf16.mxu0 0
    %2763 = vmatmul.mubr.bf16.gmra.mrb[0].mxu0 %v1030
    %v2764 = vpop.f32.mrb[0].mxu0
    %v2765 = vadd.f32 %v2722, %v2764
    %v2766 = vpop.f32.mrb[0].mxu0
    %v2767 = vpop.f32.mrb[0].mxu0
    %v2768 = vpop.f32.mrb[0].mxu0
    %2769 = vdwg.mxu0
    %v2771 = vsel %vm251, %v2684, 0
    %2773 = vmatprep.subr.bf16.mxu0 0
    %2774 = vmatpush1.bf16.msra.mxu0 %v2683
    %2775 = vmatprep.subr.bf16.mxu0 0
    %2776 = vmatpush1.bf16.msra.mxu0 %v2771
    %2777 = vmatprep.subr.bf16.mxu0 0
    %2778 = vmatpush1.bf16.msra.mxu0 0
    %2779 = vmatprep.subr.bf16.mxu0 0
    %2780 = vmatpush1.bf16.msra.mxu0 0
    %2781 = vmatprep.subr.bf16.mxu0 0
    %2782 = vmatpush1.bf16.msra.mxu0 0
    %2783 = vmatprep.subr.bf16.mxu0 0
    %2784 = vmatpush1.bf16.msra.mxu0 0
    %2785 = vmatprep.subr.bf16.mxu0 0
    %2786 = vmatpush1.bf16.msra.mxu0 0
    %2787 = vmatprep.subr.bf16.mxu0 0
    %2788 = vmatpush1.bf16.msra.mxu0 0
    %2789 = vmatprep.subr.bf16.mxu0 0
    %2790 = vmatpush1.bf16.msra.mxu0 0
    %2791 = vmatprep.subr.bf16.mxu0 0
    %2792 = vmatpush1.bf16.msra.mxu0 0
    %2793 = vmatprep.subr.bf16.mxu0 0
    %2794 = vmatpush1.bf16.msra.mxu0 0
    %2795 = vmatprep.subr.bf16.mxu0 0
    %2796 = vmatpush1.bf16.msra.mxu0 0
    %2797 = vmatprep.subr.bf16.mxu0 0
    %2798 = vmatpush1.bf16.msra.mxu0 0
    %2799 = vmatprep.subr.bf16.mxu0 0
    %2800 = vmatpush1.bf16.msra.mxu0 0
    %2801 = vmatprep.subr.bf16.mxu0 0
    %2802 = vmatpush1.bf16.msra.mxu0 0
    %2803 = vmatprep.subr.bf16.mxu0 0
    %2804 = vmatpush1.bf16.msra.mxu0 0
    %2805 = vmatprep.mubr.bf16.mxu0 0
    %2806 = vmatmul.mubr.bf16.gmra.mrb[0].mxu0 %v1076
    %v2807 = vpop.f32.mrb[0].mxu0
    %v2808 = vadd.f32 0.0, %v2807
    %v2809 = vpop.f32.mrb[0].mxu0
    %v2810 = vpop.f32.mrb[0].mxu0
    %v2811 = vpop.f32.mrb[0].mxu0
    %2812 = vdwg.mxu0
    %v2813 = vadd.f32 %v2765, %v2808
    %v2814 = vmul.f32 %v2813, %v1125
    %v2815 = vadd.f32 %v2814, %v1131
    %vm2816 = vcmp.gt.f32.partialorder %v2815, 0.0
    %v2817 = vmul.f32 %v2815, 0.2
    %v2818 = vsel %vm2816, %v2815, %v2817
    %v2819 = vpack.c.bf16 %v2818, %v2818
    %v2821 = vsel %vm651, %v2819, 0
    %2823 = vmatprep.subr.bf16.mxu0 0
    %2824 = vmatpush1.bf16.msra.mxu0 %v104
    %2825 = vmatprep.subr.bf16.mxu0 0
    %2826 = vmatpush1.bf16.msra.mxu0 0
    %2827 = vmatprep.subr.bf16.mxu0 0
    %2828 = vmatpush1.bf16.msra.mxu0 0
    %2829 = vmatprep.subr.bf16.mxu0 0
    %2830 = vmatpush1.bf16.msra.mxu0 0
    %2831 = vmatprep.subr.bf16.mxu0 0
    %2832 = vmatpush1.bf16.msra.mxu0 0
    %2833 = vmatprep.subr.bf16.mxu0 0
    %2834 = vmatpush1.bf16.msra.mxu0 0
    %2835 = vmatprep.subr.bf16.mxu0 0
    %2836 = vmatpush1.bf16.msra.mxu0 0
    %2837 = vmatprep.subr.bf16.mxu0 0
    %2838 = vmatpush1.bf16.msra.mxu0 0
    %2839 = vmatprep.subr.bf16.mxu0 0
    %2840 = vmatpush1.bf16.msra.mxu0 0
    %2841 = vmatprep.subr.bf16.mxu0 0
    %2842 = vmatpush1.bf16.msra.mxu0 0
    %2843 = vmatprep.subr.bf16.mxu0 0
    %2844 = vmatpush1.bf16.msra.mxu0 0
    %2845 = vmatprep.subr.bf16.mxu0 0
    %2846 = vmatpush1.bf16.msra.mxu0 0
    %2847 = vmatprep.subr.bf16.mxu0 0
    %2848 = vmatpush1.bf16.msra.mxu0 0
    %2849 = vmatprep.subr.bf16.mxu0 0
    %2850 = vmatpush1.bf16.msra.mxu0 0
    %2851 = vmatprep.subr.bf16.mxu0 0
    %2852 = vmatpush1.bf16.msra.mxu0 0
    %2853 = vmatprep.subr.bf16.mxu0 0
    %2854 = vmatpush1.bf16.msra.mxu0 0
    %2855 = vmatprep.mubr.bf16.mxu0 0
    %2856 = vmatmul.mubr.bf16.gmra.mrb[0].mxu0 %v2821
    %v2857 = vpop.f32.mrb[0].mxu0
    %v2858 = vadd.f32 0.0, %v2857
    %v2859 = vpop.f32.mrb[0].mxu0
    %v2860 = vpop.f32.mrb[0].mxu0
    %v2861 = vpop.f32.mrb[0].mxu0
    %2862 = vdwg.mxu0
    %v2863 = vpack.c.bf16 %v2858, %v2858
    %2864 = vmatprep.subr.bf16.mxu0 0
    %2865 = vmatpush1.bf16.msra.mxu0 %v107
    %2866 = vmatprep.subr.bf16.mxu0 0
    %2867 = vmatpush1.bf16.msra.mxu0 0
    %2868 = vmatprep.subr.bf16.mxu0 0
    %2869 = vmatpush1.bf16.msra.mxu0 0
    %2870 = vmatprep.subr.bf16.mxu0 0
    %2871 = vmatpush1.bf16.msra.mxu0 0
    %2872 = vmatprep.subr.bf16.mxu0 0
    %2873 = vmatpush1.bf16.msra.mxu0 0
    %2874 = vmatprep.subr.bf16.mxu0 0
    %2875 = vmatpush1.bf16.msra.mxu0 0
    %2876 = vmatprep.subr.bf16.mxu0 0
    %2877 = vmatpush1.bf16.msra.mxu0 0
    %2878 = vmatprep.subr.bf16.mxu0 0
    %2879 = vmatpush1.bf16.msra.mxu0 0
    %2880 = vmatprep.subr.bf16.mxu0 0
    %2881 = vmatpush1.bf16.msra.mxu0 0
    %2882 = vmatprep.subr.bf16.mxu0 0
    %2883 = vmatpush1.bf16.msra.mxu0 0
    %2884 = vmatprep.subr.bf16.mxu0 0
    %2885 = vmatpush1.bf16.msra.mxu0 0
    %2886 = vmatprep.subr.bf16.mxu0 0
    %2887 = vmatpush1.bf16.msra.mxu0 0
    %2888 = vmatprep.subr.bf16.mxu0 0
    %2889 = vmatpush1.bf16.msra.mxu0 0
    %2890 = vmatprep.subr.bf16.mxu0 0
    %2891 = vmatpush1.bf16.msra.mxu0 0
    %2892 = vmatprep.subr.bf16.mxu0 0
    %2893 = vmatpush1.bf16.msra.mxu0 0
    %2894 = vmatprep.subr.bf16.mxu0 0
    %2895 = vmatpush1.bf16.msra.mxu0 0
    %2896 = vmatprep.mubr.bf16.mxu0 0
    %2897 = vmatmul.mubr.bf16.gmra.mrb[0].mxu0 %v2821
    %v2898 = vpop.f32.mrb[0].mxu0
    %v2899 = vadd.f32 0.0, %v2898
    %v2900 = vpop.f32.mrb[0].mxu0
    %v2901 = vpop.f32.mrb[0].mxu0
    %v2902 = vpop.f32.mrb[0].mxu0
    %2903 = vdwg.mxu0
    %v2904 = vpack.c.bf16 %v2899, %v2899
    %v2905 = vsel %vm251, %v2819, 0
    %2907 = vmatprep.subr.bf16.mxu0 0
    %2908 = vmatpush1.bf16.msra.mxu0 %v2905
    %2909 = vmatprep.subr.bf16.mxu0 0
    %2910 = vmatpush1.bf16.msra.mxu0 0
    %2911 = vmatprep.subr.bf16.mxu0 0
    %2912 = vmatpush1.bf16.msra.mxu0 0
    %2913 = vmatprep.subr.bf16.mxu0 0
    %2914 = vmatpush1.bf16.msra.mxu0 0
    %2915 = vmatprep.subr.bf16.mxu0 0
    %2916 = vmatpush1.bf16.msra.mxu0 0
    %2917 = vmatprep.subr.bf16.mxu0 0
    %2918 = vmatpush1.bf16.msra.mxu0 0
    %2919 = vmatprep.subr.bf16.mxu0 0
    %2920 = vmatpush1.bf16.msra.mxu0 0
    %2921 = vmatprep.subr.bf16.mxu0 0
    %2922 = vmatpush1.bf16.msra.mxu0 0
    %2923 = vmatprep.subr.bf16.mxu0 0
    %2924 = vmatpush1.bf16.msra.mxu0 0
    %2925 = vmatprep.subr.bf16.mxu0 0
    %2926 = vmatpush1.bf16.msra.mxu0 0
    %2927 = vmatprep.subr.bf16.mxu0 0
    %2928 = vmatpush1.bf16.msra.mxu0 0
    %2929 = vmatprep.subr.bf16.mxu0 0
    %2930 = vmatpush1.bf16.msra.mxu0 0
    %2931 = vmatprep.subr.bf16.mxu0 0
    %2932 = vmatpush1.bf16.msra.mxu0 0
    %2933 = vmatprep.subr.bf16.mxu0 0
    %2934 = vmatpush1.bf16.msra.mxu0 0
    %2935 = vmatprep.subr.bf16.mxu0 0
    %2936 = vmatpush1.bf16.msra.mxu0 0
    %2937 = vmatprep.subr.bf16.mxu0 0
    %2938 = vmatpush1.bf16.msra.mxu0 0
    %2939 = vmatprep.mubr.bf16.mxu0 0
    %2940 = vmatmul.mubr.bf16.gmra.mrb[0].mxu0 %v1224
    %v2941 = vpop.f32.mrb[0].mxu0
    %v2942 = vadd.f32 0.0, %v2941
    %v2943 = vpop.f32.mrb[0].mxu0
    %v2944 = vpop.f32.mrb[0].mxu0
    %v2945 = vpop.f32.mrb[0].mxu0
    %2946 = vdwg.mxu0
    %v2948 = vsel %vm251, %v2863, 0
    %2950 = vmatprep.subr.bf16.mxu0 0
    %2951 = vmatpush1.bf16.msra.mxu0 %v2948
    %2952 = vmatprep.subr.bf16.mxu0 0
    %2953 = vmatpush1.bf16.msra.mxu0 0
    %2954 = vmatprep.subr.bf16.mxu0 0
    %2955 = vmatpush1.bf16.msra.mxu0 0
    %2956 = vmatprep.subr.bf16.mxu0 0
    %2957 = vmatpush1.bf16.msra.mxu0 0
    %2958 = vmatprep.subr.bf16.mxu0 0
    %2959 = vmatpush1.bf16.msra.mxu0 0
    %2960 = vmatprep.subr.bf16.mxu0 0
    %2961 = vmatpush1.bf16.msra.mxu0 0
    %2962 = vmatprep.subr.bf16.mxu0 0
    %2963 = vmatpush1.bf16.msra.mxu0 0
    %2964 = vmatprep.subr.bf16.mxu0 0
    %2965 = vmatpush1.bf16.msra.mxu0 0
    %2966 = vmatprep.subr.bf16.mxu0 0
    %2967 = vmatpush1.bf16.msra.mxu0 0
    %2968 = vmatprep.subr.bf16.mxu0 0
    %2969 = vmatpush1.bf16.msra.mxu0 0
    %2970 = vmatprep.subr.bf16.mxu0 0
    %2971 = vmatpush1.bf16.msra.mxu0 0
    %2972 = vmatprep.subr.bf16.mxu0 0
    %2973 = vmatpush1.bf16.msra.mxu0 0
    %2974 = vmatprep.subr.bf16.mxu0 0
    %2975 = vmatpush1.bf16.msra.mxu0 0
    %2976 = vmatprep.subr.bf16.mxu0 0
    %2977 = vmatpush1.bf16.msra.mxu0 0
    %2978 = vmatprep.subr.bf16.mxu0 0
    %2979 = vmatpush1.bf16.msra.mxu0 0
    %2980 = vmatprep.subr.bf16.mxu0 0
    %2981 = vmatpush1.bf16.msra.mxu0 0
    %2982 = vmatprep.mubr.bf16.mxu0 0
    %2983 = vmatmul.mubr.bf16.gmra.mrb[0].mxu0 %v1269
    %v2984 = vpop.f32.mrb[0].mxu0
    %v2985 = vadd.f32 %v2942, %v2984
    %v2986 = vpop.f32.mrb[0].mxu0
    %v2987 = vpop.f32.mrb[0].mxu0
    %v2988 = vpop.f32.mrb[0].mxu0
    %2989 = vdwg.mxu0
    %v2991 = vsel %vm251, %v2904, 0
    %2993 = vmatprep.subr.bf16.mxu0 0
    %2994 = vmatpush1.bf16.msra.mxu0 %v2991
    %2995 = vmatprep.subr.bf16.mxu0 0
    %2996 = vmatpush1.bf16.msra.mxu0 0
    %2997 = vmatprep.subr.bf16.mxu0 0
    %2998 = vmatpush1.bf16.msra.mxu0 0
    %2999 = vmatprep.subr.bf16.mxu0 0
    %3000 = vmatpush1.bf16.msra.mxu0 0
    %3001 = vmatprep.subr.bf16.mxu0 0
    %3002 = vmatpush1.bf16.msra.mxu0 0
    %3003 = vmatprep.subr.bf16.mxu0 0
    %3004 = vmatpush1.bf16.msra.mxu0 0
    %3005 = vmatprep.subr.bf16.mxu0 0
    %3006 = vmatpush1.bf16.msra.mxu0 0
    %3007 = vmatprep.subr.bf16.mxu0 0
    %3008 = vmatpush1.bf16.msra.mxu0 0
    %3009 = vmatprep.subr.bf16.mxu0 0
    %3010 = vmatpush1.bf16.msra.mxu0 0
    %3011 = vmatprep.subr.bf16.mxu0 0
    %3012 = vmatpush1.bf16.msra.mxu0 0
    %3013 = vmatprep.subr.bf16.mxu0 0
    %3014 = vmatpush1.bf16.msra.mxu0 0
    %3015 = vmatprep.subr.bf16.mxu0 0
    %3016 = vmatpush1.bf16.msra.mxu0 0
    %3017 = vmatprep.subr.bf16.mxu0 0
    %3018 = vmatpush1.bf16.msra.mxu0 0
    %3019 = vmatprep.subr.bf16.mxu0 0
    %3020 = vmatpush1.bf16.msra.mxu0 0
    %3021 = vmatprep.subr.bf16.mxu0 0
    %3022 = vmatpush1.bf16.msra.mxu0 0
    %3023 = vmatprep.subr.bf16.mxu0 0
    %3024 = vmatpush1.bf16.msra.mxu0 0
    %3025 = vmatprep.mubr.bf16.mxu0 0
    %3026 = vmatmul.mubr.bf16.gmra.mrb[0].mxu0 %v1315
    %v3027 = vpop.f32.mrb[0].mxu0
    %v3028 = vadd.f32 0.0, %v3027
    %v3029 = vpop.f32.mrb[0].mxu0
    %v3030 = vpop.f32.mrb[0].mxu0
    %v3031 = vpop.f32.mrb[0].mxu0
    %3032 = vdwg.mxu0
    %v3033 = vadd.f32 %v2985, %v3028
    %v3034 = vmul.f32 %v3033, %v1364
    %v3035 = vadd.f32 %v3034, %v1370
    %vm3036 = vcmp.gt.f32.partialorder %v3035, 0.0
    %v3037 = vmul.f32 %v3035, 0.2
    %v3038 = vsel %vm3036, %v3035, %v3037
    %v3039 = vpack.c.bf16 %v3038, %v3038
    %v3041 = vsel %vm651, %v3039, 0
    %3043 = vmatprep.subr.bf16.mxu0 0
    %3044 = vmatpush1.bf16.msra.mxu0 %v1381
    %3045 = vmatprep.subr.bf16.mxu0 0
    %3046 = vmatpush1.bf16.msra.mxu0 0
    %3047 = vmatprep.subr.bf16.mxu0 0
    %3048 = vmatpush1.bf16.msra.mxu0 0
    %3049 = vmatprep.subr.bf16.mxu0 0
    %3050 = vmatpush1.bf16.msra.mxu0 0
    %3051 = vmatprep.subr.bf16.mxu0 0
    %3052 = vmatpush1.bf16.msra.mxu0 0
    %3053 = vmatprep.subr.bf16.mxu0 0
    %3054 = vmatpush1.bf16.msra.mxu0 0
    %3055 = vmatprep.subr.bf16.mxu0 0
    %3056 = vmatpush1.bf16.msra.mxu0 0
    %3057 = vmatprep.subr.bf16.mxu0 0
    %3058 = vmatpush1.bf16.msra.mxu0 0
    %3059 = vmatprep.subr.bf16.mxu0 0
    %3060 = vmatpush1.bf16.msra.mxu0 0
    %3061 = vmatprep.subr.bf16.mxu0 0
    %3062 = vmatpush1.bf16.msra.mxu0 0
    %3063 = vmatprep.subr.bf16.mxu0 0
    %3064 = vmatpush1.bf16.msra.mxu0 0
    %3065 = vmatprep.subr.bf16.mxu0 0
    %3066 = vmatpush1.bf16.msra.mxu0 0
    %3067 = vmatprep.subr.bf16.mxu0 0
    %3068 = vmatpush1.bf16.msra.mxu0 0
    %3069 = vmatprep.subr.bf16.mxu0 0
    %3070 = vmatpush1.bf16.msra.mxu0 0
    %3071 = vmatprep.subr.bf16.mxu0 0
    %3072 = vmatpush1.bf16.msra.mxu0 0
    %3073 = vmatprep.subr.bf16.mxu0 0
    %3074 = vmatpush1.bf16.msra.mxu0 0
    %3075 = vmatprep.mubr.bf16.mxu0 0
    %3076 = vmatmul.mubr.bf16.gmra.mrb[0].mxu0 %v3041
    %v3077 = vpop.f32.mrb[0].mxu0
    %v3078 = vadd.f32 0.0, %v3077
    %v3079 = vpop.f32.mrb[0].mxu0
    %v3080 = vpop.f32.mrb[0].mxu0
    %v3081 = vpop.f32.mrb[0].mxu0
    %3082 = vdwg.mxu0
    %s3083 = scalar_lea.vmem %s1, 4
    %v3084 = vld [vmem:[%s3083] sm:$0xf]
    %v3085 = vpack.c.bf16 %v3084, %v3078
    %v3087 = vsel %vm1428, %v3085, 0
    %3089 = vmatprep.subr.bf16.mxu0 0
    %3090 = vmatpush1.bf16.msra.mxu0 %v104
    %3091 = vmatprep.subr.bf16.mxu0 0
    %3092 = vmatpush1.bf16.msra.mxu0 %v116
    %3093 = vmatprep.subr.bf16.mxu0 0
    %3094 = vmatpush1.bf16.msra.mxu0 0
    %3095 = vmatprep.subr.bf16.mxu0 0
    %3096 = vmatpush1.bf16.msra.mxu0 0
    %3097 = vmatprep.subr.bf16.mxu0 0
    %3098 = vmatpush1.bf16.msra.mxu0 0
    %3099 = vmatprep.subr.bf16.mxu0 0
    %3100 = vmatpush1.bf16.msra.mxu0 0
    %3101 = vmatprep.subr.bf16.mxu0 0
    %3102 = vmatpush1.bf16.msra.mxu0 0
    %3103 = vmatprep.subr.bf16.mxu0 0
    %3104 = vmatpush1.bf16.msra.mxu0 0
    %3105 = vmatprep.subr.bf16.mxu0 0
    %3106 = vmatpush1.bf16.msra.mxu0 0
    %3107 = vmatprep.subr.bf16.mxu0 0
    %3108 = vmatpush1.bf16.msra.mxu0 0
    %3109 = vmatprep.subr.bf16.mxu0 0
    %3110 = vmatpush1.bf16.msra.mxu0 0
    %3111 = vmatprep.subr.bf16.mxu0 0
    %3112 = vmatpush1.bf16.msra.mxu0 0
    %3113 = vmatprep.subr.bf16.mxu0 0
    %3114 = vmatpush1.bf16.msra.mxu0 0
    %3115 = vmatprep.subr.bf16.mxu0 0
    %3116 = vmatpush1.bf16.msra.mxu0 0
    %3117 = vmatprep.subr.bf16.mxu0 0
    %3118 = vmatpush1.bf16.msra.mxu0 0
    %3119 = vmatprep.subr.bf16.mxu0 0
    %3120 = vmatpush1.bf16.msra.mxu0 0
    %3121 = vmatprep.mubr.bf16.mxu0 0
    %3122 = vmatmul.mubr.bf16.gmra.mrb[0].mxu0 %v3087
    %v3123 = vpop.f32.mrb[0].mxu0
    %v3124 = vadd.f32 0.0, %v3123
    %v3125 = vpop.f32.mrb[0].mxu0
    %v3126 = vpop.f32.mrb[0].mxu0
    %v3127 = vadd.f32 0.0, %v3126
    %v3128 = vpop.f32.mrb[0].mxu0
    %3129 = vdwg.mxu0
    %v3130 = vpack.c.bf16 %v3127, %v3124
    %3131 = vmatprep.subr.bf16.mxu0 0
    %3132 = vmatpush1.bf16.msra.mxu0 %v107
    %3133 = vmatprep.subr.bf16.mxu0 0
    %3134 = vmatpush1.bf16.msra.mxu0 %v121
    %3135 = vmatprep.subr.bf16.mxu0 0
    %3136 = vmatpush1.bf16.msra.mxu0 0
    %3137 = vmatprep.subr.bf16.mxu0 0
    %3138 = vmatpush1.bf16.msra.mxu0 0
    %3139 = vmatprep.subr.bf16.mxu0 0
    %3140 = vmatpush1.bf16.msra.mxu0 0
    %3141 = vmatprep.subr.bf16.mxu0 0
    %3142 = vmatpush1.bf16.msra.mxu0 0
    %3143 = vmatprep.subr.bf16.mxu0 0
    %3144 = vmatpush1.bf16.msra.mxu0 0
    %3145 = vmatprep.subr.bf16.mxu0 0
    %3146 = vmatpush1.bf16.msra.mxu0 0
    %3147 = vmatprep.subr.bf16.mxu0 0
    %3148 = vmatpush1.bf16.msra.mxu0 0
    %3149 = vmatprep.subr.bf16.mxu0 0
    %3150 = vmatpush1.bf16.msra.mxu0 0
    %3151 = vmatprep.subr.bf16.mxu0 0
    %3152 = vmatpush1.bf16.msra.mxu0 0
    %3153 = vmatprep.subr.bf16.mxu0 0
    %3154 = vmatpush1.bf16.msra.mxu0 0
    %3155 = vmatprep.subr.bf16.mxu0 0
    %3156 = vmatpush1.bf16.msra.mxu0 0
    %3157 = vmatprep.subr.bf16.mxu0 0
    %3158 = vmatpush1.bf16.msra.mxu0 0
    %3159 = vmatprep.subr.bf16.mxu0 0
    %3160 = vmatpush1.bf16.msra.mxu0 0
    %3161 = vmatprep.subr.bf16.mxu0 0
    %3162 = vmatpush1.bf16.msra.mxu0 0
    %3163 = vmatprep.mubr.bf16.mxu0 0
    %3164 = vmatmul.mubr.bf16.gmra.mrb[0].mxu0 %v3087
    %v3165 = vpop.f32.mrb[0].mxu0
    %v3166 = vadd.f32 0.0, %v3165
    %v3167 = vpop.f32.mrb[0].mxu0
    %v3168 = vpop.f32.mrb[0].mxu0
    %v3169 = vadd.f32 0.0, %v3168
    %v3170 = vpop.f32.mrb[0].mxu0
    %3171 = vdwg.mxu0
    %v3172 = vpack.c.bf16 %v3169, %v3166
    %v3173 = vsel %vm1520, %v3085, 0
    %3175 = vmatprep.subr.bf16.mxu0 0
    %3176 = vmatpush1.bf16.msra.mxu0 %v3173
    %3177 = vmatprep.subr.bf16.mxu0 0
    %3178 = vmatpush1.bf16.msra.mxu0 0
    %3179 = vmatprep.subr.bf16.mxu0 0
    %3180 = vmatpush1.bf16.msra.mxu0 0
    %3181 = vmatprep.subr.bf16.mxu0 0
    %3182 = vmatpush1.bf16.msra.mxu0 0
    %3183 = vmatprep.subr.bf16.mxu0 0
    %3184 = vmatpush1.bf16.msra.mxu0 0
    %3185 = vmatprep.subr.bf16.mxu0 0
    %3186 = vmatpush1.bf16.msra.mxu0 0
    %3187 = vmatprep.subr.bf16.mxu0 0
    %3188 = vmatpush1.bf16.msra.mxu0 0
    %3189 = vmatprep.subr.bf16.mxu0 0
    %3190 = vmatpush1.bf16.msra.mxu0 0
    %3191 = vmatprep.subr.bf16.mxu0 0
    %3192 = vmatpush1.bf16.msra.mxu0 0
    %3193 = vmatprep.subr.bf16.mxu0 0
    %3194 = vmatpush1.bf16.msra.mxu0 0
    %3195 = vmatprep.subr.bf16.mxu0 0
    %3196 = vmatpush1.bf16.msra.mxu0 0
    %3197 = vmatprep.subr.bf16.mxu0 0
    %3198 = vmatpush1.bf16.msra.mxu0 0
    %3199 = vmatprep.subr.bf16.mxu0 0
    %3200 = vmatpush1.bf16.msra.mxu0 0
    %3201 = vmatprep.subr.bf16.mxu0 0
    %3202 = vmatpush1.bf16.msra.mxu0 0
    %3203 = vmatprep.subr.bf16.mxu0 0
    %3204 = vmatpush1.bf16.msra.mxu0 0
    %3205 = vmatprep.subr.bf16.mxu0 0
    %3206 = vmatpush1.bf16.msra.mxu0 0
    %3207 = vmatprep.mubr.bf16.mxu0 0
    %3208 = vmatmul.mubr.bf16.gmra.mrb[0].mxu0 %v1518
    %v3209 = vpop.f32.mrb[0].mxu0
    %v3210 = vadd.f32 0.0, %v3209
    %v3211 = vpop.f32.mrb[0].mxu0
    %v3212 = vpop.f32.mrb[0].mxu0
    %v3213 = vpop.f32.mrb[0].mxu0
    %3214 = vdwg.mxu0
    %v3216 = vsel %vm1520, %v3130, 0
    %3218 = vmatprep.subr.bf16.mxu0 0
    %3219 = vmatpush1.bf16.msra.mxu0 %v3216
    %3220 = vmatprep.subr.bf16.mxu0 0
    %3221 = vmatpush1.bf16.msra.mxu0 0
    %3222 = vmatprep.subr.bf16.mxu0 0
    %3223 = vmatpush1.bf16.msra.mxu0 0
    %3224 = vmatprep.subr.bf16.mxu0 0
    %3225 = vmatpush1.bf16.msra.mxu0 0
    %3226 = vmatprep.subr.bf16.mxu0 0
    %3227 = vmatpush1.bf16.msra.mxu0 0
    %3228 = vmatprep.subr.bf16.mxu0 0
    %3229 = vmatpush1.bf16.msra.mxu0 0
    %3230 = vmatprep.subr.bf16.mxu0 0
    %3231 = vmatpush1.bf16.msra.mxu0 0
    %3232 = vmatprep.subr.bf16.mxu0 0
    %3233 = vmatpush1.bf16.msra.mxu0 0
    %3234 = vmatprep.subr.bf16.mxu0 0
    %3235 = vmatpush1.bf16.msra.mxu0 0
    %3236 = vmatprep.subr.bf16.mxu0 0
    %3237 = vmatpush1.bf16.msra.mxu0 0
    %3238 = vmatprep.subr.bf16.mxu0 0
    %3239 = vmatpush1.bf16.msra.mxu0 0
    %3240 = vmatprep.subr.bf16.mxu0 0
    %3241 = vmatpush1.bf16.msra.mxu0 0
    %3242 = vmatprep.subr.bf16.mxu0 0
    %3243 = vmatpush1.bf16.msra.mxu0 0
    %3244 = vmatprep.subr.bf16.mxu0 0
    %3245 = vmatpush1.bf16.msra.mxu0 0
    %3246 = vmatprep.subr.bf16.mxu0 0
    %3247 = vmatpush1.bf16.msra.mxu0 0
    %3248 = vmatprep.subr.bf16.mxu0 0
    %3249 = vmatpush1.bf16.msra.mxu0 0
    %3250 = vmatprep.mubr.bf16.mxu0 0
    %3251 = vmatmul.mubr.bf16.gmra.mrb[0].mxu0 %v1564
    %v3252 = vpop.f32.mrb[0].mxu0
    %v3253 = vadd.f32 %v3210, %v3252
    %v3254 = vpop.f32.mrb[0].mxu0
    %v3255 = vpop.f32.mrb[0].mxu0
    %v3256 = vpop.f32.mrb[0].mxu0
    %3257 = vdwg.mxu0
    %v3259 = vsel %vm1520, %v3172, 0
    %3261 = vmatprep.subr.bf16.mxu0 0
    %3262 = vmatpush1.bf16.msra.mxu0 %v3259
    %3263 = vmatprep.subr.bf16.mxu0 0
    %3264 = vmatpush1.bf16.msra.mxu0 0
    %3265 = vmatprep.subr.bf16.mxu0 0
    %3266 = vmatpush1.bf16.msra.mxu0 0
    %3267 = vmatprep.subr.bf16.mxu0 0
    %3268 = vmatpush1.bf16.msra.mxu0 0
    %3269 = vmatprep.subr.bf16.mxu0 0
    %3270 = vmatpush1.bf16.msra.mxu0 0
    %3271 = vmatprep.subr.bf16.mxu0 0
    %3272 = vmatpush1.bf16.msra.mxu0 0
    %3273 = vmatprep.subr.bf16.mxu0 0
    %3274 = vmatpush1.bf16.msra.mxu0 0
    %3275 = vmatprep.subr.bf16.mxu0 0
    %3276 = vmatpush1.bf16.msra.mxu0 0
    %3277 = vmatprep.subr.bf16.mxu0 0
    %3278 = vmatpush1.bf16.msra.mxu0 0
    %3279 = vmatprep.subr.bf16.mxu0 0
    %3280 = vmatpush1.bf16.msra.mxu0 0
    %3281 = vmatprep.subr.bf16.mxu0 0
    %3282 = vmatpush1.bf16.msra.mxu0 0
    %3283 = vmatprep.subr.bf16.mxu0 0
    %3284 = vmatpush1.bf16.msra.mxu0 0
    %3285 = vmatprep.subr.bf16.mxu0 0
    %3286 = vmatpush1.bf16.msra.mxu0 0
    %3287 = vmatprep.subr.bf16.mxu0 0
    %3288 = vmatpush1.bf16.msra.mxu0 0
    %3289 = vmatprep.subr.bf16.mxu0 0
    %3290 = vmatpush1.bf16.msra.mxu0 0
    %3291 = vmatprep.subr.bf16.mxu0 0
    %3292 = vmatpush1.bf16.msra.mxu0 0
    %3293 = vmatprep.mubr.bf16.mxu0 0
    %3294 = vmatmul.mubr.bf16.gmra.mrb[0].mxu0 %v1610
    %v3295 = vpop.f32.mrb[0].mxu0
    %v3296 = vadd.f32 0.0, %v3295
    %v3297 = vpop.f32.mrb[0].mxu0
    %v3298 = vpop.f32.mrb[0].mxu0
    %v3299 = vpop.f32.mrb[0].mxu0
    %3300 = vdwg.mxu0
    %v3301 = vadd.f32 %v3253, %v3296
    %v3302 = vmul.f32 %v3301, %v1659
    %v3303 = vadd.f32 %v3302, %v1665
    %vm3304 = vcmp.gt.f32.partialorder %v3303, 0.0
    %v3305 = vmul.f32 %v3303, 0.2
    %v3306 = vsel %vm3304, %v3303, %v3305
    %v3307 = vpack.c.bf16 %v3306, %v3306
    %v3309 = vsel %vm1428, %v3307, 0
    %3311 = vmatprep.subr.bf16.mxu0 0
    %3312 = vmatpush1.bf16.msra.mxu0 %v104
    %3313 = vmatprep.subr.bf16.mxu0 0
    %3314 = vmatpush1.bf16.msra.mxu0 %v116
    %3315 = vmatprep.subr.bf16.mxu0 0
    %3316 = vmatpush1.bf16.msra.mxu0 0
    %3317 = vmatprep.subr.bf16.mxu0 0
    %3318 = vmatpush1.bf16.msra.mxu0 0
    %3319 = vmatprep.subr.bf16.mxu0 0
    %3320 = vmatpush1.bf16.msra.mxu0 0
    %3321 = vmatprep.subr.bf16.mxu0 0
    %3322 = vmatpush1.bf16.msra.mxu0 0
    %3323 = vmatprep.subr.bf16.mxu0 0
    %3324 = vmatpush1.bf16.msra.mxu0 0
    %3325 = vmatprep.subr.bf16.mxu0 0
    %3326 = vmatpush1.bf16.msra.mxu0 0
    %3327 = vmatprep.subr.bf16.mxu0 0
    %3328 = vmatpush1.bf16.msra.mxu0 0
    %3329 = vmatprep.subr.bf16.mxu0 0
    %3330 = vmatpush1.bf16.msra.mxu0 0
    %3331 = vmatprep.subr.bf16.mxu0 0
    %3332 = vmatpush1.bf16.msra.mxu0 0
    %3333 = vmatprep.subr.bf16.mxu0 0
    %3334 = vmatpush1.bf16.msra.mxu0 0
    %3335 = vmatprep.subr.bf16.mxu0 0
    %3336 = vmatpush1.bf16.msra.mxu0 0
    %3337 = vmatprep.subr.bf16.mxu0 0
    %3338 = vmatpush1.bf16.msra.mxu0 0
    %3339 = vmatprep.subr.bf16.mxu0 0
    %3340 = vmatpush1.bf16.msra.mxu0 0
    %3341 = vmatprep.subr.bf16.mxu0 0
    %3342 = vmatpush1.bf16.msra.mxu0 0
    %3343 = vmatprep.mubr.bf16.mxu0 0
    %3344 = vmatmul.mubr.bf16.gmra.mrb[0].mxu0 %v3309
    %v3345 = vpop.f32.mrb[0].mxu0
    %v3346 = vadd.f32 0.0, %v3345
    %v3347 = vpop.f32.mrb[0].mxu0
    %v3348 = vpop.f32.mrb[0].mxu0
    %v3349 = vpop.f32.mrb[0].mxu0
    %3350 = vdwg.mxu0
    %v3351 = vpack.c.bf16 %v3346, %v3346
    %3352 = vmatprep.subr.bf16.mxu0 0
    %3353 = vmatpush1.bf16.msra.mxu0 %v107
    %3354 = vmatprep.subr.bf16.mxu0 0
    %3355 = vmatpush1.bf16.msra.mxu0 %v121
    %3356 = vmatprep.subr.bf16.mxu0 0
    %3357 = vmatpush1.bf16.msra.mxu0 0
    %3358 = vmatprep.subr.bf16.mxu0 0
    %3359 = vmatpush1.bf16.msra.mxu0 0
    %3360 = vmatprep.subr.bf16.mxu0 0
    %3361 = vmatpush1.bf16.msra.mxu0 0
    %3362 = vmatprep.subr.bf16.mxu0 0
    %3363 = vmatpush1.bf16.msra.mxu0 0
    %3364 = vmatprep.subr.bf16.mxu0 0
    %3365 = vmatpush1.bf16.msra.mxu0 0
    %3366 = vmatprep.subr.bf16.mxu0 0
    %3367 = vmatpush1.bf16.msra.mxu0 0
    %3368 = vmatprep.subr.bf16.mxu0 0
    %3369 = vmatpush1.bf16.msra.mxu0 0
    %3370 = vmatprep.subr.bf16.mxu0 0
    %3371 = vmatpush1.bf16.msra.mxu0 0
    %3372 = vmatprep.subr.bf16.mxu0 0
    %3373 = vmatpush1.bf16.msra.mxu0 0
    %3374 = vmatprep.subr.bf16.mxu0 0
    %3375 = vmatpush1.bf16.msra.mxu0 0
    %3376 = vmatprep.subr.bf16.mxu0 0
    %3377 = vmatpush1.bf16.msra.mxu0 0
    %3378 = vmatprep.subr.bf16.mxu0 0
    %3379 = vmatpush1.bf16.msra.mxu0 0
    %3380 = vmatprep.subr.bf16.mxu0 0
    %3381 = vmatpush1.bf16.msra.mxu0 0
    %3382 = vmatprep.subr.bf16.mxu0 0
    %3383 = vmatpush1.bf16.msra.mxu0 0
    %3384 = vmatprep.mubr.bf16.mxu0 0
    %3385 = vmatmul.mubr.bf16.gmra.mrb[0].mxu0 %v3309
    %v3386 = vpop.f32.mrb[0].mxu0
    %v3387 = vadd.f32 0.0, %v3386
    %v3388 = vpop.f32.mrb[0].mxu0
    %v3389 = vpop.f32.mrb[0].mxu0
    %v3390 = vpop.f32.mrb[0].mxu0
    %3391 = vdwg.mxu0
    %v3392 = vpack.c.bf16 %v3387, %v3387
    %v3393 = vsel %vm183, %v3307, 0
    %3395 = vmatprep.subr.bf16.mxu0 0
    %3396 = vmatpush1.bf16.msra.mxu0 %v3393
    %3397 = vmatprep.subr.bf16.mxu0 0
    %3398 = vmatpush1.bf16.msra.mxu0 0
    %3399 = vmatprep.subr.bf16.mxu0 0
    %3400 = vmatpush1.bf16.msra.mxu0 0
    %3401 = vmatprep.subr.bf16.mxu0 0
    %3402 = vmatpush1.bf16.msra.mxu0 0
    %3403 = vmatprep.subr.bf16.mxu0 0
    %3404 = vmatpush1.bf16.msra.mxu0 0
    %3405 = vmatprep.subr.bf16.mxu0 0
    %3406 = vmatpush1.bf16.msra.mxu0 0
    %3407 = vmatprep.subr.bf16.mxu0 0
    %3408 = vmatpush1.bf16.msra.mxu0 0
    %3409 = vmatprep.subr.bf16.mxu0 0
    %3410 = vmatpush1.bf16.msra.mxu0 0
    %3411 = vmatprep.subr.bf16.mxu0 0
    %3412 = vmatpush1.bf16.msra.mxu0 0
    %3413 = vmatprep.subr.bf16.mxu0 0
    %3414 = vmatpush1.bf16.msra.mxu0 0
    %3415 = vmatprep.subr.bf16.mxu0 0
    %3416 = vmatpush1.bf16.msra.mxu0 0
    %3417 = vmatprep.subr.bf16.mxu0 0
    %3418 = vmatpush1.bf16.msra.mxu0 0
    %3419 = vmatprep.subr.bf16.mxu0 0
    %3420 = vmatpush1.bf16.msra.mxu0 0
    %3421 = vmatprep.subr.bf16.mxu0 0
    %3422 = vmatpush1.bf16.msra.mxu0 0
    %3423 = vmatprep.subr.bf16.mxu0 0
    %3424 = vmatpush1.bf16.msra.mxu0 0
    %3425 = vmatprep.subr.bf16.mxu0 0
    %3426 = vmatpush1.bf16.msra.mxu0 0
    %3427 = vmatprep.mubr.bf16.mxu0 0
    %3428 = vmatmul.mubr.bf16.gmra.mrb[0].mxu0 %v1758
    %v3429 = vpop.f32.mrb[0].mxu0
    %v3430 = vadd.f32 0.0, %v3429
    %v3431 = vpop.f32.mrb[0].mxu0
    %v3432 = vpop.f32.mrb[0].mxu0
    %v3433 = vpop.f32.mrb[0].mxu0
    %3434 = vdwg.mxu0
    %v3436 = vsel %vm183, %v3351, 0
    %3438 = vmatprep.subr.bf16.mxu0 0
    %3439 = vmatpush1.bf16.msra.mxu0 %v3436
    %3440 = vmatprep.subr.bf16.mxu0 0
    %3441 = vmatpush1.bf16.msra.mxu0 0
    %3442 = vmatprep.subr.bf16.mxu0 0
    %3443 = vmatpush1.bf16.msra.mxu0 0
    %3444 = vmatprep.subr.bf16.mxu0 0
    %3445 = vmatpush1.bf16.msra.mxu0 0
    %3446 = vmatprep.subr.bf16.mxu0 0
    %3447 = vmatpush1.bf16.msra.mxu0 0
    %3448 = vmatprep.subr.bf16.mxu0 0
    %3449 = vmatpush1.bf16.msra.mxu0 0
    %3450 = vmatprep.subr.bf16.mxu0 0
    %3451 = vmatpush1.bf16.msra.mxu0 0
    %3452 = vmatprep.subr.bf16.mxu0 0
    %3453 = vmatpush1.bf16.msra.mxu0 0
    %3454 = vmatprep.subr.bf16.mxu0 0
    %3455 = vmatpush1.bf16.msra.mxu0 0
    %3456 = vmatprep.subr.bf16.mxu0 0
    %3457 = vmatpush1.bf16.msra.mxu0 0
    %3458 = vmatprep.subr.bf16.mxu0 0
    %3459 = vmatpush1.bf16.msra.mxu0 0
    %3460 = vmatprep.subr.bf16.mxu0 0
    %3461 = vmatpush1.bf16.msra.mxu0 0
    %3462 = vmatprep.subr.bf16.mxu0 0
    %3463 = vmatpush1.bf16.msra.mxu0 0
    %3464 = vmatprep.subr.bf16.mxu0 0
    %3465 = vmatpush1.bf16.msra.mxu0 0
    %3466 = vmatprep.subr.bf16.mxu0 0
    %3467 = vmatpush1.bf16.msra.mxu0 0
    %3468 = vmatprep.subr.bf16.mxu0 0
    %3469 = vmatpush1.bf16.msra.mxu0 0
    %3470 = vmatprep.mubr.bf16.mxu0 0
    %3471 = vmatmul.mubr.bf16.gmra.mrb[0].mxu0 %v1803
    %v3472 = vpop.f32.mrb[0].mxu0
    %v3473 = vadd.f32 %v3430, %v3472
    %v3474 = vpop.f32.mrb[0].mxu0
    %v3475 = vpop.f32.mrb[0].mxu0
    %v3476 = vpop.f32.mrb[0].mxu0
    %3477 = vdwg.mxu0
    %v3479 = vsel %vm183, %v3392, 0
    %3481 = vmatprep.subr.bf16.mxu0 0
    %3482 = vmatpush1.bf16.msra.mxu0 %v3479
    %3483 = vmatprep.subr.bf16.mxu0 0
    %3484 = vmatpush1.bf16.msra.mxu0 0
    %3485 = vmatprep.subr.bf16.mxu0 0
    %3486 = vmatpush1.bf16.msra.mxu0 0
    %3487 = vmatprep.subr.bf16.mxu0 0
    %3488 = vmatpush1.bf16.msra.mxu0 0
    %3489 = vmatprep.subr.bf16.mxu0 0
    %3490 = vmatpush1.bf16.msra.mxu0 0
    %3491 = vmatprep.subr.bf16.mxu0 0
    %3492 = vmatpush1.bf16.msra.mxu0 0
    %3493 = vmatprep.subr.bf16.mxu0 0
    %3494 = vmatpush1.bf16.msra.mxu0 0
    %3495 = vmatprep.subr.bf16.mxu0 0
    %3496 = vmatpush1.bf16.msra.mxu0 0
    %3497 = vmatprep.subr.bf16.mxu0 0
    %3498 = vmatpush1.bf16.msra.mxu0 0
    %3499 = vmatprep.subr.bf16.mxu0 0
    %3500 = vmatpush1.bf16.msra.mxu0 0
    %3501 = vmatprep.subr.bf16.mxu0 0
    %3502 = vmatpush1.bf16.msra.mxu0 0
    %3503 = vmatprep.subr.bf16.mxu0 0
    %3504 = vmatpush1.bf16.msra.mxu0 0
    %3505 = vmatprep.subr.bf16.mxu0 0
    %3506 = vmatpush1.bf16.msra.mxu0 0
    %3507 = vmatprep.subr.bf16.mxu0 0
    %3508 = vmatpush1.bf16.msra.mxu0 0
    %3509 = vmatprep.subr.bf16.mxu0 0
    %3510 = vmatpush1.bf16.msra.mxu0 0
    %3511 = vmatprep.subr.bf16.mxu0 0
    %3512 = vmatpush1.bf16.msra.mxu0 0
    %3513 = vmatprep.mubr.bf16.mxu0 0
    %3514 = vmatmul.mubr.bf16.gmra.mrb[0].mxu0 %v1849
    %v3515 = vpop.f32.mrb[0].mxu0
    %v3516 = vadd.f32 0.0, %v3515
    %v3517 = vpop.f32.mrb[0].mxu0
    %v3518 = vpop.f32.mrb[0].mxu0
    %v3519 = vpop.f32.mrb[0].mxu0
    %3520 = vdwg.mxu0
    %v3521 = vadd.f32 %v3473, %v3516
    %v3522 = vmul.f32 %v3521, %v1898
    %v3523 = vadd.f32 %v3522, %v1904
    %vm3524 = vcmp.gt.f32.partialorder %v3523, 0.0
    %v3525 = vmul.f32 %v3523, 0.2
    %v3526 = vsel %vm3524, %v3523, %v3525
    %v3527 = vpack.c.bf16 %v3526, %v3526
    %v3529 = vsel %vm183, %v3527, 0
    %3531 = vmatprep.subr.bf16.mxu0 0
    %3532 = vmatpush1.bf16.msra.mxu0 %v3529
    %3533 = vmatprep.subr.bf16.mxu0 0
    %3534 = vmatpush1.bf16.msra.mxu0 0
    %3535 = vmatprep.subr.bf16.mxu0 0
    %3536 = vmatpush1.bf16.msra.mxu0 0
    %3537 = vmatprep.subr.bf16.mxu0 0
    %3538 = vmatpush1.bf16.msra.mxu0 0
    %3539 = vmatprep.subr.bf16.mxu0 0
    %3540 = vmatpush1.bf16.msra.mxu0 0
    %3541 = vmatprep.subr.bf16.mxu0 0
    %3542 = vmatpush1.bf16.msra.mxu0 0
    %3543 = vmatprep.subr.bf16.mxu0 0
    %3544 = vmatpush1.bf16.msra.mxu0 0
    %3545 = vmatprep.subr.bf16.mxu0 0
    %3546 = vmatpush1.bf16.msra.mxu0 0
    %3547 = vmatprep.subr.bf16.mxu0 0
    %3548 = vmatpush1.bf16.msra.mxu0 0
    %3549 = vmatprep.subr.bf16.mxu0 0
    %3550 = vmatpush1.bf16.msra.mxu0 0
    %3551 = vmatprep.subr.bf16.mxu0 0
    %3552 = vmatpush1.bf16.msra.mxu0 0
    %3553 = vmatprep.subr.bf16.mxu0 0
    %3554 = vmatpush1.bf16.msra.mxu0 0
    %3555 = vmatprep.subr.bf16.mxu0 0
    %3556 = vmatpush1.bf16.msra.mxu0 0
    %3557 = vmatprep.subr.bf16.mxu0 0
    %3558 = vmatpush1.bf16.msra.mxu0 0
    %3559 = vmatprep.subr.bf16.mxu0 0
    %3560 = vmatpush1.bf16.msra.mxu0 0
    %3561 = vmatprep.subr.bf16.mxu0 0
    %3562 = vmatpush1.bf16.msra.mxu0 0
    %3563 = vmatprep.mubr.bf16.mxu0 0
    %3564 = vmatmul.mubr.bf16.gmra.mrb[0].mxu0 %v1927
    %v3565 = vpop.f32.mrb[0].mxu0
    %v3566 = vadd.f32 %v1914, %v3565
    %v3567 = vpop.f32.mrb[0].mxu0
    %v3568 = vpop.f32.mrb[0].mxu0
    %v3569 = vadd.f32 %v1919, %v3568
    %v3570 = vpop.f32.mrb[0].mxu0
    %3571 = vdwg.mxu0
    %s3572 = scalar_lea.vmem [#allocation2], 16
    %3573 = vst.msk [vmem:[%s3572] sm:$0xff] %vm1428, %v3566
    %3574 = vst.msk [vmem:[%s3572 + $0x8] sm:$0xff] %vm1428, %v3569
    // Predicated region
    $region110: #{decoder_forward.1} parent=1 // pred_check
      _
    $region111: #{decoder_forward.1} parent=1 // pred_check_branch
      %3576 = sbr.rel (0) target = $region113
    $region112: #{decoder_forward.1} parent=1 // pred_region
      %s3578 = ssub.s32 512, 512
      %3579 = vsyncadd [#allocation3], %s3578
      %s3580 = sshll.u32 [#allocation2], 4
      %s3581 = int_to_ptr.vmem [resolvable:$true] %s3580
      %3586 = dma.vmem_to_hbm [thread:$0]  %s3581, 512, %s27, [#allocation3], 128, 128, 8
    $region113: #{decoder_forward.1} parent=1 // pred_fallthru
      _
    // Predicated region
    $region114: #{decoder_forward.1} parent=1 // pred_check
      _
    $region115: #{decoder_forward.1} parent=1 // pred_check_branch
      %3588 = sbr.rel (0) target = $region117
    $region116: #{decoder_forward.1} parent=1 // pred_region
      %3589 = dma.done [#allocation3], 512
    $region117: #{decoder_forward.1} parent=1 // pred_fallthru
      _
    %3590 = vsyncpa [#allocation3], 1

</llo_original>
